<compile_context>
chip_gen: v7x
topology: tpu7x:2x2x1
jax: 0.10.0
libtpu: 0.0.40
codegen_flags: <defaults>
</compile_context>

<pallas_src>
import numpy as np
import jax
import jax.numpy as jnp
from jax import lax
from jax.experimental import pallas as pl
from jax.experimental.pallas import tpu as pltpu


def get_gaussian_1d(kernel_len=16, nsig=10):
    """Replicates cv2.getGaussianKernel(kernel_len, nsig): normalized 1-D Gaussian."""
    i = np.arange(kernel_len, dtype=np.float64)
    center = (kernel_len - 1) / 2.0
    g = np.exp(-((i - center) ** 2) / (2.0 * nsig * nsig))
    return g / g.sum()


def get_gaussian_kernel(kernel_len=16, nsig=10):
    """2-D kernel = outer(g, g) (only used for the reference check)."""
    g = get_gaussian_1d(kernel_len, nsig)
    return np.outer(g, g).astype(np.float32)


def _band_matrices(H, W, kernel_len, nsig):
    """Banded matrices A (Ho,H), B (W,Wo) such that A @ x @ B equals
    F.conv2d(x, outer(g,g), padding=kernel_len//2) on one (H, W) plane.
    The zero padding is folded into the bands (out-of-range taps -> 0)."""
    g = get_gaussian_1d(kernel_len, nsig)
    pad = kernel_len // 2
    Ho = H + 2 * pad - kernel_len + 1
    Wo = W + 2 * pad - kernel_len + 1

    # out[i, j] = sum_{r, c} x[r, c] * g[r - i + pad] * g[c - j + pad]
    #             (taps with index outside [0, K) contribute zero).
    u = np.arange(H)[None, :] - np.arange(Ho)[:, None] + pad        # (Ho, H)
    A = np.where((u >= 0) & (u < kernel_len),
                 g[np.clip(u, 0, kernel_len - 1)], 0.0)
    v = np.arange(W)[:, None] - np.arange(Wo)[None, :] + pad        # (W, Wo)
    B = np.where((v >= 0) & (v < kernel_len),
                 g[np.clip(v, 0, kernel_len - 1)], 0.0)
    return A.astype(np.float32), B.astype(np.float32), Ho, Wo


def _gauss_conv_kernel(x_ref, a_ref, b_ref, o_ref):
    """One batch element: blur channels 0..2 via two MXU matmuls per plane.

    x_ref: (1, 3, H, W)   channels 0..2 of batch element n
    a_ref: (Ho, H)        left band matrix (column pass, padding folded in)
    b_ref: (W, Wo)        right band matrix (row pass, padding folded in)
    o_ref: (1, 3, Ho, Wo) output block
    """
    A = a_ref[...]
    B = b_ref[...]
    for c in range(o_ref.shape[1]):                    # 3 channels, unrolled
        xp = x_ref[0, c, :, :].astype(jnp.float32)     # single upcast if bf16
        t = jnp.dot(xp, B, preferred_element_type=jnp.float32,
                    precision=lax.Precision.HIGHEST)   # (H, Wo)  row pass
        o = jnp.dot(A, t, preferred_element_type=jnp.float32,
                    precision=lax.Precision.HIGHEST)   # (Ho, Wo) column pass
        o_ref[0, c, :, :] = o.astype(o_ref.dtype)


def gaussian_filter(x, kernel_len=16, nsig=10):
    """Equivalent of Gaussian_kernel.forward for NCHW `x` (C >= 3)."""
    N, C, H, W = x.shape
    assert C >= 3, "module only uses channels 0, 1, 2"
    A, B, Ho, Wo = _band_matrices(H, W, kernel_len, nsig)

    return pl.pallas_call(
        _gauss_conv_kernel,
        out_shape=jax.ShapeDtypeStruct((N, 3, Ho, Wo), x.dtype),
        grid=(N,),
        in_specs=[
            # channels 0..2 read directly from the original x (no wrapper
            # slice/pad); last two block dims equal the full array dims.
            pl.BlockSpec((1, 3, H, W), lambda n: (n, 0, 0, 0)),
            pl.BlockSpec((Ho, H), lambda n: (0, 0)),
            pl.BlockSpec((W, Wo), lambda n: (0, 0)),
        ],
        out_specs=pl.BlockSpec((1, 3, Ho, Wo), lambda n: (n, 0, 0, 0)),
        compiler_params=pltpu.CompilerParams(
            dimension_semantics=("parallel",)),
    )(x, jnp.asarray(A), jnp.asarray(B))


if __name__ == "__main__":
    kernel_len = 16
    nsig = 10
    N, C, H, W = 2, 4, 16, 16

    key = jax.random.PRNGKey(0)
    x = jax.random.normal(key, (N, C, H, W), dtype=jnp.float32)

    out = gaussian_filter(x, kernel_len, nsig)
    out = jax.block_until_ready(out)

    # Reference: XLA conv (same cross-correlation semantics as F.conv2d)
    # applied independently to the first 3 channels, then concatenated.
    w2d = jnp.asarray(get_gaussian_kernel(kernel_len, nsig))
    pad = kernel_len // 2
    refs = []
    for c in range(3):
        refs.append(lax.conv_general_dilated(
            x[:, c:c + 1],
            w2d[None, None, :, :],
            window_strides=(1, 1),
            padding=[(pad, pad), (pad, pad)],
            dimension_numbers=("NCHW", "OIHW", "NCHW"),
            precision=lax.Precision.HIGHEST))
    ref = jnp.concatenate(refs, axis=1)

    assert out.shape == (N, 3, H + 1, W + 1), out.shape
    np.testing.assert_allclose(np.asarray(out), np.asarray(ref),
                               rtol=1e-5, atol=1e-5)
    print("KERNEL_OK")
</pallas_src>

<mosaic_0001>
module attributes {stable_mosaic.version = 11 : i64} {
  func.func @_gauss_conv_kernel(%arg0: i32, %arg1: memref<1x3x16x16xf32, #tpu.memory_space<vmem>>, %arg2: memref<17x16xf32, #tpu.memory_space<vmem>>, %arg3: memref<16x17xf32, #tpu.memory_space<vmem>>, %arg4: memref<1x3x17x17xf32, #tpu.memory_space<vmem>>) attributes {dimension_semantics = [#tpu.dimension_semantics<parallel>], iteration_bounds = array<i64: 2>, scalar_prefetch = 0 : i64, scratch_operands = 0 : i64, tpu.core_type = #tpu.core_type<tc>, window_params = [{transform_indices = @transform_0, window_bounds = array<i64: 1, 3, 16, 16>}, {pipeline_mode = #tpu.pipeline_mode<synchronous>, transform_indices = @transform_1, window_bounds = array<i64: 17, 16>}, {pipeline_mode = #tpu.pipeline_mode<synchronous>, transform_indices = @transform_2, window_bounds = array<i64: 16, 17>}, {transform_indices = @transform_3, window_bounds = array<i64: 1, 3, 17, 17>}]} {
    %c0 = arith.constant 0 : index
    %c0_0 = arith.constant 0 : index
    %0 = vector.load %arg2[%c0, %c0_0] : memref<17x16xf32, #tpu.memory_space<vmem>>, vector<17x16xf32>
    %c0_1 = arith.constant 0 : index
    %c0_2 = arith.constant 0 : index
    %1 = vector.load %arg3[%c0_1, %c0_2] : memref<16x17xf32, #tpu.memory_space<vmem>>, vector<16x17xf32>
    %c0_3 = arith.constant 0 : index
    %c0_4 = arith.constant 0 : index
    %c0_5 = arith.constant 0 : index
    %c0_6 = arith.constant 0 : index
    %2 = vector.load %arg1[%c0_3, %c0_4, %c0_5, %c0_6] : memref<1x3x16x16xf32, #tpu.memory_space<vmem>>, vector<1x1x16x16xf32>
    %3 = vector.shape_cast %2 : vector<1x1x16x16xf32> to vector<16x16xf32>
    %cst = arith.constant dense<0.000000e+00> : vector<16x17xf32>
    %4 = tpu.matmul %3, %1, %cst {dimension_numbers = #tpu.dot_dimension_numbers<[1], [0], [0], [1], [0, 0, 1, 1], [], []>, precision = #tpu.contract_precision<fp32>} : vector<16x16xf32>, vector<16x17xf32>, vector<16x17xf32> -> vector<16x17xf32>
    %cst_7 = arith.constant dense<0.000000e+00> : vector<17x17xf32>
    %5 = tpu.matmul %0, %4, %cst_7 {dimension_numbers = #tpu.dot_dimension_numbers<[1], [0], [0], [1], [0, 0, 1, 1], [], []>, precision = #tpu.contract_precision<fp32>} : vector<17x16xf32>, vector<16x17xf32>, vector<17x17xf32> -> vector<17x17xf32>
    %c0_8 = arith.constant 0 : index
    %c0_9 = arith.constant 0 : index
    %c0_10 = arith.constant 0 : index
    %c0_11 = arith.constant 0 : index
    %6 = vector.load %arg4[%c0_8, %c0_9, %c0_10, %c0_11] : memref<1x3x17x17xf32, #tpu.memory_space<vmem>>, vector<1x1x17x17xf32>
    %7 = vector.shape_cast %6 : vector<1x1x17x17xf32> to vector<17x17xf32>
    %8 = vector.shape_cast %5 : vector<17x17xf32> to vector<1x1x17x17xf32>
    tpu.vector_store %arg4[%c0_8, %c0_9, %c0_10, %c0_11], %8 {strides = array<i32>} : memref<1x3x17x17xf32, #tpu.memory_space<vmem>>, vector<1x1x17x17xf32>,
    %c0_12 = arith.constant 0 : index
    %c1 = arith.constant 1 : index
    %c0_13 = arith.constant 0 : index
    %c0_14 = arith.constant 0 : index
    %9 = vector.load %arg1[%c0_12, %c1, %c0_13, %c0_14] : memref<1x3x16x16xf32, #tpu.memory_space<vmem>>, vector<1x1x16x16xf32>
    %10 = vector.shape_cast %9 : vector<1x1x16x16xf32> to vector<16x16xf32>
    %cst_15 = arith.constant dense<0.000000e+00> : vector<16x17xf32>
    %11 = tpu.matmul %10, %1, %cst_15 {dimension_numbers = #tpu.dot_dimension_numbers<[1], [0], [0], [1], [0, 0, 1, 1], [], []>, precision = #tpu.contract_precision<fp32>} : vector<16x16xf32>, vector<16x17xf32>, vector<16x17xf32> -> vector<16x17xf32>
    %cst_16 = arith.constant dense<0.000000e+00> : vector<17x17xf32>
    %12 = tpu.matmul %0, %11, %cst_16 {dimension_numbers = #tpu.dot_dimension_numbers<[1], [0], [0], [1], [0, 0, 1, 1], [], []>, precision = #tpu.contract_precision<fp32>} : vector<17x16xf32>, vector<16x17xf32>, vector<17x17xf32> -> vector<17x17xf32>
    %c0_17 = arith.constant 0 : index
    %c1_18 = arith.constant 1 : index
    %c0_19 = arith.constant 0 : index
    %c0_20 = arith.constant 0 : index
    %13 = vector.load %arg4[%c0_17, %c1_18, %c0_19, %c0_20] : memref<1x3x17x17xf32, #tpu.memory_space<vmem>>, vector<1x1x17x17xf32>
    %14 = vector.shape_cast %13 : vector<1x1x17x17xf32> to vector<17x17xf32>
    %15 = vector.shape_cast %12 : vector<17x17xf32> to vector<1x1x17x17xf32>
    tpu.vector_store %arg4[%c0_17, %c1_18, %c0_19, %c0_20], %15 {strides = array<i32>} : memref<1x3x17x17xf32, #tpu.memory_space<vmem>>, vector<1x1x17x17xf32>,
    %c0_21 = arith.constant 0 : index
    %c2 = arith.constant 2 : index
    %c0_22 = arith.constant 0 : index
    %c0_23 = arith.constant 0 : index
    %16 = vector.load %arg1[%c0_21, %c2, %c0_22, %c0_23] : memref<1x3x16x16xf32, #tpu.memory_space<vmem>>, vector<1x1x16x16xf32>
    %17 = vector.shape_cast %16 : vector<1x1x16x16xf32> to vector<16x16xf32>
    %cst_24 = arith.constant dense<0.000000e+00> : vector<16x17xf32>
    %18 = tpu.matmul %17, %1, %cst_24 {dimension_numbers = #tpu.dot_dimension_numbers<[1], [0], [0], [1], [0, 0, 1, 1], [], []>, precision = #tpu.contract_precision<fp32>} : vector<16x16xf32>, vector<16x17xf32>, vector<16x17xf32> -> vector<16x17xf32>
    %cst_25 = arith.constant dense<0.000000e+00> : vector<17x17xf32>
    %19 = tpu.matmul %0, %18, %cst_25 {dimension_numbers = #tpu.dot_dimension_numbers<[1], [0], [0], [1], [0, 0, 1, 1], [], []>, precision = #tpu.contract_precision<fp32>} : vector<17x16xf32>, vector<16x17xf32>, vector<17x17xf32> -> vector<17x17xf32>
    %c0_26 = arith.constant 0 : index
    %c2_27 = arith.constant 2 : index
    %c0_28 = arith.constant 0 : index
    %c0_29 = arith.constant 0 : index
    %20 = vector.load %arg4[%c0_26, %c2_27, %c0_28, %c0_29] : memref<1x3x17x17xf32, #tpu.memory_space<vmem>>, vector<1x1x17x17xf32>
    %21 = vector.shape_cast %20 : vector<1x1x17x17xf32> to vector<17x17xf32>
    %22 = vector.shape_cast %19 : vector<17x17xf32> to vector<1x1x17x17xf32>
    tpu.vector_store %arg4[%c0_26, %c2_27, %c0_28, %c0_29], %22 {strides = array<i32>} : memref<1x3x17x17xf32, #tpu.memory_space<vmem>>, vector<1x1x17x17xf32>,
    return
  }
  func.func @transform_0(%arg0: i32) -> (i32, i32, i32, i32) {
    %c0_i32 = arith.constant 0 : i32
    %c0_i32_0 = arith.constant 0 : i32
    %c0_i32_1 = arith.constant 0 : i32
    %c0_i32_2 = arith.constant 0 : i32
    return %arg0, %c0_i32, %c0_i32_0, %c0_i32_1 : i32, i32, i32, i32
  }
  func.func @transform_1(%arg0: i32) -> (i32, i32) {
    %c0_i32 = arith.constant 0 : i32
    %c0_i32_0 = arith.constant 0 : i32
    %c0_i32_1 = arith.constant 0 : i32
    return %c0_i32, %c0_i32_0 : i32, i32
  }
  func.func @transform_2(%arg0: i32) -> (i32, i32) {
    %c0_i32 = arith.constant 0 : i32
    %c0_i32_0 = arith.constant 0 : i32
    %c0_i32_1 = arith.constant 0 : i32
    return %c0_i32, %c0_i32_0 : i32, i32
  }
  func.func @transform_3(%arg0: i32) -> (i32, i32, i32, i32) {
    %c0_i32 = arith.constant 0 : i32
    %c0_i32_0 = arith.constant 0 : i32
    %c0_i32_1 = arith.constant 0 : i32
    %c0_i32_2 = arith.constant 0 : i32
    return %arg0, %c0_i32, %c0_i32_0, %c0_i32_1 : i32, i32, i32, i32
  }
}

</mosaic_0001>

<llo_original>
// kernel: tpu_custom_call.1
$region0: #{tpu_custom_call.1}
  #allocation0 [shape = 'u32[]', space=smem, size = 0x4, offset = 0x4, fixed_abs, tag = 'smem constant byte address 0x4 - core index']
  #allocation1 [shape = 'u32[144,128]{1,0:T(1,128)}', space=vmem, size = 0x12000, scoped, tag = 'internal scratch']
  %s0 = inlined_call_operand.hbm [shape: f32[2,4,16,16], index: 0, kind: input, shape index: {}]
  %s1 = inlined_call_operand.vmem [shape: f32[17,16], index: 1, kind: input, shape index: {}]
  %s2 = inlined_call_operand.vmem [shape: f32[16,17], index: 2, kind: input, shape index: {}]
  %s3 = inlined_call_operand.vmem [shape: f32[2,3,17,17], index: 3, kind: output, shape index: {}]
  %s4 = sld [smem:[#allocation0]]
  $region49: #{tpu_custom_call.1} parent=0
    _
  %s6 = ssub.s32 1, %s4
  %s7 = scalar_select 0, %s6, %s4
  $region1: #{tpu_custom_call.1} parent=0
    #allocation2 [shape = 'u8[49152]{0}', space=vmem, size = 0xc000, scoped, tag = 'input window, operand 0']
    #allocation3 [shape = 's32[2]{0}', space=sflag, size = 0x8, scoped, tag = 'scoped memory for tpu_custom_call.1']
    %8 = vsyncpa [#allocation3], 0
    %s9 = scalar_lea.sflag [#allocation3], 1
    %10 = vsyncpa %s9, 0
    loop: start=0, step=1, limit=4
    $region2: #{tpu_custom_call.1} parent=1 // loop_pre_header
      _
    $region3: #{tpu_custom_call.1} parent=1 // loop_header
      %s12 = sphi 0, %s16
      %p13 = scmp.ge.s32.totalorder %s12, 4
      %s22 = sphi 0, %s24
      %s25 = sphi 0, %s22
      %s26 = sphi 0, %s25
      %s42 = sphi 0, %s26
      %s46 = sphi 0, %s46
      %s48 = sphi 0, %s46
      %s49 = sphi 0, %s48
      %s63 = sphi 0, %s49
      %s67 = sphi 0, %s67
      %s69 = sphi 0, %s67
      %s70 = sphi 0, %s69
      %s84 = sphi 0, %s70
      %s90 = sphi 0, %s92
      %s93 = sphi 0, %s90
      %s94 = sphi 0, %s93
      %s110 = sphi 0, %s94
    $region4: #{tpu_custom_call.1} parent=1 // loop_header_branch
      %15 = sbr.rel (%p13) target = $region8
    $region5: #{tpu_custom_call.1} parent=1 // loop_body
      %s17 = ssub.s32 %s12, 1
      %s18 = ssub.s32 %s12, 2
      %s19 = sadd.s32 %s12, 1
      %s20 = ssub.s32 %s12, %s19
      %p21 = scmp.eq.s32.totalorder %s20, 0
      %s23 = sadd.s32 %s22, 1
      %s24 = scalar_select %p21, %s22, %s23
      %p27 = pneg %p21
      %p28 = scmp.eq.s32.totalorder %s12, 1
      %p29 = por %p27, %p28
      %p30 = scmp.ne.s32.totalorder %s22, %s25
      %p31 = scmp.eq.s32.totalorder %s12, 0
      %p32 = por %p30, %p31
      %p33 = scmp.ne.s32.totalorder %s22, %s25
      %p34 = scmp.eq.s32.totalorder %s17, 1
      %p35 = por %p33, %p34
      %p36 = scmp.ne.s32.totalorder %s25, %s26
      %p37 = scmp.eq.s32.totalorder %s17, 0
      %p38 = por %p36, %p37
      %p39 = scmp.ne.s32.totalorder %s25, %s26
      %p40 = scmp.eq.s32.totalorder %s18, 1
      %p41 = por %p39, %p40
      %p43 = scmp.ne.s32.totalorder %s26, %s42
      %p44 = scmp.eq.s32.totalorder %s18, 0
      %p45 = por %p43, %p44
      %s47 = sadd.s32 %s46, 1
      %p50 = scmp.eq.s32.totalorder %s12, 1
      %p51 = scmp.ne.s32.totalorder %s46, %s48
      %p52 = scmp.eq.s32.totalorder %s12, 0
      %p53 = por %p51, %p52
      %p54 = scmp.ne.s32.totalorder %s46, %s48
      %p55 = scmp.eq.s32.totalorder %s17, 1
      %p56 = por %p54, %p55
      %p57 = scmp.ne.s32.totalorder %s48, %s49
      %p58 = scmp.eq.s32.totalorder %s17, 0
      %p59 = por %p57, %p58
      %p60 = scmp.ne.s32.totalorder %s48, %s49
      %p61 = scmp.eq.s32.totalorder %s18, 1
      %p62 = por %p60, %p61
      %p64 = scmp.ne.s32.totalorder %s49, %s63
      %p65 = scmp.eq.s32.totalorder %s18, 0
      %p66 = por %p64, %p65
      %s68 = sadd.s32 %s67, 1
      %p71 = scmp.eq.s32.totalorder %s12, 1
      %p72 = scmp.ne.s32.totalorder %s67, %s69
      %p73 = scmp.eq.s32.totalorder %s12, 0
      %p74 = por %p72, %p73
      %p75 = scmp.ne.s32.totalorder %s67, %s69
      %p76 = scmp.eq.s32.totalorder %s17, 1
      %p77 = por %p75, %p76
      %p78 = scmp.ne.s32.totalorder %s69, %s70
      %p79 = scmp.eq.s32.totalorder %s17, 0
      %p80 = por %p78, %p79
      %p81 = scmp.ne.s32.totalorder %s69, %s70
      %p82 = scmp.eq.s32.totalorder %s18, 1
      %p83 = por %p81, %p82
      %p85 = scmp.ne.s32.totalorder %s70, %s84
      %p86 = scmp.eq.s32.totalorder %s18, 0
      %p87 = por %p85, %p86
      %s88 = ssub.s32 %s12, %s19
      %p89 = scmp.eq.s32.totalorder %s88, 0
      %s91 = sadd.s32 %s90, 1
      %s92 = scalar_select %p89, %s90, %s91
      %p95 = pneg %p89
      %p96 = scmp.eq.s32.totalorder %s12, 1
      %p97 = por %p95, %p96
      %p98 = scmp.ne.s32.totalorder %s90, %s93
      %p99 = scmp.eq.s32.totalorder %s12, 0
      %p100 = por %p98, %p99
      %p101 = scmp.ne.s32.totalorder %s90, %s93
      %p102 = scmp.eq.s32.totalorder %s17, 1
      %p103 = por %p101, %p102
      %p104 = scmp.ne.s32.totalorder %s93, %s94
      %p105 = scmp.eq.s32.totalorder %s17, 0
      %p106 = por %p104, %p105
      %p107 = scmp.ne.s32.totalorder %s93, %s94
      %p108 = scmp.eq.s32.totalorder %s18, 1
      %p109 = por %p107, %p108
      %p111 = scmp.ne.s32.totalorder %s94, %s110
      %p112 = scmp.eq.s32.totalorder %s18, 0
      %p113 = por %p111, %p112
      %p114 = scmp.le.s32.totalorder 1, %s12
      %p115 = scmp.lt.s32.totalorder %s12, 3
      %p116 = pnand %p114, %p115
      %p117 = pneg %p116
      // Predicated region
      $region9: #{tpu_custom_call.1} parent=5 // pred_check
        _
      $region10: #{tpu_custom_call.1} parent=5 // pred_check_branch
        %119 = sbr.rel (%p116) target = $region12
      $region11: #{tpu_custom_call.1} parent=5 // pred_region
        %s120 = ssub.s32 %s12, 1
        // Predicated region
        $region13: #{tpu_custom_call.1} parent=11 // pred_check
          %p121 = pneg %p59
        $region14: #{tpu_custom_call.1} parent=11 // pred_check_branch
          %123 = sbr.rel (%p121) target = $region16
        $region15: #{tpu_custom_call.1} parent=11 // pred_region
          _
        $region16: #{tpu_custom_call.1} parent=11 // pred_fallthru
          _
        // Predicated region
        $region17: #{tpu_custom_call.1} parent=11 // pred_check
          %p124 = pneg %p80
        $region18: #{tpu_custom_call.1} parent=11 // pred_check_branch
          %126 = sbr.rel (%p124) target = $region20
        $region19: #{tpu_custom_call.1} parent=11 // pred_region
          _
        $region20: #{tpu_custom_call.1} parent=11 // pred_fallthru
          _
      $region12: #{tpu_custom_call.1} parent=5 // pred_fallthru
        _
      %p127 = scmp.lt.s32.totalorder %s12, 2
      // Predicated region
      $region21: #{tpu_custom_call.1} parent=5 // pred_check
        %p128 = pneg %p127
      $region22: #{tpu_custom_call.1} parent=5 // pred_check_branch
        %130 = sbr.rel (%p128) target = $region24
      $region23: #{tpu_custom_call.1} parent=5 // pred_region
        // Predicated region
        $region25: #{tpu_custom_call.1} parent=23 // pred_check
          %p131 = pneg %p32
        $region26: #{tpu_custom_call.1} parent=23 // pred_check_branch
          %133 = sbr.rel (%p131) target = $region28
        $region27: #{tpu_custom_call.1} parent=23 // pred_region
          %s134 = sand.u32 %s22, 1
          %s135 = scalar_lea.sflag [#allocation3], %s134
          %s136 = sand.u32 %s22, 1
          %s137 = smul.addr %s136, 48
          %s138 = scalar_lea.vmem [#allocation2], %s137
          %s140 = ssub.s32 768, 768
          %141 = vsyncadd %s135, %s140
          %s142 = smul.addr %s12, 8
          %s143 = smul.addr %s142, 128
          %s144 = scalar_lea.hbm %s0, %s143
          %s145 = sshll.u32 %s138, 4
          %s146 = int_to_ptr.vmem [resolvable:$true] %s145
          %151 = dma.hbm_to_vmem [thread:$0]  %s144, 768, %s146, %s135, 128, 128, 8
        $region28: #{tpu_custom_call.1} parent=23 // pred_fallthru
          _
      $region24: #{tpu_custom_call.1} parent=5 // pred_fallthru
        _
      %p152 = scmp.le.s32.totalorder 1, %s12
      %p153 = scmp.lt.s32.totalorder %s12, 3
      %p154 = pnand %p152, %p153
      %p155 = pneg %p154
      // Predicated region
      $region29: #{tpu_custom_call.1} parent=5 // pred_check
        _
      $region30: #{tpu_custom_call.1} parent=5 // pred_check_branch
        %157 = sbr.rel (%p154) target = $region32
      $region31: #{tpu_custom_call.1} parent=5 // pred_region
        %s158 = ssub.s32 %s12, 1
        %s159 = sand.u32 %s25, 1
        %s160 = scalar_lea.sflag [#allocation3], %s159
        %s161 = sand.u32 %s25, 1
        %s162 = smul.addr %s161, 48
        %s163 = scalar_lea.vmem [#allocation2], %s162
        // Predicated region
        $region33: #{tpu_custom_call.1} parent=31 // pred_check
          %p164 = pneg %p38
        $region34: #{tpu_custom_call.1} parent=31 // pred_check_branch
          %166 = sbr.rel (%p164) target = $region36
        $region35: #{tpu_custom_call.1} parent=31 // pred_region
          %167 = dma.done %s160, 768
        $region36: #{tpu_custom_call.1} parent=31 // pred_fallthru
          _
        %s168 = sand.u32 %s25, 1
        %s169 = scalar_lea.sflag [#allocation3], %s168
        %s170 = sand.u32 %s25, 1
        %s171 = smul.addr %s170, 48
        %s172 = scalar_lea.vmem [#allocation2], %s171
        %p173 = pneg %p38
        %p174 = pneg %p35
        %p175 = pneg %p59
        %p176 = pneg %p56
        %p177 = pneg %p80
        %p178 = pneg %p77
        %p179 = pneg %p106
        %p180 = pneg %p103
        %p181 = scmp.lt.s32.totalorder %s17, 1
        %s182 = scalar_select %p181, %s17, 1
        %s183 = smul.addr %s182, 9
        %s184 = smul.addr %s183, 8
        %s185 = scalar_lea.vmem %s3, %s184
        %p186 = scmp.lt.s32.totalorder %s17, 1
        %s187 = scalar_select %p186, %s17, 1
        %s188 = smul.addr %s187, 9
        %s189 = smul.addr %s188, 8
        %s190 = scalar_lea.vmem %s3, %s189
        %v191 = vld [vmem:[%s1] sm:$0xff]
        %v192 = vld [vmem:[%s1 + $0x8] sm:$0xff]
        %v193 = vld [vmem:[%s1 + $0x10] sm:$0x1]
        %v194 = vld [vmem:[%s2] sm:$0xff]
        %v195 = vld [vmem:[%s2 + $0x8] sm:$0xff]
        %v196 = vld [vmem:[%s163] sm:$0xff]
        %v197 = vld [vmem:[%s163 + $0x8] sm:$0xff]
        %vm198 = vcmask 130048
        %v200 = vsel %vm198, %v196, 0
        %v203 = vsel %vm198, %v197, 0
        %205 = vmatprep.subr.mxu0 0.0
        %v206 = vand.u32 %v194, 4294901760
        %207 = vmatpush1.msra.mxu0 %v206
        %208 = vmatprep.subr.mxu0 0.0
        %v209 = vand.u32 %v195, 4294901760
        %210 = vmatpush1.msra.mxu0 %v209
        %211 = vmatprep.subr.mxu0 0.0
        %212 = vmatpush1.msra.mxu0 0.0
        %213 = vmatprep.subr.mxu0 0.0
        %214 = vmatpush1.msra.mxu0 0.0
        %215 = vmatprep.subr.mxu0 0.0
        %216 = vmatpush1.msra.mxu0 0.0
        %217 = vmatprep.subr.mxu0 0.0
        %218 = vmatpush1.msra.mxu0 0.0
        %219 = vmatprep.subr.mxu0 0.0
        %220 = vmatpush1.msra.mxu0 0.0
        %221 = vmatprep.subr.mxu0 0.0
        %222 = vmatpush1.msra.mxu0 0.0
        %223 = vmatprep.subr.mxu0 0.0
        %224 = vmatpush1.msra.mxu0 0.0
        %225 = vmatprep.subr.mxu0 0.0
        %226 = vmatpush1.msra.mxu0 0.0
        %227 = vmatprep.subr.mxu0 0.0
        %228 = vmatpush1.msra.mxu0 0.0
        %229 = vmatprep.subr.mxu0 0.0
        %230 = vmatpush1.msra.mxu0 0.0
        %231 = vmatprep.subr.mxu0 0.0
        %232 = vmatpush1.msra.mxu0 0.0
        %233 = vmatprep.subr.mxu0 0.0
        %234 = vmatpush1.msra.mxu0 0.0
        %235 = vmatprep.subr.mxu0 0.0
        %236 = vmatpush1.msra.mxu0 0.0
        %237 = vmatprep.subr.mxu0 0.0
        %238 = vmatpush1.msra.mxu0 0.0
        %239 = vmatprep.subr.mxu0 0.0
        %240 = vmatpush1.msra.mxu0 0.0
        %241 = vmatprep.subr.mxu0 0.0
        %242 = vmatpush1.msra.mxu0 0.0
        %243 = vmatprep.subr.mxu0 0.0
        %244 = vmatpush1.msra.mxu0 0.0
        %245 = vmatprep.subr.mxu0 0.0
        %246 = vmatpush1.msra.mxu0 0.0
        %247 = vmatprep.subr.mxu0 0.0
        %248 = vmatpush1.msra.mxu0 0.0
        %249 = vmatprep.subr.mxu0 0.0
        %250 = vmatpush1.msra.mxu0 0.0
        %251 = vmatprep.subr.mxu0 0.0
        %252 = vmatpush1.msra.mxu0 0.0
        %253 = vmatprep.subr.mxu0 0.0
        %254 = vmatpush1.msra.mxu0 0.0
        %255 = vmatprep.subr.mxu0 0.0
        %256 = vmatpush1.msra.mxu0 0.0
        %257 = vmatprep.subr.mxu0 0.0
        %258 = vmatpush1.msra.mxu0 0.0
        %259 = vmatprep.subr.mxu0 0.0
        %260 = vmatpush1.msra.mxu0 0.0
        %261 = vmatprep.subr.mxu0 0.0
        %262 = vmatpush1.msra.mxu0 0.0
        %263 = vmatprep.subr.mxu0 0.0
        %264 = vmatpush1.msra.mxu0 0.0
        %265 = vmatprep.subr.mxu0 0.0
        %266 = vmatpush1.msra.mxu0 0.0
        %267 = vmatprep.subr.mxu0 0.0
        %268 = vmatpush1.msra.mxu0 0.0
        %269 = vmatprep.subr.mxu0 0.0
        %270 = vmatpush1.msra.mxu0 0.0
        %271 = vmatprep.mubr.f32.mxu0 0.0
        %v272 = vand.u32 %v200, 4294901760
        %v273 = vsub.f32 %v200, %v272
        %v274 = vand.u32 %v273, 4294901760
        %v275 = vsub.f32 %v273, %v274
        %v276 = vand.u32 %v275, 4294901760
        %277 = vmatmul.mubr.f32.gmra.mrb[0].mxu0 %v276
        %v278 = vpop.f32.mrb[0].mxu0
        %v279 = vadd.f32 0.0, %v278
        %v280 = vpop.f32.mrb[0].mxu0
        %281 = vmatprep.mubr.f32.mxu0 0.0
        %v282 = vand.u32 %v203, 4294901760
        %v283 = vsub.f32 %v203, %v282
        %v284 = vand.u32 %v283, 4294901760
        %v285 = vsub.f32 %v283, %v284
        %v286 = vand.u32 %v285, 4294901760
        %287 = vmatmul.mubr.f32.gmra.mrb[0].mxu0 %v286
        %v288 = vpop.f32.mrb[0].mxu0
        %v289 = vadd.f32 0.0, %v288
        %v290 = vpop.f32.mrb[0].mxu0
        %291 = vdwg.mxu0
        %292 = vmatprep.subr.mxu0 0.0
        %v293 = vand.u32 %v194, 4294901760
        %v294 = vsub.f32 %v194, %v293
        %v295 = vand.u32 %v294, 4294901760
        %v296 = vsub.f32 %v294, %v295
        %v297 = vand.u32 %v296, 4294901760
        %298 = vmatpush1.msra.mxu0 %v297
        %299 = vmatprep.subr.mxu0 0.0
        %v300 = vand.u32 %v195, 4294901760
        %v301 = vsub.f32 %v195, %v300
        %v302 = vand.u32 %v301, 4294901760
        %v303 = vsub.f32 %v301, %v302
        %v304 = vand.u32 %v303, 4294901760
        %305 = vmatpush1.msra.mxu0 %v304
        %306 = vmatprep.subr.mxu0 0.0
        %307 = vmatpush1.msra.mxu0 0.0
        %308 = vmatprep.subr.mxu0 0.0
        %309 = vmatpush1.msra.mxu0 0.0
        %310 = vmatprep.subr.mxu0 0.0
        %311 = vmatpush1.msra.mxu0 0.0
        %312 = vmatprep.subr.mxu0 0.0
        %313 = vmatpush1.msra.mxu0 0.0
        %314 = vmatprep.subr.mxu0 0.0
        %315 = vmatpush1.msra.mxu0 0.0
        %316 = vmatprep.subr.mxu0 0.0
        %317 = vmatpush1.msra.mxu0 0.0
        %318 = vmatprep.subr.mxu0 0.0
        %319 = vmatpush1.msra.mxu0 0.0
        %320 = vmatprep.subr.mxu0 0.0
        %321 = vmatpush1.msra.mxu0 0.0
        %322 = vmatprep.subr.mxu0 0.0
        %323 = vmatpush1.msra.mxu0 0.0
        %324 = vmatprep.subr.mxu0 0.0
        %325 = vmatpush1.msra.mxu0 0.0
        %326 = vmatprep.subr.mxu0 0.0
        %327 = vmatpush1.msra.mxu0 0.0
        %328 = vmatprep.subr.mxu0 0.0
        %329 = vmatpush1.msra.mxu0 0.0
        %330 = vmatprep.subr.mxu0 0.0
        %331 = vmatpush1.msra.mxu0 0.0
        %332 = vmatprep.subr.mxu0 0.0
        %333 = vmatpush1.msra.mxu0 0.0
        %334 = vmatprep.subr.mxu0 0.0
        %335 = vmatpush1.msra.mxu0 0.0
        %336 = vmatprep.subr.mxu0 0.0
        %337 = vmatpush1.msra.mxu0 0.0
        %338 = vmatprep.subr.mxu0 0.0
        %339 = vmatpush1.msra.mxu0 0.0
        %340 = vmatprep.subr.mxu0 0.0
        %341 = vmatpush1.msra.mxu0 0.0
        %342 = vmatprep.subr.mxu0 0.0
        %343 = vmatpush1.msra.mxu0 0.0
        %344 = vmatprep.subr.mxu0 0.0
        %345 = vmatpush1.msra.mxu0 0.0
        %346 = vmatprep.subr.mxu0 0.0
        %347 = vmatpush1.msra.mxu0 0.0
        %348 = vmatprep.subr.mxu0 0.0
        %349 = vmatpush1.msra.mxu0 0.0
        %350 = vmatprep.subr.mxu0 0.0
        %351 = vmatpush1.msra.mxu0 0.0
        %352 = vmatprep.subr.mxu0 0.0
        %353 = vmatpush1.msra.mxu0 0.0
        %354 = vmatprep.subr.mxu0 0.0
        %355 = vmatpush1.msra.mxu0 0.0
        %356 = vmatprep.subr.mxu0 0.0
        %357 = vmatpush1.msra.mxu0 0.0
        %358 = vmatprep.subr.mxu0 0.0
        %359 = vmatpush1.msra.mxu0 0.0
        %360 = vmatprep.subr.mxu0 0.0
        %361 = vmatpush1.msra.mxu0 0.0
        %362 = vmatprep.subr.mxu0 0.0
        %363 = vmatpush1.msra.mxu0 0.0
        %364 = vmatprep.subr.mxu0 0.0
        %365 = vmatpush1.msra.mxu0 0.0
        %366 = vmatprep.mubr.f32.mxu0 0.0
        %v367 = vand.u32 %v200, 4294901760
        %368 = vmatmul.mubr.f32.gmra.mrb[0].mxu0 %v367
        %v369 = vpop.f32.mrb[0].mxu0
        %v370 = vadd.f32 %v279, %v369
        %v371 = vpop.f32.mrb[0].mxu0
        %372 = vmatprep.mubr.f32.mxu0 0.0
        %v373 = vand.u32 %v203, 4294901760
        %374 = vmatmul.mubr.f32.gmra.mrb[0].mxu0 %v373
        %v375 = vpop.f32.mrb[0].mxu0
        %v376 = vadd.f32 %v289, %v375
        %v377 = vpop.f32.mrb[0].mxu0
        %378 = vdwg.mxu0
        %379 = vmatprep.subr.mxu0 0.0
        %v380 = vand.u32 %v194, 4294901760
        %v381 = vsub.f32 %v194, %v380
        %382 = vmatpush1.msra.mxu0 %v381
        %383 = vmatprep.subr.mxu0 0.0
        %v384 = vand.u32 %v195, 4294901760
        %v385 = vsub.f32 %v195, %v384
        %386 = vmatpush1.msra.mxu0 %v385
        %387 = vmatprep.subr.mxu0 0.0
        %388 = vmatpush1.msra.mxu0 0.0
        %389 = vmatprep.subr.mxu0 0.0
        %390 = vmatpush1.msra.mxu0 0.0
        %391 = vmatprep.subr.mxu0 0.0
        %392 = vmatpush1.msra.mxu0 0.0
        %393 = vmatprep.subr.mxu0 0.0
        %394 = vmatpush1.msra.mxu0 0.0
        %395 = vmatprep.subr.mxu0 0.0
        %396 = vmatpush1.msra.mxu0 0.0
        %397 = vmatprep.subr.mxu0 0.0
        %398 = vmatpush1.msra.mxu0 0.0
        %399 = vmatprep.subr.mxu0 0.0
        %400 = vmatpush1.msra.mxu0 0.0
        %401 = vmatprep.subr.mxu0 0.0
        %402 = vmatpush1.msra.mxu0 0.0
        %403 = vmatprep.subr.mxu0 0.0
        %404 = vmatpush1.msra.mxu0 0.0
        %405 = vmatprep.subr.mxu0 0.0
        %406 = vmatpush1.msra.mxu0 0.0
        %407 = vmatprep.subr.mxu0 0.0
        %408 = vmatpush1.msra.mxu0 0.0
        %409 = vmatprep.subr.mxu0 0.0
        %410 = vmatpush1.msra.mxu0 0.0
        %411 = vmatprep.subr.mxu0 0.0
        %412 = vmatpush1.msra.mxu0 0.0
        %413 = vmatprep.subr.mxu0 0.0
        %414 = vmatpush1.msra.mxu0 0.0
        %415 = vmatprep.subr.mxu0 0.0
        %416 = vmatpush1.msra.mxu0 0.0
        %417 = vmatprep.subr.mxu0 0.0
        %418 = vmatpush1.msra.mxu0 0.0
        %419 = vmatprep.subr.mxu0 0.0
        %420 = vmatpush1.msra.mxu0 0.0
        %421 = vmatprep.subr.mxu0 0.0
        %422 = vmatpush1.msra.mxu0 0.0
        %423 = vmatprep.subr.mxu0 0.0
        %424 = vmatpush1.msra.mxu0 0.0
        %425 = vmatprep.subr.mxu0 0.0
        %426 = vmatpush1.msra.mxu0 0.0
        %427 = vmatprep.subr.mxu0 0.0
        %428 = vmatpush1.msra.mxu0 0.0
        %429 = vmatprep.subr.mxu0 0.0
        %430 = vmatpush1.msra.mxu0 0.0
        %431 = vmatprep.subr.mxu0 0.0
        %432 = vmatpush1.msra.mxu0 0.0
        %433 = vmatprep.subr.mxu0 0.0
        %434 = vmatpush1.msra.mxu0 0.0
        %435 = vmatprep.subr.mxu0 0.0
        %436 = vmatpush1.msra.mxu0 0.0
        %437 = vmatprep.subr.mxu0 0.0
        %438 = vmatpush1.msra.mxu0 0.0
        %439 = vmatprep.subr.mxu0 0.0
        %440 = vmatpush1.msra.mxu0 0.0
        %441 = vmatprep.subr.mxu0 0.0
        %442 = vmatpush1.msra.mxu0 0.0
        %443 = vmatprep.subr.mxu0 0.0
        %444 = vmatpush1.msra.mxu0 0.0
        %445 = vmatprep.subr.mxu0 0.0
        %446 = vmatpush1.msra.mxu0 0.0
        %447 = vmatprep.mubr.f32.mxu0 0.0
        %v448 = vand.u32 %v200, 4294901760
        %v449 = vsub.f32 %v200, %v448
        %450 = vmatmul.mubr.f32.gmra.mrb[0].mxu0 %v449
        %v451 = vpop.f32.mrb[0].mxu0
        %v452 = vadd.f32 %v370, %v451
        %v453 = vpop.f32.mrb[0].mxu0
        %454 = vmatprep.mubr.f32.mxu0 0.0
        %v455 = vand.u32 %v203, 4294901760
        %v456 = vsub.f32 %v203, %v455
        %457 = vmatmul.mubr.f32.gmra.mrb[0].mxu0 %v456
        %v458 = vpop.f32.mrb[0].mxu0
        %v459 = vadd.f32 %v376, %v458
        %v460 = vpop.f32.mrb[0].mxu0
        %461 = vdwg.mxu0
        %462 = vmatprep.subr.mxu0 0.0
        %v463 = vand.u32 %v194, 4294901760
        %464 = vmatpush1.msra.mxu0 %v463
        %465 = vmatprep.subr.mxu0 0.0
        %v466 = vand.u32 %v195, 4294901760
        %467 = vmatpush1.msra.mxu0 %v466
        %468 = vmatprep.subr.mxu0 0.0
        %469 = vmatpush1.msra.mxu0 0.0
        %470 = vmatprep.subr.mxu0 0.0
        %471 = vmatpush1.msra.mxu0 0.0
        %472 = vmatprep.subr.mxu0 0.0
        %473 = vmatpush1.msra.mxu0 0.0
        %474 = vmatprep.subr.mxu0 0.0
        %475 = vmatpush1.msra.mxu0 0.0
        %476 = vmatprep.subr.mxu0 0.0
        %477 = vmatpush1.msra.mxu0 0.0
        %478 = vmatprep.subr.mxu0 0.0
        %479 = vmatpush1.msra.mxu0 0.0
        %480 = vmatprep.subr.mxu0 0.0
        %481 = vmatpush1.msra.mxu0 0.0
        %482 = vmatprep.subr.mxu0 0.0
        %483 = vmatpush1.msra.mxu0 0.0
        %484 = vmatprep.subr.mxu0 0.0
        %485 = vmatpush1.msra.mxu0 0.0
        %486 = vmatprep.subr.mxu0 0.0
        %487 = vmatpush1.msra.mxu0 0.0
        %488 = vmatprep.subr.mxu0 0.0
        %489 = vmatpush1.msra.mxu0 0.0
        %490 = vmatprep.subr.mxu0 0.0
        %491 = vmatpush1.msra.mxu0 0.0
        %492 = vmatprep.subr.mxu0 0.0
        %493 = vmatpush1.msra.mxu0 0.0
        %494 = vmatprep.subr.mxu0 0.0
        %495 = vmatpush1.msra.mxu0 0.0
        %496 = vmatprep.subr.mxu0 0.0
        %497 = vmatpush1.msra.mxu0 0.0
        %498 = vmatprep.subr.mxu0 0.0
        %499 = vmatpush1.msra.mxu0 0.0
        %500 = vmatprep.subr.mxu0 0.0
        %501 = vmatpush1.msra.mxu0 0.0
        %502 = vmatprep.subr.mxu0 0.0
        %503 = vmatpush1.msra.mxu0 0.0
        %504 = vmatprep.subr.mxu0 0.0
        %505 = vmatpush1.msra.mxu0 0.0
        %506 = vmatprep.subr.mxu0 0.0
        %507 = vmatpush1.msra.mxu0 0.0
        %508 = vmatprep.subr.mxu0 0.0
        %509 = vmatpush1.msra.mxu0 0.0
        %510 = vmatprep.subr.mxu0 0.0
        %511 = vmatpush1.msra.mxu0 0.0
        %512 = vmatprep.subr.mxu0 0.0
        %513 = vmatpush1.msra.mxu0 0.0
        %514 = vmatprep.subr.mxu0 0.0
        %515 = vmatpush1.msra.mxu0 0.0
        %516 = vmatprep.subr.mxu0 0.0
        %517 = vmatpush1.msra.mxu0 0.0
        %518 = vmatprep.subr.mxu0 0.0
        %519 = vmatpush1.msra.mxu0 0.0
        %520 = vmatprep.subr.mxu0 0.0
        %521 = vmatpush1.msra.mxu0 0.0
        %522 = vmatprep.subr.mxu0 0.0
        %523 = vmatpush1.msra.mxu0 0.0
        %524 = vmatprep.subr.mxu0 0.0
        %525 = vmatpush1.msra.mxu0 0.0
        %526 = vmatprep.subr.mxu0 0.0
        %527 = vmatpush1.msra.mxu0 0.0
        %528 = vmatprep.mubr.f32.mxu0 0.0
        %v529 = vand.u32 %v200, 4294901760
        %v530 = vsub.f32 %v200, %v529
        %v531 = vand.u32 %v530, 4294901760
        %532 = vmatmul.mubr.f32.gmra.mrb[0].mxu0 %v531
        %v533 = vpop.f32.mrb[0].mxu0
        %v534 = vadd.f32 %v452, %v533
        %v535 = vpop.f32.mrb[0].mxu0
        %536 = vmatprep.mubr.f32.mxu0 0.0
        %v537 = vand.u32 %v203, 4294901760
        %v538 = vsub.f32 %v203, %v537
        %v539 = vand.u32 %v538, 4294901760
        %540 = vmatmul.mubr.f32.gmra.mrb[0].mxu0 %v539
        %v541 = vpop.f32.mrb[0].mxu0
        %v542 = vadd.f32 %v459, %v541
        %v543 = vpop.f32.mrb[0].mxu0
        %544 = vdwg.mxu0
        %545 = vmatprep.subr.mxu0 0.0
        %v546 = vand.u32 %v194, 4294901760
        %v547 = vsub.f32 %v194, %v546
        %v548 = vand.u32 %v547, 4294901760
        %549 = vmatpush1.msra.mxu0 %v548
        %550 = vmatprep.subr.mxu0 0.0
        %v551 = vand.u32 %v195, 4294901760
        %v552 = vsub.f32 %v195, %v551
        %v553 = vand.u32 %v552, 4294901760
        %554 = vmatpush1.msra.mxu0 %v553
        %555 = vmatprep.subr.mxu0 0.0
        %556 = vmatpush1.msra.mxu0 0.0
        %557 = vmatprep.subr.mxu0 0.0
        %558 = vmatpush1.msra.mxu0 0.0
        %559 = vmatprep.subr.mxu0 0.0
        %560 = vmatpush1.msra.mxu0 0.0
        %561 = vmatprep.subr.mxu0 0.0
        %562 = vmatpush1.msra.mxu0 0.0
        %563 = vmatprep.subr.mxu0 0.0
        %564 = vmatpush1.msra.mxu0 0.0
        %565 = vmatprep.subr.mxu0 0.0
        %566 = vmatpush1.msra.mxu0 0.0
        %567 = vmatprep.subr.mxu0 0.0
        %568 = vmatpush1.msra.mxu0 0.0
        %569 = vmatprep.subr.mxu0 0.0
        %570 = vmatpush1.msra.mxu0 0.0
        %571 = vmatprep.subr.mxu0 0.0
        %572 = vmatpush1.msra.mxu0 0.0
        %573 = vmatprep.subr.mxu0 0.0
        %574 = vmatpush1.msra.mxu0 0.0
        %575 = vmatprep.subr.mxu0 0.0
        %576 = vmatpush1.msra.mxu0 0.0
        %577 = vmatprep.subr.mxu0 0.0
        %578 = vmatpush1.msra.mxu0 0.0
        %579 = vmatprep.subr.mxu0 0.0
        %580 = vmatpush1.msra.mxu0 0.0
        %581 = vmatprep.subr.mxu0 0.0
        %582 = vmatpush1.msra.mxu0 0.0
        %583 = vmatprep.subr.mxu0 0.0
        %584 = vmatpush1.msra.mxu0 0.0
        %585 = vmatprep.subr.mxu0 0.0
        %586 = vmatpush1.msra.mxu0 0.0
        %587 = vmatprep.subr.mxu0 0.0
        %588 = vmatpush1.msra.mxu0 0.0
        %589 = vmatprep.subr.mxu0 0.0
        %590 = vmatpush1.msra.mxu0 0.0
        %591 = vmatprep.subr.mxu0 0.0
        %592 = vmatpush1.msra.mxu0 0.0
        %593 = vmatprep.subr.mxu0 0.0
        %594 = vmatpush1.msra.mxu0 0.0
        %595 = vmatprep.subr.mxu0 0.0
        %596 = vmatpush1.msra.mxu0 0.0
        %597 = vmatprep.subr.mxu0 0.0
        %598 = vmatpush1.msra.mxu0 0.0
        %599 = vmatprep.subr.mxu0 0.0
        %600 = vmatpush1.msra.mxu0 0.0
        %601 = vmatprep.subr.mxu0 0.0
        %602 = vmatpush1.msra.mxu0 0.0
        %603 = vmatprep.subr.mxu0 0.0
        %604 = vmatpush1.msra.mxu0 0.0
        %605 = vmatprep.subr.mxu0 0.0
        %606 = vmatpush1.msra.mxu0 0.0
        %607 = vmatprep.subr.mxu0 0.0
        %608 = vmatpush1.msra.mxu0 0.0
        %609 = vmatprep.subr.mxu0 0.0
        %610 = vmatpush1.msra.mxu0 0.0
        %611 = vmatprep.subr.mxu0 0.0
        %612 = vmatpush1.msra.mxu0 0.0
        %613 = vmatprep.subr.mxu0 0.0
        %614 = vmatpush1.msra.mxu0 0.0
        %615 = vmatprep.mubr.f32.mxu0 0.0
        %v616 = vand.u32 %v200, 4294901760
        %617 = vmatmul.mubr.f32.gmra.mrb[0].mxu0 %v616
        %v618 = vpop.f32.mrb[0].mxu0
        %v619 = vadd.f32 %v534, %v618
        %v620 = vpop.f32.mrb[0].mxu0
        %621 = vmatprep.mubr.f32.mxu0 0.0
        %v622 = vand.u32 %v203, 4294901760
        %623 = vmatmul.mubr.f32.gmra.mrb[0].mxu0 %v622
        %v624 = vpop.f32.mrb[0].mxu0
        %v625 = vadd.f32 %v542, %v624
        %v626 = vpop.f32.mrb[0].mxu0
        %627 = vdwg.mxu0
        %628 = vmatprep.subr.mxu0 0.0
        %v629 = vand.u32 %v194, 4294901760
        %630 = vmatpush1.msra.mxu0 %v629
        %631 = vmatprep.subr.mxu0 0.0
        %v632 = vand.u32 %v195, 4294901760
        %633 = vmatpush1.msra.mxu0 %v632
        %634 = vmatprep.subr.mxu0 0.0
        %635 = vmatpush1.msra.mxu0 0.0
        %636 = vmatprep.subr.mxu0 0.0
        %637 = vmatpush1.msra.mxu0 0.0
        %638 = vmatprep.subr.mxu0 0.0
        %639 = vmatpush1.msra.mxu0 0.0
        %640 = vmatprep.subr.mxu0 0.0
        %641 = vmatpush1.msra.mxu0 0.0
        %642 = vmatprep.subr.mxu0 0.0
        %643 = vmatpush1.msra.mxu0 0.0
        %644 = vmatprep.subr.mxu0 0.0
        %645 = vmatpush1.msra.mxu0 0.0
        %646 = vmatprep.subr.mxu0 0.0
        %647 = vmatpush1.msra.mxu0 0.0
        %648 = vmatprep.subr.mxu0 0.0
        %649 = vmatpush1.msra.mxu0 0.0
        %650 = vmatprep.subr.mxu0 0.0
        %651 = vmatpush1.msra.mxu0 0.0
        %652 = vmatprep.subr.mxu0 0.0
        %653 = vmatpush1.msra.mxu0 0.0
        %654 = vmatprep.subr.mxu0 0.0
        %655 = vmatpush1.msra.mxu0 0.0
        %656 = vmatprep.subr.mxu0 0.0
        %657 = vmatpush1.msra.mxu0 0.0
        %658 = vmatprep.subr.mxu0 0.0
        %659 = vmatpush1.msra.mxu0 0.0
        %660 = vmatprep.subr.mxu0 0.0
        %661 = vmatpush1.msra.mxu0 0.0
        %662 = vmatprep.subr.mxu0 0.0
        %663 = vmatpush1.msra.mxu0 0.0
        %664 = vmatprep.subr.mxu0 0.0
        %665 = vmatpush1.msra.mxu0 0.0
        %666 = vmatprep.subr.mxu0 0.0
        %667 = vmatpush1.msra.mxu0 0.0
        %668 = vmatprep.subr.mxu0 0.0
        %669 = vmatpush1.msra.mxu0 0.0
        %670 = vmatprep.subr.mxu0 0.0
        %671 = vmatpush1.msra.mxu0 0.0
        %672 = vmatprep.subr.mxu0 0.0
        %673 = vmatpush1.msra.mxu0 0.0
        %674 = vmatprep.subr.mxu0 0.0
        %675 = vmatpush1.msra.mxu0 0.0
        %676 = vmatprep.subr.mxu0 0.0
        %677 = vmatpush1.msra.mxu0 0.0
        %678 = vmatprep.subr.mxu0 0.0
        %679 = vmatpush1.msra.mxu0 0.0
        %680 = vmatprep.subr.mxu0 0.0
        %681 = vmatpush1.msra.mxu0 0.0
        %682 = vmatprep.subr.mxu0 0.0
        %683 = vmatpush1.msra.mxu0 0.0
        %684 = vmatprep.subr.mxu0 0.0
        %685 = vmatpush1.msra.mxu0 0.0
        %686 = vmatprep.subr.mxu0 0.0
        %687 = vmatpush1.msra.mxu0 0.0
        %688 = vmatprep.subr.mxu0 0.0
        %689 = vmatpush1.msra.mxu0 0.0
        %690 = vmatprep.subr.mxu0 0.0
        %691 = vmatpush1.msra.mxu0 0.0
        %692 = vmatprep.subr.mxu0 0.0
        %693 = vmatpush1.msra.mxu0 0.0
        %694 = vmatprep.mubr.f32.mxu0 0.0
        %v695 = vand.u32 %v200, 4294901760
        %696 = vmatmul.mubr.f32.gmra.mrb[0].mxu0 %v695
        %v697 = vpop.f32.mrb[0].mxu0
        %v698 = vadd.f32 %v619, %v697
        %v699 = vpop.f32.mrb[0].mxu0
        %700 = vmatprep.mubr.f32.mxu0 0.0
        %v701 = vand.u32 %v203, 4294901760
        %702 = vmatmul.mubr.f32.gmra.mrb[0].mxu0 %v701
        %v703 = vpop.f32.mrb[0].mxu0
        %v704 = vadd.f32 %v625, %v703
        %v705 = vpop.f32.mrb[0].mxu0
        %706 = vdwg.mxu0
        %v708 = vsel %vm198, %v191, 0
        %v711 = vsel %vm198, %v192, 0
        %v714 = vsel %vm198, %v193, 0
        %716 = vmatprep.subr.mxu0 0.0
        %v717 = vand.u32 %v698, 4294901760
        %718 = vmatpush1.msra.mxu0 %v717
        %719 = vmatprep.subr.mxu0 0.0
        %v720 = vand.u32 %v704, 4294901760
        %721 = vmatpush1.msra.mxu0 %v720
        %722 = vmatprep.subr.mxu0 0.0
        %723 = vmatpush1.msra.mxu0 0.0
        %724 = vmatprep.subr.mxu0 0.0
        %725 = vmatpush1.msra.mxu0 0.0
        %726 = vmatprep.subr.mxu0 0.0
        %727 = vmatpush1.msra.mxu0 0.0
        %728 = vmatprep.subr.mxu0 0.0
        %729 = vmatpush1.msra.mxu0 0.0
        %730 = vmatprep.subr.mxu0 0.0
        %731 = vmatpush1.msra.mxu0 0.0
        %732 = vmatprep.subr.mxu0 0.0
        %733 = vmatpush1.msra.mxu0 0.0
        %734 = vmatprep.subr.mxu0 0.0
        %735 = vmatpush1.msra.mxu0 0.0
        %736 = vmatprep.subr.mxu0 0.0
        %737 = vmatpush1.msra.mxu0 0.0
        %738 = vmatprep.subr.mxu0 0.0
        %739 = vmatpush1.msra.mxu0 0.0
        %740 = vmatprep.subr.mxu0 0.0
        %741 = vmatpush1.msra.mxu0 0.0
        %742 = vmatprep.subr.mxu0 0.0
        %743 = vmatpush1.msra.mxu0 0.0
        %744 = vmatprep.subr.mxu0 0.0
        %745 = vmatpush1.msra.mxu0 0.0
        %746 = vmatprep.subr.mxu0 0.0
        %747 = vmatpush1.msra.mxu0 0.0
        %748 = vmatprep.subr.mxu0 0.0
        %749 = vmatpush1.msra.mxu0 0.0
        %750 = vmatprep.subr.mxu0 0.0
        %751 = vmatpush1.msra.mxu0 0.0
        %752 = vmatprep.subr.mxu0 0.0
        %753 = vmatpush1.msra.mxu0 0.0
        %754 = vmatprep.subr.mxu0 0.0
        %755 = vmatpush1.msra.mxu0 0.0
        %756 = vmatprep.subr.mxu0 0.0
        %757 = vmatpush1.msra.mxu0 0.0
        %758 = vmatprep.subr.mxu0 0.0
        %759 = vmatpush1.msra.mxu0 0.0
        %760 = vmatprep.subr.mxu0 0.0
        %761 = vmatpush1.msra.mxu0 0.0
        %762 = vmatprep.subr.mxu0 0.0
        %763 = vmatpush1.msra.mxu0 0.0
        %764 = vmatprep.subr.mxu0 0.0
        %765 = vmatpush1.msra.mxu0 0.0
        %766 = vmatprep.subr.mxu0 0.0
        %767 = vmatpush1.msra.mxu0 0.0
        %768 = vmatprep.subr.mxu0 0.0
        %769 = vmatpush1.msra.mxu0 0.0
        %770 = vmatprep.subr.mxu0 0.0
        %771 = vmatpush1.msra.mxu0 0.0
        %772 = vmatprep.subr.mxu0 0.0
        %773 = vmatpush1.msra.mxu0 0.0
        %774 = vmatprep.subr.mxu0 0.0
        %775 = vmatpush1.msra.mxu0 0.0
        %776 = vmatprep.subr.mxu0 0.0
        %777 = vmatpush1.msra.mxu0 0.0
        %778 = vmatprep.subr.mxu0 0.0
        %779 = vmatpush1.msra.mxu0 0.0
        %780 = vmatprep.subr.mxu0 0.0
        %781 = vmatpush1.msra.mxu0 0.0
        %782 = vmatprep.mubr.f32.mxu0 0.0
        %v783 = vand.u32 %v708, 4294901760
        %v784 = vsub.f32 %v708, %v783
        %v785 = vand.u32 %v784, 4294901760
        %v786 = vsub.f32 %v784, %v785
        %v787 = vand.u32 %v786, 4294901760
        %788 = vmatmul.mubr.f32.gmra.mrb[0].mxu0 %v787
        %v789 = vpop.f32.mrb[0].mxu0
        %v790 = vadd.f32 0.0, %v789
        %v791 = vpop.f32.mrb[0].mxu0
        %792 = vmatprep.mubr.f32.mxu0 0.0
        %v793 = vand.u32 %v711, 4294901760
        %v794 = vsub.f32 %v711, %v793
        %v795 = vand.u32 %v794, 4294901760
        %v796 = vsub.f32 %v794, %v795
        %v797 = vand.u32 %v796, 4294901760
        %798 = vmatmul.mubr.f32.gmra.mrb[0].mxu0 %v797
        %v799 = vpop.f32.mrb[0].mxu0
        %v800 = vadd.f32 0.0, %v799
        %v801 = vpop.f32.mrb[0].mxu0
        %802 = vmatprep.mubr.f32.mxu0 0.0
        %v803 = vand.u32 %v714, 4294901760
        %v804 = vsub.f32 %v714, %v803
        %v805 = vand.u32 %v804, 4294901760
        %v806 = vsub.f32 %v804, %v805
        %v807 = vand.u32 %v806, 4294901760
        %808 = vmatmul.mubr.f32.gmra.mrb[0].mxu0 %v807
        %v809 = vpop.f32.mrb[0].mxu0
        %v810 = vadd.f32 0.0, %v809
        %v811 = vpop.f32.mrb[0].mxu0
        %812 = vdwg.mxu0
        %813 = vmatprep.subr.mxu0 0.0
        %v814 = vand.u32 %v698, 4294901760
        %v815 = vsub.f32 %v698, %v814
        %v816 = vand.u32 %v815, 4294901760
        %v817 = vsub.f32 %v815, %v816
        %v818 = vand.u32 %v817, 4294901760
        %819 = vmatpush1.msra.mxu0 %v818
        %820 = vmatprep.subr.mxu0 0.0
        %v821 = vand.u32 %v704, 4294901760
        %v822 = vsub.f32 %v704, %v821
        %v823 = vand.u32 %v822, 4294901760
        %v824 = vsub.f32 %v822, %v823
        %v825 = vand.u32 %v824, 4294901760
        %826 = vmatpush1.msra.mxu0 %v825
        %827 = vmatprep.subr.mxu0 0.0
        %828 = vmatpush1.msra.mxu0 0.0
        %829 = vmatprep.subr.mxu0 0.0
        %830 = vmatpush1.msra.mxu0 0.0
        %831 = vmatprep.subr.mxu0 0.0
        %832 = vmatpush1.msra.mxu0 0.0
        %833 = vmatprep.subr.mxu0 0.0
        %834 = vmatpush1.msra.mxu0 0.0
        %835 = vmatprep.subr.mxu0 0.0
        %836 = vmatpush1.msra.mxu0 0.0
        %837 = vmatprep.subr.mxu0 0.0
        %838 = vmatpush1.msra.mxu0 0.0
        %839 = vmatprep.subr.mxu0 0.0
        %840 = vmatpush1.msra.mxu0 0.0
        %841 = vmatprep.subr.mxu0 0.0
        %842 = vmatpush1.msra.mxu0 0.0
        %843 = vmatprep.subr.mxu0 0.0
        %844 = vmatpush1.msra.mxu0 0.0
        %845 = vmatprep.subr.mxu0 0.0
        %846 = vmatpush1.msra.mxu0 0.0
        %847 = vmatprep.subr.mxu0 0.0
        %848 = vmatpush1.msra.mxu0 0.0
        %849 = vmatprep.subr.mxu0 0.0
        %850 = vmatpush1.msra.mxu0 0.0
        %851 = vmatprep.subr.mxu0 0.0
        %852 = vmatpush1.msra.mxu0 0.0
        %853 = vmatprep.subr.mxu0 0.0
        %854 = vmatpush1.msra.mxu0 0.0
        %855 = vmatprep.subr.mxu0 0.0
        %856 = vmatpush1.msra.mxu0 0.0
        %857 = vmatprep.subr.mxu0 0.0
        %858 = vmatpush1.msra.mxu0 0.0
        %859 = vmatprep.subr.mxu0 0.0
        %860 = vmatpush1.msra.mxu0 0.0
        %861 = vmatprep.subr.mxu0 0.0
        %862 = vmatpush1.msra.mxu0 0.0
        %863 = vmatprep.subr.mxu0 0.0
        %864 = vmatpush1.msra.mxu0 0.0
        %865 = vmatprep.subr.mxu0 0.0
        %866 = vmatpush1.msra.mxu0 0.0
        %867 = vmatprep.subr.mxu0 0.0
        %868 = vmatpush1.msra.mxu0 0.0
        %869 = vmatprep.subr.mxu0 0.0
        %870 = vmatpush1.msra.mxu0 0.0
        %871 = vmatprep.subr.mxu0 0.0
        %872 = vmatpush1.msra.mxu0 0.0
        %873 = vmatprep.subr.mxu0 0.0
        %874 = vmatpush1.msra.mxu0 0.0
        %875 = vmatprep.subr.mxu0 0.0
        %876 = vmatpush1.msra.mxu0 0.0
        %877 = vmatprep.subr.mxu0 0.0
        %878 = vmatpush1.msra.mxu0 0.0
        %879 = vmatprep.subr.mxu0 0.0
        %880 = vmatpush1.msra.mxu0 0.0
        %881 = vmatprep.subr.mxu0 0.0
        %882 = vmatpush1.msra.mxu0 0.0
        %883 = vmatprep.subr.mxu0 0.0
        %884 = vmatpush1.msra.mxu0 0.0
        %885 = vmatprep.subr.mxu0 0.0
        %886 = vmatpush1.msra.mxu0 0.0
        %887 = vmatprep.mubr.f32.mxu0 0.0
        %v888 = vand.u32 %v708, 4294901760
        %889 = vmatmul.mubr.f32.gmra.mrb[0].mxu0 %v888
        %v890 = vpop.f32.mrb[0].mxu0
        %v891 = vadd.f32 %v790, %v890
        %v892 = vpop.f32.mrb[0].mxu0
        %893 = vmatprep.mubr.f32.mxu0 0.0
        %v894 = vand.u32 %v711, 4294901760
        %895 = vmatmul.mubr.f32.gmra.mrb[0].mxu0 %v894
        %v896 = vpop.f32.mrb[0].mxu0
        %v897 = vadd.f32 %v800, %v896
        %v898 = vpop.f32.mrb[0].mxu0
        %899 = vmatprep.mubr.f32.mxu0 0.0
        %v900 = vand.u32 %v714, 4294901760
        %901 = vmatmul.mubr.f32.gmra.mrb[0].mxu0 %v900
        %v902 = vpop.f32.mrb[0].mxu0
        %v903 = vadd.f32 %v810, %v902
        %v904 = vpop.f32.mrb[0].mxu0
        %905 = vdwg.mxu0
        %906 = vmatprep.subr.mxu0 0.0
        %v907 = vand.u32 %v698, 4294901760
        %v908 = vsub.f32 %v698, %v907
        %909 = vmatpush1.msra.mxu0 %v908
        %910 = vmatprep.subr.mxu0 0.0
        %v911 = vand.u32 %v704, 4294901760
        %v912 = vsub.f32 %v704, %v911
        %913 = vmatpush1.msra.mxu0 %v912
        %914 = vmatprep.subr.mxu0 0.0
        %915 = vmatpush1.msra.mxu0 0.0
        %916 = vmatprep.subr.mxu0 0.0
        %917 = vmatpush1.msra.mxu0 0.0
        %918 = vmatprep.subr.mxu0 0.0
        %919 = vmatpush1.msra.mxu0 0.0
        %920 = vmatprep.subr.mxu0 0.0
        %921 = vmatpush1.msra.mxu0 0.0
        %922 = vmatprep.subr.mxu0 0.0
        %923 = vmatpush1.msra.mxu0 0.0
        %924 = vmatprep.subr.mxu0 0.0
        %925 = vmatpush1.msra.mxu0 0.0
        %926 = vmatprep.subr.mxu0 0.0
        %927 = vmatpush1.msra.mxu0 0.0
        %928 = vmatprep.subr.mxu0 0.0
        %929 = vmatpush1.msra.mxu0 0.0
        %930 = vmatprep.subr.mxu0 0.0
        %931 = vmatpush1.msra.mxu0 0.0
        %932 = vmatprep.subr.mxu0 0.0
        %933 = vmatpush1.msra.mxu0 0.0
        %934 = vmatprep.subr.mxu0 0.0
        %935 = vmatpush1.msra.mxu0 0.0
        %936 = vmatprep.subr.mxu0 0.0
        %937 = vmatpush1.msra.mxu0 0.0
        %938 = vmatprep.subr.mxu0 0.0
        %939 = vmatpush1.msra.mxu0 0.0
        %940 = vmatprep.subr.mxu0 0.0
        %941 = vmatpush1.msra.mxu0 0.0
        %942 = vmatprep.subr.mxu0 0.0
        %943 = vmatpush1.msra.mxu0 0.0
        %944 = vmatprep.subr.mxu0 0.0
        %945 = vmatpush1.msra.mxu0 0.0
        %946 = vmatprep.subr.mxu0 0.0
        %947 = vmatpush1.msra.mxu0 0.0
        %948 = vmatprep.subr.mxu0 0.0
        %949 = vmatpush1.msra.mxu0 0.0
        %950 = vmatprep.subr.mxu0 0.0
        %951 = vmatpush1.msra.mxu0 0.0
        %952 = vmatprep.subr.mxu0 0.0
        %953 = vmatpush1.msra.mxu0 0.0
        %954 = vmatprep.subr.mxu0 0.0
        %955 = vmatpush1.msra.mxu0 0.0
        %956 = vmatprep.subr.mxu0 0.0
        %957 = vmatpush1.msra.mxu0 0.0
        %958 = vmatprep.subr.mxu0 0.0
        %959 = vmatpush1.msra.mxu0 0.0
        %960 = vmatprep.subr.mxu0 0.0
        %961 = vmatpush1.msra.mxu0 0.0
        %962 = vmatprep.subr.mxu0 0.0
        %963 = vmatpush1.msra.mxu0 0.0
        %964 = vmatprep.subr.mxu0 0.0
        %965 = vmatpush1.msra.mxu0 0.0
        %966 = vmatprep.subr.mxu0 0.0
        %967 = vmatpush1.msra.mxu0 0.0
        %968 = vmatprep.subr.mxu0 0.0
        %969 = vmatpush1.msra.mxu0 0.0
        %970 = vmatprep.subr.mxu0 0.0
        %971 = vmatpush1.msra.mxu0 0.0
        %972 = vmatprep.subr.mxu0 0.0
        %973 = vmatpush1.msra.mxu0 0.0
        %974 = vmatprep.mubr.f32.mxu0 0.0
        %v975 = vand.u32 %v708, 4294901760
        %v976 = vsub.f32 %v708, %v975
        %977 = vmatmul.mubr.f32.gmra.mrb[0].mxu0 %v976
        %v978 = vpop.f32.mrb[0].mxu0
        %v979 = vadd.f32 %v891, %v978
        %v980 = vpop.f32.mrb[0].mxu0
        %981 = vmatprep.mubr.f32.mxu0 0.0
        %v982 = vand.u32 %v711, 4294901760
        %v983 = vsub.f32 %v711, %v982
        %984 = vmatmul.mubr.f32.gmra.mrb[0].mxu0 %v983
        %v985 = vpop.f32.mrb[0].mxu0
        %v986 = vadd.f32 %v897, %v985
        %v987 = vpop.f32.mrb[0].mxu0
        %988 = vmatprep.mubr.f32.mxu0 0.0
        %v989 = vand.u32 %v714, 4294901760
        %v990 = vsub.f32 %v714, %v989
        %991 = vmatmul.mubr.f32.gmra.mrb[0].mxu0 %v990
        %v992 = vpop.f32.mrb[0].mxu0
        %v993 = vadd.f32 %v903, %v992
        %v994 = vpop.f32.mrb[0].mxu0
        %995 = vdwg.mxu0
        %996 = vmatprep.subr.mxu0 0.0
        %v997 = vand.u32 %v698, 4294901760
        %998 = vmatpush1.msra.mxu0 %v997
        %999 = vmatprep.subr.mxu0 0.0
        %v1000 = vand.u32 %v704, 4294901760
        %1001 = vmatpush1.msra.mxu0 %v1000
        %1002 = vmatprep.subr.mxu0 0.0
        %1003 = vmatpush1.msra.mxu0 0.0
        %1004 = vmatprep.subr.mxu0 0.0
        %1005 = vmatpush1.msra.mxu0 0.0
        %1006 = vmatprep.subr.mxu0 0.0
        %1007 = vmatpush1.msra.mxu0 0.0
        %1008 = vmatprep.subr.mxu0 0.0
        %1009 = vmatpush1.msra.mxu0 0.0
        %1010 = vmatprep.subr.mxu0 0.0
        %1011 = vmatpush1.msra.mxu0 0.0
        %1012 = vmatprep.subr.mxu0 0.0
        %1013 = vmatpush1.msra.mxu0 0.0
        %1014 = vmatprep.subr.mxu0 0.0
        %1015 = vmatpush1.msra.mxu0 0.0
        %1016 = vmatprep.subr.mxu0 0.0
        %1017 = vmatpush1.msra.mxu0 0.0
        %1018 = vmatprep.subr.mxu0 0.0
        %1019 = vmatpush1.msra.mxu0 0.0
        %1020 = vmatprep.subr.mxu0 0.0
        %1021 = vmatpush1.msra.mxu0 0.0
        %1022 = vmatprep.subr.mxu0 0.0
        %1023 = vmatpush1.msra.mxu0 0.0
        %1024 = vmatprep.subr.mxu0 0.0
        %1025 = vmatpush1.msra.mxu0 0.0
        %1026 = vmatprep.subr.mxu0 0.0
        %1027 = vmatpush1.msra.mxu0 0.0
        %1028 = vmatprep.subr.mxu0 0.0
        %1029 = vmatpush1.msra.mxu0 0.0
        %1030 = vmatprep.subr.mxu0 0.0
        %1031 = vmatpush1.msra.mxu0 0.0
        %1032 = vmatprep.subr.mxu0 0.0
        %1033 = vmatpush1.msra.mxu0 0.0
        %1034 = vmatprep.subr.mxu0 0.0
        %1035 = vmatpush1.msra.mxu0 0.0
        %1036 = vmatprep.subr.mxu0 0.0
        %1037 = vmatpush1.msra.mxu0 0.0
        %1038 = vmatprep.subr.mxu0 0.0
        %1039 = vmatpush1.msra.mxu0 0.0
        %1040 = vmatprep.subr.mxu0 0.0
        %1041 = vmatpush1.msra.mxu0 0.0
        %1042 = vmatprep.subr.mxu0 0.0
        %1043 = vmatpush1.msra.mxu0 0.0
        %1044 = vmatprep.subr.mxu0 0.0
        %1045 = vmatpush1.msra.mxu0 0.0
        %1046 = vmatprep.subr.mxu0 0.0
        %1047 = vmatpush1.msra.mxu0 0.0
        %1048 = vmatprep.subr.mxu0 0.0
        %1049 = vmatpush1.msra.mxu0 0.0
        %1050 = vmatprep.subr.mxu0 0.0
        %1051 = vmatpush1.msra.mxu0 0.0
        %1052 = vmatprep.subr.mxu0 0.0
        %1053 = vmatpush1.msra.mxu0 0.0
        %1054 = vmatprep.subr.mxu0 0.0
        %1055 = vmatpush1.msra.mxu0 0.0
        %1056 = vmatprep.subr.mxu0 0.0
        %1057 = vmatpush1.msra.mxu0 0.0
        %1058 = vmatprep.subr.mxu0 0.0
        %1059 = vmatpush1.msra.mxu0 0.0
        %1060 = vmatprep.subr.mxu0 0.0
        %1061 = vmatpush1.msra.mxu0 0.0
        %1062 = vmatprep.mubr.f32.mxu0 0.0
        %v1063 = vand.u32 %v708, 4294901760
        %v1064 = vsub.f32 %v708, %v1063
        %v1065 = vand.u32 %v1064, 4294901760
        %1066 = vmatmul.mubr.f32.gmra.mrb[0].mxu0 %v1065
        %v1067 = vpop.f32.mrb[0].mxu0
        %v1068 = vadd.f32 %v979, %v1067
        %v1069 = vpop.f32.mrb[0].mxu0
        %1070 = vmatprep.mubr.f32.mxu0 0.0
        %v1071 = vand.u32 %v711, 4294901760
        %v1072 = vsub.f32 %v711, %v1071
        %v1073 = vand.u32 %v1072, 4294901760
        %1074 = vmatmul.mubr.f32.gmra.mrb[0].mxu0 %v1073
        %v1075 = vpop.f32.mrb[0].mxu0
        %v1076 = vadd.f32 %v986, %v1075
        %v1077 = vpop.f32.mrb[0].mxu0
        %1078 = vmatprep.mubr.f32.mxu0 0.0
        %v1079 = vand.u32 %v714, 4294901760
        %v1080 = vsub.f32 %v714, %v1079
        %v1081 = vand.u32 %v1080, 4294901760
        %1082 = vmatmul.mubr.f32.gmra.mrb[0].mxu0 %v1081
        %v1083 = vpop.f32.mrb[0].mxu0
        %v1084 = vadd.f32 %v993, %v1083
        %v1085 = vpop.f32.mrb[0].mxu0
        %1086 = vdwg.mxu0
        %1087 = vmatprep.subr.mxu0 0.0
        %v1088 = vand.u32 %v698, 4294901760
        %v1089 = vsub.f32 %v698, %v1088
        %v1090 = vand.u32 %v1089, 4294901760
        %1091 = vmatpush1.msra.mxu0 %v1090
        %1092 = vmatprep.subr.mxu0 0.0
        %v1093 = vand.u32 %v704, 4294901760
        %v1094 = vsub.f32 %v704, %v1093
        %v1095 = vand.u32 %v1094, 4294901760
        %1096 = vmatpush1.msra.mxu0 %v1095
        %1097 = vmatprep.subr.mxu0 0.0
        %1098 = vmatpush1.msra.mxu0 0.0
        %1099 = vmatprep.subr.mxu0 0.0
        %1100 = vmatpush1.msra.mxu0 0.0
        %1101 = vmatprep.subr.mxu0 0.0
        %1102 = vmatpush1.msra.mxu0 0.0
        %1103 = vmatprep.subr.mxu0 0.0
        %1104 = vmatpush1.msra.mxu0 0.0
        %1105 = vmatprep.subr.mxu0 0.0
        %1106 = vmatpush1.msra.mxu0 0.0
        %1107 = vmatprep.subr.mxu0 0.0
        %1108 = vmatpush1.msra.mxu0 0.0
        %1109 = vmatprep.subr.mxu0 0.0
        %1110 = vmatpush1.msra.mxu0 0.0
        %1111 = vmatprep.subr.mxu0 0.0
        %1112 = vmatpush1.msra.mxu0 0.0
        %1113 = vmatprep.subr.mxu0 0.0
        %1114 = vmatpush1.msra.mxu0 0.0
        %1115 = vmatprep.subr.mxu0 0.0
        %1116 = vmatpush1.msra.mxu0 0.0
        %1117 = vmatprep.subr.mxu0 0.0
        %1118 = vmatpush1.msra.mxu0 0.0
        %1119 = vmatprep.subr.mxu0 0.0
        %1120 = vmatpush1.msra.mxu0 0.0
        %1121 = vmatprep.subr.mxu0 0.0
        %1122 = vmatpush1.msra.mxu0 0.0
        %1123 = vmatprep.subr.mxu0 0.0
        %1124 = vmatpush1.msra.mxu0 0.0
        %1125 = vmatprep.subr.mxu0 0.0
        %1126 = vmatpush1.msra.mxu0 0.0
        %1127 = vmatprep.subr.mxu0 0.0
        %1128 = vmatpush1.msra.mxu0 0.0
        %1129 = vmatprep.subr.mxu0 0.0
        %1130 = vmatpush1.msra.mxu0 0.0
        %1131 = vmatprep.subr.mxu0 0.0
        %1132 = vmatpush1.msra.mxu0 0.0
        %1133 = vmatprep.subr.mxu0 0.0
        %1134 = vmatpush1.msra.mxu0 0.0
        %1135 = vmatprep.subr.mxu0 0.0
        %1136 = vmatpush1.msra.mxu0 0.0
        %1137 = vmatprep.subr.mxu0 0.0
        %1138 = vmatpush1.msra.mxu0 0.0
        %1139 = vmatprep.subr.mxu0 0.0
        %1140 = vmatpush1.msra.mxu0 0.0
        %1141 = vmatprep.subr.mxu0 0.0
        %1142 = vmatpush1.msra.mxu0 0.0
        %1143 = vmatprep.subr.mxu0 0.0
        %1144 = vmatpush1.msra.mxu0 0.0
        %1145 = vmatprep.subr.mxu0 0.0
        %1146 = vmatpush1.msra.mxu0 0.0
        %1147 = vmatprep.subr.mxu0 0.0
        %1148 = vmatpush1.msra.mxu0 0.0
        %1149 = vmatprep.subr.mxu0 0.0
        %1150 = vmatpush1.msra.mxu0 0.0
        %1151 = vmatprep.subr.mxu0 0.0
        %1152 = vmatpush1.msra.mxu0 0.0
        %1153 = vmatprep.subr.mxu0 0.0
        %1154 = vmatpush1.msra.mxu0 0.0
        %1155 = vmatprep.subr.mxu0 0.0
        %1156 = vmatpush1.msra.mxu0 0.0
        %1157 = vmatprep.mubr.f32.mxu0 0.0
        %v1158 = vand.u32 %v708, 4294901760
        %1159 = vmatmul.mubr.f32.gmra.mrb[0].mxu0 %v1158
        %v1160 = vpop.f32.mrb[0].mxu0
        %v1161 = vadd.f32 %v1068, %v1160
        %v1162 = vpop.f32.mrb[0].mxu0
        %1163 = vmatprep.mubr.f32.mxu0 0.0
        %v1164 = vand.u32 %v711, 4294901760
        %1165 = vmatmul.mubr.f32.gmra.mrb[0].mxu0 %v1164
        %v1166 = vpop.f32.mrb[0].mxu0
        %v1167 = vadd.f32 %v1076, %v1166
        %v1168 = vpop.f32.mrb[0].mxu0
        %1169 = vmatprep.mubr.f32.mxu0 0.0
        %v1170 = vand.u32 %v714, 4294901760
        %1171 = vmatmul.mubr.f32.gmra.mrb[0].mxu0 %v1170
        %v1172 = vpop.f32.mrb[0].mxu0
        %v1173 = vadd.f32 %v1084, %v1172
        %v1174 = vpop.f32.mrb[0].mxu0
        %1175 = vdwg.mxu0
        %1176 = vmatprep.subr.mxu0 0.0
        %v1177 = vand.u32 %v698, 4294901760
        %1178 = vmatpush1.msra.mxu0 %v1177
        %1179 = vmatprep.subr.mxu0 0.0
        %v1180 = vand.u32 %v704, 4294901760
        %1181 = vmatpush1.msra.mxu0 %v1180
        %1182 = vmatprep.subr.mxu0 0.0
        %1183 = vmatpush1.msra.mxu0 0.0
        %1184 = vmatprep.subr.mxu0 0.0
        %1185 = vmatpush1.msra.mxu0 0.0
        %1186 = vmatprep.subr.mxu0 0.0
        %1187 = vmatpush1.msra.mxu0 0.0
        %1188 = vmatprep.subr.mxu0 0.0
        %1189 = vmatpush1.msra.mxu0 0.0
        %1190 = vmatprep.subr.mxu0 0.0
        %1191 = vmatpush1.msra.mxu0 0.0
        %1192 = vmatprep.subr.mxu0 0.0
        %1193 = vmatpush1.msra.mxu0 0.0
        %1194 = vmatprep.subr.mxu0 0.0
        %1195 = vmatpush1.msra.mxu0 0.0
        %1196 = vmatprep.subr.mxu0 0.0
        %1197 = vmatpush1.msra.mxu0 0.0
        %1198 = vmatprep.subr.mxu0 0.0
        %1199 = vmatpush1.msra.mxu0 0.0
        %1200 = vmatprep.subr.mxu0 0.0
        %1201 = vmatpush1.msra.mxu0 0.0
        %1202 = vmatprep.subr.mxu0 0.0
        %1203 = vmatpush1.msra.mxu0 0.0
        %1204 = vmatprep.subr.mxu0 0.0
        %1205 = vmatpush1.msra.mxu0 0.0
        %1206 = vmatprep.subr.mxu0 0.0
        %1207 = vmatpush1.msra.mxu0 0.0
        %1208 = vmatprep.subr.mxu0 0.0
        %1209 = vmatpush1.msra.mxu0 0.0
        %1210 = vmatprep.subr.mxu0 0.0
        %1211 = vmatpush1.msra.mxu0 0.0
        %1212 = vmatprep.subr.mxu0 0.0
        %1213 = vmatpush1.msra.mxu0 0.0
        %1214 = vmatprep.subr.mxu0 0.0
        %1215 = vmatpush1.msra.mxu0 0.0
        %1216 = vmatprep.subr.mxu0 0.0
        %1217 = vmatpush1.msra.mxu0 0.0
        %1218 = vmatprep.subr.mxu0 0.0
        %1219 = vmatpush1.msra.mxu0 0.0
        %1220 = vmatprep.subr.mxu0 0.0
        %1221 = vmatpush1.msra.mxu0 0.0
        %1222 = vmatprep.subr.mxu0 0.0
        %1223 = vmatpush1.msra.mxu0 0.0
        %1224 = vmatprep.subr.mxu0 0.0
        %1225 = vmatpush1.msra.mxu0 0.0
        %1226 = vmatprep.subr.mxu0 0.0
        %1227 = vmatpush1.msra.mxu0 0.0
        %1228 = vmatprep.subr.mxu0 0.0
        %1229 = vmatpush1.msra.mxu0 0.0
        %1230 = vmatprep.subr.mxu0 0.0
        %1231 = vmatpush1.msra.mxu0 0.0
        %1232 = vmatprep.subr.mxu0 0.0
        %1233 = vmatpush1.msra.mxu0 0.0
        %1234 = vmatprep.subr.mxu0 0.0
        %1235 = vmatpush1.msra.mxu0 0.0
        %1236 = vmatprep.subr.mxu0 0.0
        %1237 = vmatpush1.msra.mxu0 0.0
        %1238 = vmatprep.subr.mxu0 0.0
        %1239 = vmatpush1.msra.mxu0 0.0
        %1240 = vmatprep.subr.mxu0 0.0
        %1241 = vmatpush1.msra.mxu0 0.0
        %1242 = vmatprep.mubr.f32.mxu0 0.0
        %v1243 = vand.u32 %v708, 4294901760
        %1244 = vmatmul.mubr.f32.gmra.mrb[0].mxu0 %v1243
        %v1245 = vpop.f32.mrb[0].mxu0
        %v1246 = vadd.f32 %v1161, %v1245
        %v1247 = vpop.f32.mrb[0].mxu0
        %1248 = vmatprep.mubr.f32.mxu0 0.0
        %v1249 = vand.u32 %v711, 4294901760
        %1250 = vmatmul.mubr.f32.gmra.mrb[0].mxu0 %v1249
        %v1251 = vpop.f32.mrb[0].mxu0
        %v1252 = vadd.f32 %v1167, %v1251
        %v1253 = vpop.f32.mrb[0].mxu0
        %1254 = vmatprep.mubr.f32.mxu0 0.0
        %v1255 = vand.u32 %v714, 4294901760
        %1256 = vmatmul.mubr.f32.gmra.mrb[0].mxu0 %v1255
        %v1257 = vpop.f32.mrb[0].mxu0
        %v1258 = vadd.f32 %v1173, %v1257
        %v1259 = vpop.f32.mrb[0].mxu0
        %1260 = vdwg.mxu0
        %vm1261 = vcmask 138240
        %1262 = vst.msk [vmem:[%s190] sm:$0xff] %vm1261, %v1246
        %1263 = vst.msk [vmem:[%s190 + $0x8] sm:$0xff] %vm1261, %v1252
        %vm1264 = vcmask 131072
        %1265 = vst.msk [vmem:[%s190 + $0x10] sm:$0x1] %vm1264, %v1258
        %s1266 = scalar_lea.vmem %s163, 16 [#allocation2]
        %v1267 = vld [vmem:[%s1266] sm:$0xff]
        %v1268 = vld [vmem:[%s1266 + $0x8] sm:$0xff]
        %v1270 = vsel %vm198, %v1267, 0
        %v1273 = vsel %vm198, %v1268, 0
        %1275 = vmatprep.subr.mxu0 0.0
        %v1276 = vand.u32 %v194, 4294901760
        %1277 = vmatpush1.msra.mxu0 %v1276
        %1278 = vmatprep.subr.mxu0 0.0
        %v1279 = vand.u32 %v195, 4294901760
        %1280 = vmatpush1.msra.mxu0 %v1279
        %1281 = vmatprep.subr.mxu0 0.0
        %1282 = vmatpush1.msra.mxu0 0.0
        %1283 = vmatprep.subr.mxu0 0.0
        %1284 = vmatpush1.msra.mxu0 0.0
        %1285 = vmatprep.subr.mxu0 0.0
        %1286 = vmatpush1.msra.mxu0 0.0
        %1287 = vmatprep.subr.mxu0 0.0
        %1288 = vmatpush1.msra.mxu0 0.0
        %1289 = vmatprep.subr.mxu0 0.0
        %1290 = vmatpush1.msra.mxu0 0.0
        %1291 = vmatprep.subr.mxu0 0.0
        %1292 = vmatpush1.msra.mxu0 0.0
        %1293 = vmatprep.subr.mxu0 0.0
        %1294 = vmatpush1.msra.mxu0 0.0
        %1295 = vmatprep.subr.mxu0 0.0
        %1296 = vmatpush1.msra.mxu0 0.0
        %1297 = vmatprep.subr.mxu0 0.0
        %1298 = vmatpush1.msra.mxu0 0.0
        %1299 = vmatprep.subr.mxu0 0.0
        %1300 = vmatpush1.msra.mxu0 0.0
        %1301 = vmatprep.subr.mxu0 0.0
        %1302 = vmatpush1.msra.mxu0 0.0
        %1303 = vmatprep.subr.mxu0 0.0
        %1304 = vmatpush1.msra.mxu0 0.0
        %1305 = vmatprep.subr.mxu0 0.0
        %1306 = vmatpush1.msra.mxu0 0.0
        %1307 = vmatprep.subr.mxu0 0.0
        %1308 = vmatpush1.msra.mxu0 0.0
        %1309 = vmatprep.subr.mxu0 0.0
        %1310 = vmatpush1.msra.mxu0 0.0
        %1311 = vmatprep.subr.mxu0 0.0
        %1312 = vmatpush1.msra.mxu0 0.0
        %1313 = vmatprep.subr.mxu0 0.0
        %1314 = vmatpush1.msra.mxu0 0.0
        %1315 = vmatprep.subr.mxu0 0.0
        %1316 = vmatpush1.msra.mxu0 0.0
        %1317 = vmatprep.subr.mxu0 0.0
        %1318 = vmatpush1.msra.mxu0 0.0
        %1319 = vmatprep.subr.mxu0 0.0
        %1320 = vmatpush1.msra.mxu0 0.0
        %1321 = vmatprep.subr.mxu0 0.0
        %1322 = vmatpush1.msra.mxu0 0.0
        %1323 = vmatprep.subr.mxu0 0.0
        %1324 = vmatpush1.msra.mxu0 0.0
        %1325 = vmatprep.subr.mxu0 0.0
        %1326 = vmatpush1.msra.mxu0 0.0
        %1327 = vmatprep.subr.mxu0 0.0
        %1328 = vmatpush1.msra.mxu0 0.0
        %1329 = vmatprep.subr.mxu0 0.0
        %1330 = vmatpush1.msra.mxu0 0.0
        %1331 = vmatprep.subr.mxu0 0.0
        %1332 = vmatpush1.msra.mxu0 0.0
        %1333 = vmatprep.subr.mxu0 0.0
        %1334 = vmatpush1.msra.mxu0 0.0
        %1335 = vmatprep.subr.mxu0 0.0
        %1336 = vmatpush1.msra.mxu0 0.0
        %1337 = vmatprep.subr.mxu0 0.0
        %1338 = vmatpush1.msra.mxu0 0.0
        %1339 = vmatprep.subr.mxu0 0.0
        %1340 = vmatpush1.msra.mxu0 0.0
        %1341 = vmatprep.mubr.f32.mxu0 0.0
        %v1342 = vand.u32 %v1270, 4294901760
        %v1343 = vsub.f32 %v1270, %v1342
        %v1344 = vand.u32 %v1343, 4294901760
        %v1345 = vsub.f32 %v1343, %v1344
        %v1346 = vand.u32 %v1345, 4294901760
        %1347 = vmatmul.mubr.f32.gmra.mrb[0].mxu0 %v1346
        %v1348 = vpop.f32.mrb[0].mxu0
        %v1349 = vadd.f32 0.0, %v1348
        %v1350 = vpop.f32.mrb[0].mxu0
        %1351 = vmatprep.mubr.f32.mxu0 0.0
        %v1352 = vand.u32 %v1273, 4294901760
        %v1353 = vsub.f32 %v1273, %v1352
        %v1354 = vand.u32 %v1353, 4294901760
        %v1355 = vsub.f32 %v1353, %v1354
        %v1356 = vand.u32 %v1355, 4294901760
        %1357 = vmatmul.mubr.f32.gmra.mrb[0].mxu0 %v1356
        %v1358 = vpop.f32.mrb[0].mxu0
        %v1359 = vadd.f32 0.0, %v1358
        %v1360 = vpop.f32.mrb[0].mxu0
        %1361 = vdwg.mxu0
        %1362 = vmatprep.subr.mxu0 0.0
        %v1363 = vand.u32 %v194, 4294901760
        %v1364 = vsub.f32 %v194, %v1363
        %v1365 = vand.u32 %v1364, 4294901760
        %v1366 = vsub.f32 %v1364, %v1365
        %v1367 = vand.u32 %v1366, 4294901760
        %1368 = vmatpush1.msra.mxu0 %v1367
        %1369 = vmatprep.subr.mxu0 0.0
        %v1370 = vand.u32 %v195, 4294901760
        %v1371 = vsub.f32 %v195, %v1370
        %v1372 = vand.u32 %v1371, 4294901760
        %v1373 = vsub.f32 %v1371, %v1372
        %v1374 = vand.u32 %v1373, 4294901760
        %1375 = vmatpush1.msra.mxu0 %v1374
        %1376 = vmatprep.subr.mxu0 0.0
        %1377 = vmatpush1.msra.mxu0 0.0
        %1378 = vmatprep.subr.mxu0 0.0
        %1379 = vmatpush1.msra.mxu0 0.0
        %1380 = vmatprep.subr.mxu0 0.0
        %1381 = vmatpush1.msra.mxu0 0.0
        %1382 = vmatprep.subr.mxu0 0.0
        %1383 = vmatpush1.msra.mxu0 0.0
        %1384 = vmatprep.subr.mxu0 0.0
        %1385 = vmatpush1.msra.mxu0 0.0
        %1386 = vmatprep.subr.mxu0 0.0
        %1387 = vmatpush1.msra.mxu0 0.0
        %1388 = vmatprep.subr.mxu0 0.0
        %1389 = vmatpush1.msra.mxu0 0.0
        %1390 = vmatprep.subr.mxu0 0.0
        %1391 = vmatpush1.msra.mxu0 0.0
        %1392 = vmatprep.subr.mxu0 0.0
        %1393 = vmatpush1.msra.mxu0 0.0
        %1394 = vmatprep.subr.mxu0 0.0
        %1395 = vmatpush1.msra.mxu0 0.0
        %1396 = vmatprep.subr.mxu0 0.0
        %1397 = vmatpush1.msra.mxu0 0.0
        %1398 = vmatprep.subr.mxu0 0.0
        %1399 = vmatpush1.msra.mxu0 0.0
        %1400 = vmatprep.subr.mxu0 0.0
        %1401 = vmatpush1.msra.mxu0 0.0
        %1402 = vmatprep.subr.mxu0 0.0
        %1403 = vmatpush1.msra.mxu0 0.0
        %1404 = vmatprep.subr.mxu0 0.0
        %1405 = vmatpush1.msra.mxu0 0.0
        %1406 = vmatprep.subr.mxu0 0.0
        %1407 = vmatpush1.msra.mxu0 0.0
        %1408 = vmatprep.subr.mxu0 0.0
        %1409 = vmatpush1.msra.mxu0 0.0
        %1410 = vmatprep.subr.mxu0 0.0
        %1411 = vmatpush1.msra.mxu0 0.0
        %1412 = vmatprep.subr.mxu0 0.0
        %1413 = vmatpush1.msra.mxu0 0.0
        %1414 = vmatprep.subr.mxu0 0.0
        %1415 = vmatpush1.msra.mxu0 0.0
        %1416 = vmatprep.subr.mxu0 0.0
        %1417 = vmatpush1.msra.mxu0 0.0
        %1418 = vmatprep.subr.mxu0 0.0
        %1419 = vmatpush1.msra.mxu0 0.0
        %1420 = vmatprep.subr.mxu0 0.0
        %1421 = vmatpush1.msra.mxu0 0.0
        %1422 = vmatprep.subr.mxu0 0.0
        %1423 = vmatpush1.msra.mxu0 0.0
        %1424 = vmatprep.subr.mxu0 0.0
        %1425 = vmatpush1.msra.mxu0 0.0
        %1426 = vmatprep.subr.mxu0 0.0
        %1427 = vmatpush1.msra.mxu0 0.0
        %1428 = vmatprep.subr.mxu0 0.0
        %1429 = vmatpush1.msra.mxu0 0.0
        %1430 = vmatprep.subr.mxu0 0.0
        %1431 = vmatpush1.msra.mxu0 0.0
        %1432 = vmatprep.subr.mxu0 0.0
        %1433 = vmatpush1.msra.mxu0 0.0
        %1434 = vmatprep.subr.mxu0 0.0
        %1435 = vmatpush1.msra.mxu0 0.0
        %1436 = vmatprep.mubr.f32.mxu0 0.0
        %v1437 = vand.u32 %v1270, 4294901760
        %1438 = vmatmul.mubr.f32.gmra.mrb[0].mxu0 %v1437
        %v1439 = vpop.f32.mrb[0].mxu0
        %v1440 = vadd.f32 %v1349, %v1439
        %v1441 = vpop.f32.mrb[0].mxu0
        %1442 = vmatprep.mubr.f32.mxu0 0.0
        %v1443 = vand.u32 %v1273, 4294901760
        %1444 = vmatmul.mubr.f32.gmra.mrb[0].mxu0 %v1443
        %v1445 = vpop.f32.mrb[0].mxu0
        %v1446 = vadd.f32 %v1359, %v1445
        %v1447 = vpop.f32.mrb[0].mxu0
        %1448 = vdwg.mxu0
        %1449 = vmatprep.subr.mxu0 0.0
        %v1450 = vand.u32 %v194, 4294901760
        %v1451 = vsub.f32 %v194, %v1450
        %1452 = vmatpush1.msra.mxu0 %v1451
        %1453 = vmatprep.subr.mxu0 0.0
        %v1454 = vand.u32 %v195, 4294901760
        %v1455 = vsub.f32 %v195, %v1454
        %1456 = vmatpush1.msra.mxu0 %v1455
        %1457 = vmatprep.subr.mxu0 0.0
        %1458 = vmatpush1.msra.mxu0 0.0
        %1459 = vmatprep.subr.mxu0 0.0
        %1460 = vmatpush1.msra.mxu0 0.0
        %1461 = vmatprep.subr.mxu0 0.0
        %1462 = vmatpush1.msra.mxu0 0.0
        %1463 = vmatprep.subr.mxu0 0.0
        %1464 = vmatpush1.msra.mxu0 0.0
        %1465 = vmatprep.subr.mxu0 0.0
        %1466 = vmatpush1.msra.mxu0 0.0
        %1467 = vmatprep.subr.mxu0 0.0
        %1468 = vmatpush1.msra.mxu0 0.0
        %1469 = vmatprep.subr.mxu0 0.0
        %1470 = vmatpush1.msra.mxu0 0.0
        %1471 = vmatprep.subr.mxu0 0.0
        %1472 = vmatpush1.msra.mxu0 0.0
        %1473 = vmatprep.subr.mxu0 0.0
        %1474 = vmatpush1.msra.mxu0 0.0
        %1475 = vmatprep.subr.mxu0 0.0
        %1476 = vmatpush1.msra.mxu0 0.0
        %1477 = vmatprep.subr.mxu0 0.0
        %1478 = vmatpush1.msra.mxu0 0.0
        %1479 = vmatprep.subr.mxu0 0.0
        %1480 = vmatpush1.msra.mxu0 0.0
        %1481 = vmatprep.subr.mxu0 0.0
        %1482 = vmatpush1.msra.mxu0 0.0
        %1483 = vmatprep.subr.mxu0 0.0
        %1484 = vmatpush1.msra.mxu0 0.0
        %1485 = vmatprep.subr.mxu0 0.0
        %1486 = vmatpush1.msra.mxu0 0.0
        %1487 = vmatprep.subr.mxu0 0.0
        %1488 = vmatpush1.msra.mxu0 0.0
        %1489 = vmatprep.subr.mxu0 0.0
        %1490 = vmatpush1.msra.mxu0 0.0
        %1491 = vmatprep.subr.mxu0 0.0
        %1492 = vmatpush1.msra.mxu0 0.0
        %1493 = vmatprep.subr.mxu0 0.0
        %1494 = vmatpush1.msra.mxu0 0.0
        %1495 = vmatprep.subr.mxu0 0.0
        %1496 = vmatpush1.msra.mxu0 0.0
        %1497 = vmatprep.subr.mxu0 0.0
        %1498 = vmatpush1.msra.mxu0 0.0
        %1499 = vmatprep.subr.mxu0 0.0
        %1500 = vmatpush1.msra.mxu0 0.0
        %1501 = vmatprep.subr.mxu0 0.0
        %1502 = vmatpush1.msra.mxu0 0.0
        %1503 = vmatprep.subr.mxu0 0.0
        %1504 = vmatpush1.msra.mxu0 0.0
        %1505 = vmatprep.subr.mxu0 0.0
        %1506 = vmatpush1.msra.mxu0 0.0
        %1507 = vmatprep.subr.mxu0 0.0
        %1508 = vmatpush1.msra.mxu0 0.0
        %1509 = vmatprep.subr.mxu0 0.0
        %1510 = vmatpush1.msra.mxu0 0.0
        %1511 = vmatprep.subr.mxu0 0.0
        %1512 = vmatpush1.msra.mxu0 0.0
        %1513 = vmatprep.subr.mxu0 0.0
        %1514 = vmatpush1.msra.mxu0 0.0
        %1515 = vmatprep.subr.mxu0 0.0
        %1516 = vmatpush1.msra.mxu0 0.0
        %1517 = vmatprep.mubr.f32.mxu0 0.0
        %v1518 = vand.u32 %v1270, 4294901760
        %v1519 = vsub.f32 %v1270, %v1518
        %1520 = vmatmul.mubr.f32.gmra.mrb[0].mxu0 %v1519
        %v1521 = vpop.f32.mrb[0].mxu0
        %v1522 = vadd.f32 %v1440, %v1521
        %v1523 = vpop.f32.mrb[0].mxu0
        %1524 = vmatprep.mubr.f32.mxu0 0.0
        %v1525 = vand.u32 %v1273, 4294901760
        %v1526 = vsub.f32 %v1273, %v1525
        %1527 = vmatmul.mubr.f32.gmra.mrb[0].mxu0 %v1526
        %v1528 = vpop.f32.mrb[0].mxu0
        %v1529 = vadd.f32 %v1446, %v1528
        %v1530 = vpop.f32.mrb[0].mxu0
        %1531 = vdwg.mxu0
        %1532 = vmatprep.subr.mxu0 0.0
        %v1533 = vand.u32 %v194, 4294901760
        %1534 = vmatpush1.msra.mxu0 %v1533
        %1535 = vmatprep.subr.mxu0 0.0
        %v1536 = vand.u32 %v195, 4294901760
        %1537 = vmatpush1.msra.mxu0 %v1536
        %1538 = vmatprep.subr.mxu0 0.0
        %1539 = vmatpush1.msra.mxu0 0.0
        %1540 = vmatprep.subr.mxu0 0.0
        %1541 = vmatpush1.msra.mxu0 0.0
        %1542 = vmatprep.subr.mxu0 0.0
        %1543 = vmatpush1.msra.mxu0 0.0
        %1544 = vmatprep.subr.mxu0 0.0
        %1545 = vmatpush1.msra.mxu0 0.0
        %1546 = vmatprep.subr.mxu0 0.0
        %1547 = vmatpush1.msra.mxu0 0.0
        %1548 = vmatprep.subr.mxu0 0.0
        %1549 = vmatpush1.msra.mxu0 0.0
        %1550 = vmatprep.subr.mxu0 0.0
        %1551 = vmatpush1.msra.mxu0 0.0
        %1552 = vmatprep.subr.mxu0 0.0
        %1553 = vmatpush1.msra.mxu0 0.0
        %1554 = vmatprep.subr.mxu0 0.0
        %1555 = vmatpush1.msra.mxu0 0.0
        %1556 = vmatprep.subr.mxu0 0.0
        %1557 = vmatpush1.msra.mxu0 0.0
        %1558 = vmatprep.subr.mxu0 0.0
        %1559 = vmatpush1.msra.mxu0 0.0
        %1560 = vmatprep.subr.mxu0 0.0
        %1561 = vmatpush1.msra.mxu0 0.0
        %1562 = vmatprep.subr.mxu0 0.0
        %1563 = vmatpush1.msra.mxu0 0.0
        %1564 = vmatprep.subr.mxu0 0.0
        %1565 = vmatpush1.msra.mxu0 0.0
        %1566 = vmatprep.subr.mxu0 0.0
        %1567 = vmatpush1.msra.mxu0 0.0
        %1568 = vmatprep.subr.mxu0 0.0
        %1569 = vmatpush1.msra.mxu0 0.0
        %1570 = vmatprep.subr.mxu0 0.0
        %1571 = vmatpush1.msra.mxu0 0.0
        %1572 = vmatprep.subr.mxu0 0.0
        %1573 = vmatpush1.msra.mxu0 0.0
        %1574 = vmatprep.subr.mxu0 0.0
        %1575 = vmatpush1.msra.mxu0 0.0
        %1576 = vmatprep.subr.mxu0 0.0
        %1577 = vmatpush1.msra.mxu0 0.0
        %1578 = vmatprep.subr.mxu0 0.0
        %1579 = vmatpush1.msra.mxu0 0.0
        %1580 = vmatprep.subr.mxu0 0.0
        %1581 = vmatpush1.msra.mxu0 0.0
        %1582 = vmatprep.subr.mxu0 0.0
        %1583 = vmatpush1.msra.mxu0 0.0
        %1584 = vmatprep.subr.mxu0 0.0
        %1585 = vmatpush1.msra.mxu0 0.0
        %1586 = vmatprep.subr.mxu0 0.0
        %1587 = vmatpush1.msra.mxu0 0.0
        %1588 = vmatprep.subr.mxu0 0.0
        %1589 = vmatpush1.msra.mxu0 0.0
        %1590 = vmatprep.subr.mxu0 0.0
        %1591 = vmatpush1.msra.mxu0 0.0
        %1592 = vmatprep.subr.mxu0 0.0
        %1593 = vmatpush1.msra.mxu0 0.0
        %1594 = vmatprep.subr.mxu0 0.0
        %1595 = vmatpush1.msra.mxu0 0.0
        %1596 = vmatprep.subr.mxu0 0.0
        %1597 = vmatpush1.msra.mxu0 0.0
        %1598 = vmatprep.mubr.f32.mxu0 0.0
        %v1599 = vand.u32 %v1270, 4294901760
        %v1600 = vsub.f32 %v1270, %v1599
        %v1601 = vand.u32 %v1600, 4294901760
        %1602 = vmatmul.mubr.f32.gmra.mrb[0].mxu0 %v1601
        %v1603 = vpop.f32.mrb[0].mxu0
        %v1604 = vadd.f32 %v1522, %v1603
        %v1605 = vpop.f32.mrb[0].mxu0
        %1606 = vmatprep.mubr.f32.mxu0 0.0
        %v1607 = vand.u32 %v1273, 4294901760
        %v1608 = vsub.f32 %v1273, %v1607
        %v1609 = vand.u32 %v1608, 4294901760
        %1610 = vmatmul.mubr.f32.gmra.mrb[0].mxu0 %v1609
        %v1611 = vpop.f32.mrb[0].mxu0
        %v1612 = vadd.f32 %v1529, %v1611
        %v1613 = vpop.f32.mrb[0].mxu0
        %1614 = vdwg.mxu0
        %1615 = vmatprep.subr.mxu0 0.0
        %v1616 = vand.u32 %v194, 4294901760
        %v1617 = vsub.f32 %v194, %v1616
        %v1618 = vand.u32 %v1617, 4294901760
        %1619 = vmatpush1.msra.mxu0 %v1618
        %1620 = vmatprep.subr.mxu0 0.0
        %v1621 = vand.u32 %v195, 4294901760
        %v1622 = vsub.f32 %v195, %v1621
        %v1623 = vand.u32 %v1622, 4294901760
        %1624 = vmatpush1.msra.mxu0 %v1623
        %1625 = vmatprep.subr.mxu0 0.0
        %1626 = vmatpush1.msra.mxu0 0.0
        %1627 = vmatprep.subr.mxu0 0.0
        %1628 = vmatpush1.msra.mxu0 0.0
        %1629 = vmatprep.subr.mxu0 0.0
        %1630 = vmatpush1.msra.mxu0 0.0
        %1631 = vmatprep.subr.mxu0 0.0
        %1632 = vmatpush1.msra.mxu0 0.0
        %1633 = vmatprep.subr.mxu0 0.0
        %1634 = vmatpush1.msra.mxu0 0.0
        %1635 = vmatprep.subr.mxu0 0.0
        %1636 = vmatpush1.msra.mxu0 0.0
        %1637 = vmatprep.subr.mxu0 0.0
        %1638 = vmatpush1.msra.mxu0 0.0
        %1639 = vmatprep.subr.mxu0 0.0
        %1640 = vmatpush1.msra.mxu0 0.0
        %1641 = vmatprep.subr.mxu0 0.0
        %1642 = vmatpush1.msra.mxu0 0.0
        %1643 = vmatprep.subr.mxu0 0.0
        %1644 = vmatpush1.msra.mxu0 0.0
        %1645 = vmatprep.subr.mxu0 0.0
        %1646 = vmatpush1.msra.mxu0 0.0
        %1647 = vmatprep.subr.mxu0 0.0
        %1648 = vmatpush1.msra.mxu0 0.0
        %1649 = vmatprep.subr.mxu0 0.0
        %1650 = vmatpush1.msra.mxu0 0.0
        %1651 = vmatprep.subr.mxu0 0.0
        %1652 = vmatpush1.msra.mxu0 0.0
        %1653 = vmatprep.subr.mxu0 0.0
        %1654 = vmatpush1.msra.mxu0 0.0
        %1655 = vmatprep.subr.mxu0 0.0
        %1656 = vmatpush1.msra.mxu0 0.0
        %1657 = vmatprep.subr.mxu0 0.0
        %1658 = vmatpush1.msra.mxu0 0.0
        %1659 = vmatprep.subr.mxu0 0.0
        %1660 = vmatpush1.msra.mxu0 0.0
        %1661 = vmatprep.subr.mxu0 0.0
        %1662 = vmatpush1.msra.mxu0 0.0
        %1663 = vmatprep.subr.mxu0 0.0
        %1664 = vmatpush1.msra.mxu0 0.0
        %1665 = vmatprep.subr.mxu0 0.0
        %1666 = vmatpush1.msra.mxu0 0.0
        %1667 = vmatprep.subr.mxu0 0.0
        %1668 = vmatpush1.msra.mxu0 0.0
        %1669 = vmatprep.subr.mxu0 0.0
        %1670 = vmatpush1.msra.mxu0 0.0
        %1671 = vmatprep.subr.mxu0 0.0
        %1672 = vmatpush1.msra.mxu0 0.0
        %1673 = vmatprep.subr.mxu0 0.0
        %1674 = vmatpush1.msra.mxu0 0.0
        %1675 = vmatprep.subr.mxu0 0.0
        %1676 = vmatpush1.msra.mxu0 0.0
        %1677 = vmatprep.subr.mxu0 0.0
        %1678 = vmatpush1.msra.mxu0 0.0
        %1679 = vmatprep.subr.mxu0 0.0
        %1680 = vmatpush1.msra.mxu0 0.0
        %1681 = vmatprep.subr.mxu0 0.0
        %1682 = vmatpush1.msra.mxu0 0.0
        %1683 = vmatprep.subr.mxu0 0.0
        %1684 = vmatpush1.msra.mxu0 0.0
        %1685 = vmatprep.mubr.f32.mxu0 0.0
        %v1686 = vand.u32 %v1270, 4294901760
        %1687 = vmatmul.mubr.f32.gmra.mrb[0].mxu0 %v1686
        %v1688 = vpop.f32.mrb[0].mxu0
        %v1689 = vadd.f32 %v1604, %v1688
        %v1690 = vpop.f32.mrb[0].mxu0
        %1691 = vmatprep.mubr.f32.mxu0 0.0
        %v1692 = vand.u32 %v1273, 4294901760
        %1693 = vmatmul.mubr.f32.gmra.mrb[0].mxu0 %v1692
        %v1694 = vpop.f32.mrb[0].mxu0
        %v1695 = vadd.f32 %v1612, %v1694
        %v1696 = vpop.f32.mrb[0].mxu0
        %1697 = vdwg.mxu0
        %1698 = vmatprep.subr.mxu0 0.0
        %v1699 = vand.u32 %v194, 4294901760
        %1700 = vmatpush1.msra.mxu0 %v1699
        %1701 = vmatprep.subr.mxu0 0.0
        %v1702 = vand.u32 %v195, 4294901760
        %1703 = vmatpush1.msra.mxu0 %v1702
        %1704 = vmatprep.subr.mxu0 0.0
        %1705 = vmatpush1.msra.mxu0 0.0
        %1706 = vmatprep.subr.mxu0 0.0
        %1707 = vmatpush1.msra.mxu0 0.0
        %1708 = vmatprep.subr.mxu0 0.0
        %1709 = vmatpush1.msra.mxu0 0.0
        %1710 = vmatprep.subr.mxu0 0.0
        %1711 = vmatpush1.msra.mxu0 0.0
        %1712 = vmatprep.subr.mxu0 0.0
        %1713 = vmatpush1.msra.mxu0 0.0
        %1714 = vmatprep.subr.mxu0 0.0
        %1715 = vmatpush1.msra.mxu0 0.0
        %1716 = vmatprep.subr.mxu0 0.0
        %1717 = vmatpush1.msra.mxu0 0.0
        %1718 = vmatprep.subr.mxu0 0.0
        %1719 = vmatpush1.msra.mxu0 0.0
        %1720 = vmatprep.subr.mxu0 0.0
        %1721 = vmatpush1.msra.mxu0 0.0
        %1722 = vmatprep.subr.mxu0 0.0
        %1723 = vmatpush1.msra.mxu0 0.0
        %1724 = vmatprep.subr.mxu0 0.0
        %1725 = vmatpush1.msra.mxu0 0.0
        %1726 = vmatprep.subr.mxu0 0.0
        %1727 = vmatpush1.msra.mxu0 0.0
        %1728 = vmatprep.subr.mxu0 0.0
        %1729 = vmatpush1.msra.mxu0 0.0
        %1730 = vmatprep.subr.mxu0 0.0
        %1731 = vmatpush1.msra.mxu0 0.0
        %1732 = vmatprep.subr.mxu0 0.0
        %1733 = vmatpush1.msra.mxu0 0.0
        %1734 = vmatprep.subr.mxu0 0.0
        %1735 = vmatpush1.msra.mxu0 0.0
        %1736 = vmatprep.subr.mxu0 0.0
        %1737 = vmatpush1.msra.mxu0 0.0
        %1738 = vmatprep.subr.mxu0 0.0
        %1739 = vmatpush1.msra.mxu0 0.0
        %1740 = vmatprep.subr.mxu0 0.0
        %1741 = vmatpush1.msra.mxu0 0.0
        %1742 = vmatprep.subr.mxu0 0.0
        %1743 = vmatpush1.msra.mxu0 0.0
        %1744 = vmatprep.subr.mxu0 0.0
        %1745 = vmatpush1.msra.mxu0 0.0
        %1746 = vmatprep.subr.mxu0 0.0
        %1747 = vmatpush1.msra.mxu0 0.0
        %1748 = vmatprep.subr.mxu0 0.0
        %1749 = vmatpush1.msra.mxu0 0.0
        %1750 = vmatprep.subr.mxu0 0.0
        %1751 = vmatpush1.msra.mxu0 0.0
        %1752 = vmatprep.subr.mxu0 0.0
        %1753 = vmatpush1.msra.mxu0 0.0
        %1754 = vmatprep.subr.mxu0 0.0
        %1755 = vmatpush1.msra.mxu0 0.0
        %1756 = vmatprep.subr.mxu0 0.0
        %1757 = vmatpush1.msra.mxu0 0.0
        %1758 = vmatprep.subr.mxu0 0.0
        %1759 = vmatpush1.msra.mxu0 0.0
        %1760 = vmatprep.subr.mxu0 0.0
        %1761 = vmatpush1.msra.mxu0 0.0
        %1762 = vmatprep.subr.mxu0 0.0
        %1763 = vmatpush1.msra.mxu0 0.0
        %1764 = vmatprep.mubr.f32.mxu0 0.0
        %v1765 = vand.u32 %v1270, 4294901760
        %1766 = vmatmul.mubr.f32.gmra.mrb[0].mxu0 %v1765
        %v1767 = vpop.f32.mrb[0].mxu0
        %v1768 = vadd.f32 %v1689, %v1767
        %v1769 = vpop.f32.mrb[0].mxu0
        %1770 = vmatprep.mubr.f32.mxu0 0.0
        %v1771 = vand.u32 %v1273, 4294901760
        %1772 = vmatmul.mubr.f32.gmra.mrb[0].mxu0 %v1771
        %v1773 = vpop.f32.mrb[0].mxu0
        %v1774 = vadd.f32 %v1695, %v1773
        %v1775 = vpop.f32.mrb[0].mxu0
        %1776 = vdwg.mxu0
        %1777 = vmatprep.subr.mxu0 0.0
        %v1778 = vand.u32 %v1768, 4294901760
        %1779 = vmatpush1.msra.mxu0 %v1778
        %1780 = vmatprep.subr.mxu0 0.0
        %v1781 = vand.u32 %v1774, 4294901760
        %1782 = vmatpush1.msra.mxu0 %v1781
        %1783 = vmatprep.subr.mxu0 0.0
        %1784 = vmatpush1.msra.mxu0 0.0
        %1785 = vmatprep.subr.mxu0 0.0
        %1786 = vmatpush1.msra.mxu0 0.0
        %1787 = vmatprep.subr.mxu0 0.0
        %1788 = vmatpush1.msra.mxu0 0.0
        %1789 = vmatprep.subr.mxu0 0.0
        %1790 = vmatpush1.msra.mxu0 0.0
        %1791 = vmatprep.subr.mxu0 0.0
        %1792 = vmatpush1.msra.mxu0 0.0
        %1793 = vmatprep.subr.mxu0 0.0
        %1794 = vmatpush1.msra.mxu0 0.0
        %1795 = vmatprep.subr.mxu0 0.0
        %1796 = vmatpush1.msra.mxu0 0.0
        %1797 = vmatprep.subr.mxu0 0.0
        %1798 = vmatpush1.msra.mxu0 0.0
        %1799 = vmatprep.subr.mxu0 0.0
        %1800 = vmatpush1.msra.mxu0 0.0
        %1801 = vmatprep.subr.mxu0 0.0
        %1802 = vmatpush1.msra.mxu0 0.0
        %1803 = vmatprep.subr.mxu0 0.0
        %1804 = vmatpush1.msra.mxu0 0.0
        %1805 = vmatprep.subr.mxu0 0.0
        %1806 = vmatpush1.msra.mxu0 0.0
        %1807 = vmatprep.subr.mxu0 0.0
        %1808 = vmatpush1.msra.mxu0 0.0
        %1809 = vmatprep.subr.mxu0 0.0
        %1810 = vmatpush1.msra.mxu0 0.0
        %1811 = vmatprep.subr.mxu0 0.0
        %1812 = vmatpush1.msra.mxu0 0.0
        %1813 = vmatprep.subr.mxu0 0.0
        %1814 = vmatpush1.msra.mxu0 0.0
        %1815 = vmatprep.subr.mxu0 0.0
        %1816 = vmatpush1.msra.mxu0 0.0
        %1817 = vmatprep.subr.mxu0 0.0
        %1818 = vmatpush1.msra.mxu0 0.0
        %1819 = vmatprep.subr.mxu0 0.0
        %1820 = vmatpush1.msra.mxu0 0.0
        %1821 = vmatprep.subr.mxu0 0.0
        %1822 = vmatpush1.msra.mxu0 0.0
        %1823 = vmatprep.subr.mxu0 0.0
        %1824 = vmatpush1.msra.mxu0 0.0
        %1825 = vmatprep.subr.mxu0 0.0
        %1826 = vmatpush1.msra.mxu0 0.0
        %1827 = vmatprep.subr.mxu0 0.0
        %1828 = vmatpush1.msra.mxu0 0.0
        %1829 = vmatprep.subr.mxu0 0.0
        %1830 = vmatpush1.msra.mxu0 0.0
        %1831 = vmatprep.subr.mxu0 0.0
        %1832 = vmatpush1.msra.mxu0 0.0
        %1833 = vmatprep.subr.mxu0 0.0
        %1834 = vmatpush1.msra.mxu0 0.0
        %1835 = vmatprep.subr.mxu0 0.0
        %1836 = vmatpush1.msra.mxu0 0.0
        %1837 = vmatprep.subr.mxu0 0.0
        %1838 = vmatpush1.msra.mxu0 0.0
        %1839 = vmatprep.subr.mxu0 0.0
        %1840 = vmatpush1.msra.mxu0 0.0
        %1841 = vmatprep.subr.mxu0 0.0
        %1842 = vmatpush1.msra.mxu0 0.0
        %1843 = vmatprep.mubr.f32.mxu0 0.0
        %v1844 = vand.u32 %v708, 4294901760
        %v1845 = vsub.f32 %v708, %v1844
        %v1846 = vand.u32 %v1845, 4294901760
        %v1847 = vsub.f32 %v1845, %v1846
        %v1848 = vand.u32 %v1847, 4294901760
        %1849 = vmatmul.mubr.f32.gmra.mrb[0].mxu0 %v1848
        %v1850 = vpop.f32.mrb[0].mxu0
        %v1851 = vadd.f32 0.0, %v1850
        %v1852 = vpop.f32.mrb[0].mxu0
        %1853 = vmatprep.mubr.f32.mxu0 0.0
        %v1854 = vand.u32 %v711, 4294901760
        %v1855 = vsub.f32 %v711, %v1854
        %v1856 = vand.u32 %v1855, 4294901760
        %v1857 = vsub.f32 %v1855, %v1856
        %v1858 = vand.u32 %v1857, 4294901760
        %1859 = vmatmul.mubr.f32.gmra.mrb[0].mxu0 %v1858
        %v1860 = vpop.f32.mrb[0].mxu0
        %v1861 = vadd.f32 0.0, %v1860
        %v1862 = vpop.f32.mrb[0].mxu0
        %1863 = vmatprep.mubr.f32.mxu0 0.0
        %v1864 = vand.u32 %v714, 4294901760
        %v1865 = vsub.f32 %v714, %v1864
        %v1866 = vand.u32 %v1865, 4294901760
        %v1867 = vsub.f32 %v1865, %v1866
        %v1868 = vand.u32 %v1867, 4294901760
        %1869 = vmatmul.mubr.f32.gmra.mrb[0].mxu0 %v1868
        %v1870 = vpop.f32.mrb[0].mxu0
        %v1871 = vadd.f32 0.0, %v1870
        %v1872 = vpop.f32.mrb[0].mxu0
        %1873 = vdwg.mxu0
        %1874 = vmatprep.subr.mxu0 0.0
        %v1875 = vand.u32 %v1768, 4294901760
        %v1876 = vsub.f32 %v1768, %v1875
        %v1877 = vand.u32 %v1876, 4294901760
        %v1878 = vsub.f32 %v1876, %v1877
        %v1879 = vand.u32 %v1878, 4294901760
        %1880 = vmatpush1.msra.mxu0 %v1879
        %1881 = vmatprep.subr.mxu0 0.0
        %v1882 = vand.u32 %v1774, 4294901760
        %v1883 = vsub.f32 %v1774, %v1882
        %v1884 = vand.u32 %v1883, 4294901760
        %v1885 = vsub.f32 %v1883, %v1884
        %v1886 = vand.u32 %v1885, 4294901760
        %1887 = vmatpush1.msra.mxu0 %v1886
        %1888 = vmatprep.subr.mxu0 0.0
        %1889 = vmatpush1.msra.mxu0 0.0
        %1890 = vmatprep.subr.mxu0 0.0
        %1891 = vmatpush1.msra.mxu0 0.0
        %1892 = vmatprep.subr.mxu0 0.0
        %1893 = vmatpush1.msra.mxu0 0.0
        %1894 = vmatprep.subr.mxu0 0.0
        %1895 = vmatpush1.msra.mxu0 0.0
        %1896 = vmatprep.subr.mxu0 0.0
        %1897 = vmatpush1.msra.mxu0 0.0
        %1898 = vmatprep.subr.mxu0 0.0
        %1899 = vmatpush1.msra.mxu0 0.0
        %1900 = vmatprep.subr.mxu0 0.0
        %1901 = vmatpush1.msra.mxu0 0.0
        %1902 = vmatprep.subr.mxu0 0.0
        %1903 = vmatpush1.msra.mxu0 0.0
        %1904 = vmatprep.subr.mxu0 0.0
        %1905 = vmatpush1.msra.mxu0 0.0
        %1906 = vmatprep.subr.mxu0 0.0
        %1907 = vmatpush1.msra.mxu0 0.0
        %1908 = vmatprep.subr.mxu0 0.0
        %1909 = vmatpush1.msra.mxu0 0.0
        %1910 = vmatprep.subr.mxu0 0.0
        %1911 = vmatpush1.msra.mxu0 0.0
        %1912 = vmatprep.subr.mxu0 0.0
        %1913 = vmatpush1.msra.mxu0 0.0
        %1914 = vmatprep.subr.mxu0 0.0
        %1915 = vmatpush1.msra.mxu0 0.0
        %1916 = vmatprep.subr.mxu0 0.0
        %1917 = vmatpush1.msra.mxu0 0.0
        %1918 = vmatprep.subr.mxu0 0.0
        %1919 = vmatpush1.msra.mxu0 0.0
        %1920 = vmatprep.subr.mxu0 0.0
        %1921 = vmatpush1.msra.mxu0 0.0
        %1922 = vmatprep.subr.mxu0 0.0
        %1923 = vmatpush1.msra.mxu0 0.0
        %1924 = vmatprep.subr.mxu0 0.0
        %1925 = vmatpush1.msra.mxu0 0.0
        %1926 = vmatprep.subr.mxu0 0.0
        %1927 = vmatpush1.msra.mxu0 0.0
        %1928 = vmatprep.subr.mxu0 0.0
        %1929 = vmatpush1.msra.mxu0 0.0
        %1930 = vmatprep.subr.mxu0 0.0
        %1931 = vmatpush1.msra.mxu0 0.0
        %1932 = vmatprep.subr.mxu0 0.0
        %1933 = vmatpush1.msra.mxu0 0.0
        %1934 = vmatprep.subr.mxu0 0.0
        %1935 = vmatpush1.msra.mxu0 0.0
        %1936 = vmatprep.subr.mxu0 0.0
        %1937 = vmatpush1.msra.mxu0 0.0
        %1938 = vmatprep.subr.mxu0 0.0
        %1939 = vmatpush1.msra.mxu0 0.0
        %1940 = vmatprep.subr.mxu0 0.0
        %1941 = vmatpush1.msra.mxu0 0.0
        %1942 = vmatprep.subr.mxu0 0.0
        %1943 = vmatpush1.msra.mxu0 0.0
        %1944 = vmatprep.subr.mxu0 0.0
        %1945 = vmatpush1.msra.mxu0 0.0
        %1946 = vmatprep.subr.mxu0 0.0
        %1947 = vmatpush1.msra.mxu0 0.0
        %1948 = vmatprep.mubr.f32.mxu0 0.0
        %v1949 = vand.u32 %v708, 4294901760
        %1950 = vmatmul.mubr.f32.gmra.mrb[0].mxu0 %v1949
        %v1951 = vpop.f32.mrb[0].mxu0
        %v1952 = vadd.f32 %v1851, %v1951
        %v1953 = vpop.f32.mrb[0].mxu0
        %1954 = vmatprep.mubr.f32.mxu0 0.0
        %v1955 = vand.u32 %v711, 4294901760
        %1956 = vmatmul.mubr.f32.gmra.mrb[0].mxu0 %v1955
        %v1957 = vpop.f32.mrb[0].mxu0
        %v1958 = vadd.f32 %v1861, %v1957
        %v1959 = vpop.f32.mrb[0].mxu0
        %1960 = vmatprep.mubr.f32.mxu0 0.0
        %v1961 = vand.u32 %v714, 4294901760
        %1962 = vmatmul.mubr.f32.gmra.mrb[0].mxu0 %v1961
        %v1963 = vpop.f32.mrb[0].mxu0
        %v1964 = vadd.f32 %v1871, %v1963
        %v1965 = vpop.f32.mrb[0].mxu0
        %1966 = vdwg.mxu0
        %1967 = vmatprep.subr.mxu0 0.0
        %v1968 = vand.u32 %v1768, 4294901760
        %v1969 = vsub.f32 %v1768, %v1968
        %1970 = vmatpush1.msra.mxu0 %v1969
        %1971 = vmatprep.subr.mxu0 0.0
        %v1972 = vand.u32 %v1774, 4294901760
        %v1973 = vsub.f32 %v1774, %v1972
        %1974 = vmatpush1.msra.mxu0 %v1973
        %1975 = vmatprep.subr.mxu0 0.0
        %1976 = vmatpush1.msra.mxu0 0.0
        %1977 = vmatprep.subr.mxu0 0.0
        %1978 = vmatpush1.msra.mxu0 0.0
        %1979 = vmatprep.subr.mxu0 0.0
        %1980 = vmatpush1.msra.mxu0 0.0
        %1981 = vmatprep.subr.mxu0 0.0
        %1982 = vmatpush1.msra.mxu0 0.0
        %1983 = vmatprep.subr.mxu0 0.0
        %1984 = vmatpush1.msra.mxu0 0.0
        %1985 = vmatprep.subr.mxu0 0.0
        %1986 = vmatpush1.msra.mxu0 0.0
        %1987 = vmatprep.subr.mxu0 0.0
        %1988 = vmatpush1.msra.mxu0 0.0
        %1989 = vmatprep.subr.mxu0 0.0
        %1990 = vmatpush1.msra.mxu0 0.0
        %1991 = vmatprep.subr.mxu0 0.0
        %1992 = vmatpush1.msra.mxu0 0.0
        %1993 = vmatprep.subr.mxu0 0.0
        %1994 = vmatpush1.msra.mxu0 0.0
        %1995 = vmatprep.subr.mxu0 0.0
        %1996 = vmatpush1.msra.mxu0 0.0
        %1997 = vmatprep.subr.mxu0 0.0
        %1998 = vmatpush1.msra.mxu0 0.0
        %1999 = vmatprep.subr.mxu0 0.0
        %2000 = vmatpush1.msra.mxu0 0.0
        %2001 = vmatprep.subr.mxu0 0.0
        %2002 = vmatpush1.msra.mxu0 0.0
        %2003 = vmatprep.subr.mxu0 0.0
        %2004 = vmatpush1.msra.mxu0 0.0
        %2005 = vmatprep.subr.mxu0 0.0
        %2006 = vmatpush1.msra.mxu0 0.0
        %2007 = vmatprep.subr.mxu0 0.0
        %2008 = vmatpush1.msra.mxu0 0.0
        %2009 = vmatprep.subr.mxu0 0.0
        %2010 = vmatpush1.msra.mxu0 0.0
        %2011 = vmatprep.subr.mxu0 0.0
        %2012 = vmatpush1.msra.mxu0 0.0
        %2013 = vmatprep.subr.mxu0 0.0
        %2014 = vmatpush1.msra.mxu0 0.0
        %2015 = vmatprep.subr.mxu0 0.0
        %2016 = vmatpush1.msra.mxu0 0.0
        %2017 = vmatprep.subr.mxu0 0.0
        %2018 = vmatpush1.msra.mxu0 0.0
        %2019 = vmatprep.subr.mxu0 0.0
        %2020 = vmatpush1.msra.mxu0 0.0
        %2021 = vmatprep.subr.mxu0 0.0
        %2022 = vmatpush1.msra.mxu0 0.0
        %2023 = vmatprep.subr.mxu0 0.0
        %2024 = vmatpush1.msra.mxu0 0.0
        %2025 = vmatprep.subr.mxu0 0.0
        %2026 = vmatpush1.msra.mxu0 0.0
        %2027 = vmatprep.subr.mxu0 0.0
        %2028 = vmatpush1.msra.mxu0 0.0
        %2029 = vmatprep.subr.mxu0 0.0
        %2030 = vmatpush1.msra.mxu0 0.0
        %2031 = vmatprep.subr.mxu0 0.0
        %2032 = vmatpush1.msra.mxu0 0.0
        %2033 = vmatprep.subr.mxu0 0.0
        %2034 = vmatpush1.msra.mxu0 0.0
        %2035 = vmatprep.mubr.f32.mxu0 0.0
        %v2036 = vand.u32 %v708, 4294901760
        %v2037 = vsub.f32 %v708, %v2036
        %2038 = vmatmul.mubr.f32.gmra.mrb[0].mxu0 %v2037
        %v2039 = vpop.f32.mrb[0].mxu0
        %v2040 = vadd.f32 %v1952, %v2039
        %v2041 = vpop.f32.mrb[0].mxu0
        %2042 = vmatprep.mubr.f32.mxu0 0.0
        %v2043 = vand.u32 %v711, 4294901760
        %v2044 = vsub.f32 %v711, %v2043
        %2045 = vmatmul.mubr.f32.gmra.mrb[0].mxu0 %v2044
        %v2046 = vpop.f32.mrb[0].mxu0
        %v2047 = vadd.f32 %v1958, %v2046
        %v2048 = vpop.f32.mrb[0].mxu0
        %2049 = vmatprep.mubr.f32.mxu0 0.0
        %v2050 = vand.u32 %v714, 4294901760
        %v2051 = vsub.f32 %v714, %v2050
        %2052 = vmatmul.mubr.f32.gmra.mrb[0].mxu0 %v2051
        %v2053 = vpop.f32.mrb[0].mxu0
        %v2054 = vadd.f32 %v1964, %v2053
        %v2055 = vpop.f32.mrb[0].mxu0
        %2056 = vdwg.mxu0
        %2057 = vmatprep.subr.mxu0 0.0
        %v2058 = vand.u32 %v1768, 4294901760
        %2059 = vmatpush1.msra.mxu0 %v2058
        %2060 = vmatprep.subr.mxu0 0.0
        %v2061 = vand.u32 %v1774, 4294901760
        %2062 = vmatpush1.msra.mxu0 %v2061
        %2063 = vmatprep.subr.mxu0 0.0
        %2064 = vmatpush1.msra.mxu0 0.0
        %2065 = vmatprep.subr.mxu0 0.0
        %2066 = vmatpush1.msra.mxu0 0.0
        %2067 = vmatprep.subr.mxu0 0.0
        %2068 = vmatpush1.msra.mxu0 0.0
        %2069 = vmatprep.subr.mxu0 0.0
        %2070 = vmatpush1.msra.mxu0 0.0
        %2071 = vmatprep.subr.mxu0 0.0
        %2072 = vmatpush1.msra.mxu0 0.0
        %2073 = vmatprep.subr.mxu0 0.0
        %2074 = vmatpush1.msra.mxu0 0.0
        %2075 = vmatprep.subr.mxu0 0.0
        %2076 = vmatpush1.msra.mxu0 0.0
        %2077 = vmatprep.subr.mxu0 0.0
        %2078 = vmatpush1.msra.mxu0 0.0
        %2079 = vmatprep.subr.mxu0 0.0
        %2080 = vmatpush1.msra.mxu0 0.0
        %2081 = vmatprep.subr.mxu0 0.0
        %2082 = vmatpush1.msra.mxu0 0.0
        %2083 = vmatprep.subr.mxu0 0.0
        %2084 = vmatpush1.msra.mxu0 0.0
        %2085 = vmatprep.subr.mxu0 0.0
        %2086 = vmatpush1.msra.mxu0 0.0
        %2087 = vmatprep.subr.mxu0 0.0
        %2088 = vmatpush1.msra.mxu0 0.0
        %2089 = vmatprep.subr.mxu0 0.0
        %2090 = vmatpush1.msra.mxu0 0.0
        %2091 = vmatprep.subr.mxu0 0.0
        %2092 = vmatpush1.msra.mxu0 0.0
        %2093 = vmatprep.subr.mxu0 0.0
        %2094 = vmatpush1.msra.mxu0 0.0
        %2095 = vmatprep.subr.mxu0 0.0
        %2096 = vmatpush1.msra.mxu0 0.0
        %2097 = vmatprep.subr.mxu0 0.0
        %2098 = vmatpush1.msra.mxu0 0.0
        %2099 = vmatprep.subr.mxu0 0.0
        %2100 = vmatpush1.msra.mxu0 0.0
        %2101 = vmatprep.subr.mxu0 0.0
        %2102 = vmatpush1.msra.mxu0 0.0
        %2103 = vmatprep.subr.mxu0 0.0
        %2104 = vmatpush1.msra.mxu0 0.0
        %2105 = vmatprep.subr.mxu0 0.0
        %2106 = vmatpush1.msra.mxu0 0.0
        %2107 = vmatprep.subr.mxu0 0.0
        %2108 = vmatpush1.msra.mxu0 0.0
        %2109 = vmatprep.subr.mxu0 0.0
        %2110 = vmatpush1.msra.mxu0 0.0
        %2111 = vmatprep.subr.mxu0 0.0
        %2112 = vmatpush1.msra.mxu0 0.0
        %2113 = vmatprep.subr.mxu0 0.0
        %2114 = vmatpush1.msra.mxu0 0.0
        %2115 = vmatprep.subr.mxu0 0.0
        %2116 = vmatpush1.msra.mxu0 0.0
        %2117 = vmatprep.subr.mxu0 0.0
        %2118 = vmatpush1.msra.mxu0 0.0
        %2119 = vmatprep.subr.mxu0 0.0
        %2120 = vmatpush1.msra.mxu0 0.0
        %2121 = vmatprep.subr.mxu0 0.0
        %2122 = vmatpush1.msra.mxu0 0.0
        %2123 = vmatprep.mubr.f32.mxu0 0.0
        %v2124 = vand.u32 %v708, 4294901760
        %v2125 = vsub.f32 %v708, %v2124
        %v2126 = vand.u32 %v2125, 4294901760
        %2127 = vmatmul.mubr.f32.gmra.mrb[0].mxu0 %v2126
        %v2128 = vpop.f32.mrb[0].mxu0
        %v2129 = vadd.f32 %v2040, %v2128
        %v2130 = vpop.f32.mrb[0].mxu0
        %2131 = vmatprep.mubr.f32.mxu0 0.0
        %v2132 = vand.u32 %v711, 4294901760
        %v2133 = vsub.f32 %v711, %v2132
        %v2134 = vand.u32 %v2133, 4294901760
        %2135 = vmatmul.mubr.f32.gmra.mrb[0].mxu0 %v2134
        %v2136 = vpop.f32.mrb[0].mxu0
        %v2137 = vadd.f32 %v2047, %v2136
        %v2138 = vpop.f32.mrb[0].mxu0
        %2139 = vmatprep.mubr.f32.mxu0 0.0
        %v2140 = vand.u32 %v714, 4294901760
        %v2141 = vsub.f32 %v714, %v2140
        %v2142 = vand.u32 %v2141, 4294901760
        %2143 = vmatmul.mubr.f32.gmra.mrb[0].mxu0 %v2142
        %v2144 = vpop.f32.mrb[0].mxu0
        %v2145 = vadd.f32 %v2054, %v2144
        %v2146 = vpop.f32.mrb[0].mxu0
        %2147 = vdwg.mxu0
        %2148 = vmatprep.subr.mxu0 0.0
        %v2149 = vand.u32 %v1768, 4294901760
        %v2150 = vsub.f32 %v1768, %v2149
        %v2151 = vand.u32 %v2150, 4294901760
        %2152 = vmatpush1.msra.mxu0 %v2151
        %2153 = vmatprep.subr.mxu0 0.0
        %v2154 = vand.u32 %v1774, 4294901760
        %v2155 = vsub.f32 %v1774, %v2154
        %v2156 = vand.u32 %v2155, 4294901760
        %2157 = vmatpush1.msra.mxu0 %v2156
        %2158 = vmatprep.subr.mxu0 0.0
        %2159 = vmatpush1.msra.mxu0 0.0
        %2160 = vmatprep.subr.mxu0 0.0
        %2161 = vmatpush1.msra.mxu0 0.0
        %2162 = vmatprep.subr.mxu0 0.0
        %2163 = vmatpush1.msra.mxu0 0.0
        %2164 = vmatprep.subr.mxu0 0.0
        %2165 = vmatpush1.msra.mxu0 0.0
        %2166 = vmatprep.subr.mxu0 0.0
        %2167 = vmatpush1.msra.mxu0 0.0
        %2168 = vmatprep.subr.mxu0 0.0
        %2169 = vmatpush1.msra.mxu0 0.0
        %2170 = vmatprep.subr.mxu0 0.0
        %2171 = vmatpush1.msra.mxu0 0.0
        %2172 = vmatprep.subr.mxu0 0.0
        %2173 = vmatpush1.msra.mxu0 0.0
        %2174 = vmatprep.subr.mxu0 0.0
        %2175 = vmatpush1.msra.mxu0 0.0
        %2176 = vmatprep.subr.mxu0 0.0
        %2177 = vmatpush1.msra.mxu0 0.0
        %2178 = vmatprep.subr.mxu0 0.0
        %2179 = vmatpush1.msra.mxu0 0.0
        %2180 = vmatprep.subr.mxu0 0.0
        %2181 = vmatpush1.msra.mxu0 0.0
        %2182 = vmatprep.subr.mxu0 0.0
        %2183 = vmatpush1.msra.mxu0 0.0
        %2184 = vmatprep.subr.mxu0 0.0
        %2185 = vmatpush1.msra.mxu0 0.0
        %2186 = vmatprep.subr.mxu0 0.0
        %2187 = vmatpush1.msra.mxu0 0.0
        %2188 = vmatprep.subr.mxu0 0.0
        %2189 = vmatpush1.msra.mxu0 0.0
        %2190 = vmatprep.subr.mxu0 0.0
        %2191 = vmatpush1.msra.mxu0 0.0
        %2192 = vmatprep.subr.mxu0 0.0
        %2193 = vmatpush1.msra.mxu0 0.0
        %2194 = vmatprep.subr.mxu0 0.0
        %2195 = vmatpush1.msra.mxu0 0.0
        %2196 = vmatprep.subr.mxu0 0.0
        %2197 = vmatpush1.msra.mxu0 0.0
        %2198 = vmatprep.subr.mxu0 0.0
        %2199 = vmatpush1.msra.mxu0 0.0
        %2200 = vmatprep.subr.mxu0 0.0
        %2201 = vmatpush1.msra.mxu0 0.0
        %2202 = vmatprep.subr.mxu0 0.0
        %2203 = vmatpush1.msra.mxu0 0.0
        %2204 = vmatprep.subr.mxu0 0.0
        %2205 = vmatpush1.msra.mxu0 0.0
        %2206 = vmatprep.subr.mxu0 0.0
        %2207 = vmatpush1.msra.mxu0 0.0
        %2208 = vmatprep.subr.mxu0 0.0
        %2209 = vmatpush1.msra.mxu0 0.0
        %2210 = vmatprep.subr.mxu0 0.0
        %2211 = vmatpush1.msra.mxu0 0.0
        %2212 = vmatprep.subr.mxu0 0.0
        %2213 = vmatpush1.msra.mxu0 0.0
        %2214 = vmatprep.subr.mxu0 0.0
        %2215 = vmatpush1.msra.mxu0 0.0
        %2216 = vmatprep.subr.mxu0 0.0
        %2217 = vmatpush1.msra.mxu0 0.0
        %2218 = vmatprep.mubr.f32.mxu0 0.0
        %v2219 = vand.u32 %v708, 4294901760
        %2220 = vmatmul.mubr.f32.gmra.mrb[0].mxu0 %v2219
        %v2221 = vpop.f32.mrb[0].mxu0
        %v2222 = vadd.f32 %v2129, %v2221
        %v2223 = vpop.f32.mrb[0].mxu0
        %2224 = vmatprep.mubr.f32.mxu0 0.0
        %v2225 = vand.u32 %v711, 4294901760
        %2226 = vmatmul.mubr.f32.gmra.mrb[0].mxu0 %v2225
        %v2227 = vpop.f32.mrb[0].mxu0
        %v2228 = vadd.f32 %v2137, %v2227
        %v2229 = vpop.f32.mrb[0].mxu0
        %2230 = vmatprep.mubr.f32.mxu0 0.0
        %v2231 = vand.u32 %v714, 4294901760
        %2232 = vmatmul.mubr.f32.gmra.mrb[0].mxu0 %v2231
        %v2233 = vpop.f32.mrb[0].mxu0
        %v2234 = vadd.f32 %v2145, %v2233
        %v2235 = vpop.f32.mrb[0].mxu0
        %2236 = vdwg.mxu0
        %2237 = vmatprep.subr.mxu0 0.0
        %v2238 = vand.u32 %v1768, 4294901760
        %2239 = vmatpush1.msra.mxu0 %v2238
        %2240 = vmatprep.subr.mxu0 0.0
        %v2241 = vand.u32 %v1774, 4294901760
        %2242 = vmatpush1.msra.mxu0 %v2241
        %2243 = vmatprep.subr.mxu0 0.0
        %2244 = vmatpush1.msra.mxu0 0.0
        %2245 = vmatprep.subr.mxu0 0.0
        %2246 = vmatpush1.msra.mxu0 0.0
        %2247 = vmatprep.subr.mxu0 0.0
        %2248 = vmatpush1.msra.mxu0 0.0
        %2249 = vmatprep.subr.mxu0 0.0
        %2250 = vmatpush1.msra.mxu0 0.0
        %2251 = vmatprep.subr.mxu0 0.0
        %2252 = vmatpush1.msra.mxu0 0.0
        %2253 = vmatprep.subr.mxu0 0.0
        %2254 = vmatpush1.msra.mxu0 0.0
        %2255 = vmatprep.subr.mxu0 0.0
        %2256 = vmatpush1.msra.mxu0 0.0
        %2257 = vmatprep.subr.mxu0 0.0
        %2258 = vmatpush1.msra.mxu0 0.0
        %2259 = vmatprep.subr.mxu0 0.0
        %2260 = vmatpush1.msra.mxu0 0.0
        %2261 = vmatprep.subr.mxu0 0.0
        %2262 = vmatpush1.msra.mxu0 0.0
        %2263 = vmatprep.subr.mxu0 0.0
        %2264 = vmatpush1.msra.mxu0 0.0
        %2265 = vmatprep.subr.mxu0 0.0
        %2266 = vmatpush1.msra.mxu0 0.0
        %2267 = vmatprep.subr.mxu0 0.0
        %2268 = vmatpush1.msra.mxu0 0.0
        %2269 = vmatprep.subr.mxu0 0.0
        %2270 = vmatpush1.msra.mxu0 0.0
        %2271 = vmatprep.subr.mxu0 0.0
        %2272 = vmatpush1.msra.mxu0 0.0
        %2273 = vmatprep.subr.mxu0 0.0
        %2274 = vmatpush1.msra.mxu0 0.0
        %2275 = vmatprep.subr.mxu0 0.0
        %2276 = vmatpush1.msra.mxu0 0.0
        %2277 = vmatprep.subr.mxu0 0.0
        %2278 = vmatpush1.msra.mxu0 0.0
        %2279 = vmatprep.subr.mxu0 0.0
        %2280 = vmatpush1.msra.mxu0 0.0
        %2281 = vmatprep.subr.mxu0 0.0
        %2282 = vmatpush1.msra.mxu0 0.0
        %2283 = vmatprep.subr.mxu0 0.0
        %2284 = vmatpush1.msra.mxu0 0.0
        %2285 = vmatprep.subr.mxu0 0.0
        %2286 = vmatpush1.msra.mxu0 0.0
        %2287 = vmatprep.subr.mxu0 0.0
        %2288 = vmatpush1.msra.mxu0 0.0
        %2289 = vmatprep.subr.mxu0 0.0
        %2290 = vmatpush1.msra.mxu0 0.0
        %2291 = vmatprep.subr.mxu0 0.0
        %2292 = vmatpush1.msra.mxu0 0.0
        %2293 = vmatprep.subr.mxu0 0.0
        %2294 = vmatpush1.msra.mxu0 0.0
        %2295 = vmatprep.subr.mxu0 0.0
        %2296 = vmatpush1.msra.mxu0 0.0
        %2297 = vmatprep.subr.mxu0 0.0
        %2298 = vmatpush1.msra.mxu0 0.0
        %2299 = vmatprep.subr.mxu0 0.0
        %2300 = vmatpush1.msra.mxu0 0.0
        %2301 = vmatprep.subr.mxu0 0.0
        %2302 = vmatpush1.msra.mxu0 0.0
        %2303 = vmatprep.mubr.f32.mxu0 0.0
        %v2304 = vand.u32 %v708, 4294901760
        %2305 = vmatmul.mubr.f32.gmra.mrb[0].mxu0 %v2304
        %v2306 = vpop.f32.mrb[0].mxu0
        %v2307 = vadd.f32 %v2222, %v2306
        %v2308 = vpop.f32.mrb[0].mxu0
        %2309 = vmatprep.mubr.f32.mxu0 0.0
        %v2310 = vand.u32 %v711, 4294901760
        %2311 = vmatmul.mubr.f32.gmra.mrb[0].mxu0 %v2310
        %v2312 = vpop.f32.mrb[0].mxu0
        %v2313 = vadd.f32 %v2228, %v2312
        %v2314 = vpop.f32.mrb[0].mxu0
        %2315 = vmatprep.mubr.f32.mxu0 0.0
        %v2316 = vand.u32 %v714, 4294901760
        %2317 = vmatmul.mubr.f32.gmra.mrb[0].mxu0 %v2316
        %v2318 = vpop.f32.mrb[0].mxu0
        %v2319 = vadd.f32 %v2234, %v2318
        %v2320 = vpop.f32.mrb[0].mxu0
        %2321 = vdwg.mxu0
        %s2322 = scalar_lea.vmem %s190, 24
        %2323 = vst.msk [vmem:[%s2322] sm:$0xff] %vm1261, %v2307
        %2324 = vst.msk [vmem:[%s2322 + $0x8] sm:$0xff] %vm1261, %v2313
        %2325 = vst.msk [vmem:[%s2322 + $0x10] sm:$0x1] %vm1264, %v2319
        %s2326 = scalar_lea.vmem %s163, 32 [#allocation2]
        %v2327 = vld [vmem:[%s2326] sm:$0xff]
        %v2328 = vld [vmem:[%s2326 + $0x8] sm:$0xff]
        %v2330 = vsel %vm198, %v2327, 0
        %v2333 = vsel %vm198, %v2328, 0
        %2335 = vmatprep.subr.mxu0 0.0
        %v2336 = vand.u32 %v194, 4294901760
        %2337 = vmatpush1.msra.mxu0 %v2336
        %2338 = vmatprep.subr.mxu0 0.0
        %v2339 = vand.u32 %v195, 4294901760
        %2340 = vmatpush1.msra.mxu0 %v2339
        %2341 = vmatprep.subr.mxu0 0.0
        %2342 = vmatpush1.msra.mxu0 0.0
        %2343 = vmatprep.subr.mxu0 0.0
        %2344 = vmatpush1.msra.mxu0 0.0
        %2345 = vmatprep.subr.mxu0 0.0
        %2346 = vmatpush1.msra.mxu0 0.0
        %2347 = vmatprep.subr.mxu0 0.0
        %2348 = vmatpush1.msra.mxu0 0.0
        %2349 = vmatprep.subr.mxu0 0.0
        %2350 = vmatpush1.msra.mxu0 0.0
        %2351 = vmatprep.subr.mxu0 0.0
        %2352 = vmatpush1.msra.mxu0 0.0
        %2353 = vmatprep.subr.mxu0 0.0
        %2354 = vmatpush1.msra.mxu0 0.0
        %2355 = vmatprep.subr.mxu0 0.0
        %2356 = vmatpush1.msra.mxu0 0.0
        %2357 = vmatprep.subr.mxu0 0.0
        %2358 = vmatpush1.msra.mxu0 0.0
        %2359 = vmatprep.subr.mxu0 0.0
        %2360 = vmatpush1.msra.mxu0 0.0
        %2361 = vmatprep.subr.mxu0 0.0
        %2362 = vmatpush1.msra.mxu0 0.0
        %2363 = vmatprep.subr.mxu0 0.0
        %2364 = vmatpush1.msra.mxu0 0.0
        %2365 = vmatprep.subr.mxu0 0.0
        %2366 = vmatpush1.msra.mxu0 0.0
        %2367 = vmatprep.subr.mxu0 0.0
        %2368 = vmatpush1.msra.mxu0 0.0
        %2369 = vmatprep.subr.mxu0 0.0
        %2370 = vmatpush1.msra.mxu0 0.0
        %2371 = vmatprep.subr.mxu0 0.0
        %2372 = vmatpush1.msra.mxu0 0.0
        %2373 = vmatprep.subr.mxu0 0.0
        %2374 = vmatpush1.msra.mxu0 0.0
        %2375 = vmatprep.subr.mxu0 0.0
        %2376 = vmatpush1.msra.mxu0 0.0
        %2377 = vmatprep.subr.mxu0 0.0
        %2378 = vmatpush1.msra.mxu0 0.0
        %2379 = vmatprep.subr.mxu0 0.0
        %2380 = vmatpush1.msra.mxu0 0.0
        %2381 = vmatprep.subr.mxu0 0.0
        %2382 = vmatpush1.msra.mxu0 0.0
        %2383 = vmatprep.subr.mxu0 0.0
        %2384 = vmatpush1.msra.mxu0 0.0
        %2385 = vmatprep.subr.mxu0 0.0
        %2386 = vmatpush1.msra.mxu0 0.0
        %2387 = vmatprep.subr.mxu0 0.0
        %2388 = vmatpush1.msra.mxu0 0.0
        %2389 = vmatprep.subr.mxu0 0.0
        %2390 = vmatpush1.msra.mxu0 0.0
        %2391 = vmatprep.subr.mxu0 0.0
        %2392 = vmatpush1.msra.mxu0 0.0
        %2393 = vmatprep.subr.mxu0 0.0
        %2394 = vmatpush1.msra.mxu0 0.0
        %2395 = vmatprep.subr.mxu0 0.0
        %2396 = vmatpush1.msra.mxu0 0.0
        %2397 = vmatprep.subr.mxu0 0.0
        %2398 = vmatpush1.msra.mxu0 0.0
        %2399 = vmatprep.subr.mxu0 0.0
        %2400 = vmatpush1.msra.mxu0 0.0
        %2401 = vmatprep.mubr.f32.mxu0 0.0
        %v2402 = vand.u32 %v2330, 4294901760
        %v2403 = vsub.f32 %v2330, %v2402
        %v2404 = vand.u32 %v2403, 4294901760
        %v2405 = vsub.f32 %v2403, %v2404
        %v2406 = vand.u32 %v2405, 4294901760
        %2407 = vmatmul.mubr.f32.gmra.mrb[0].mxu0 %v2406
        %v2408 = vpop.f32.mrb[0].mxu0
        %v2409 = vadd.f32 0.0, %v2408
        %v2410 = vpop.f32.mrb[0].mxu0
        %2411 = vmatprep.mubr.f32.mxu0 0.0
        %v2412 = vand.u32 %v2333, 4294901760
        %v2413 = vsub.f32 %v2333, %v2412
        %v2414 = vand.u32 %v2413, 4294901760
        %v2415 = vsub.f32 %v2413, %v2414
        %v2416 = vand.u32 %v2415, 4294901760
        %2417 = vmatmul.mubr.f32.gmra.mrb[0].mxu0 %v2416
        %v2418 = vpop.f32.mrb[0].mxu0
        %v2419 = vadd.f32 0.0, %v2418
        %v2420 = vpop.f32.mrb[0].mxu0
        %2421 = vdwg.mxu0
        %2422 = vmatprep.subr.mxu0 0.0
        %v2423 = vand.u32 %v194, 4294901760
        %v2424 = vsub.f32 %v194, %v2423
        %v2425 = vand.u32 %v2424, 4294901760
        %v2426 = vsub.f32 %v2424, %v2425
        %v2427 = vand.u32 %v2426, 4294901760
        %2428 = vmatpush1.msra.mxu0 %v2427
        %2429 = vmatprep.subr.mxu0 0.0
        %v2430 = vand.u32 %v195, 4294901760
        %v2431 = vsub.f32 %v195, %v2430
        %v2432 = vand.u32 %v2431, 4294901760
        %v2433 = vsub.f32 %v2431, %v2432
        %v2434 = vand.u32 %v2433, 4294901760
        %2435 = vmatpush1.msra.mxu0 %v2434
        %2436 = vmatprep.subr.mxu0 0.0
        %2437 = vmatpush1.msra.mxu0 0.0
        %2438 = vmatprep.subr.mxu0 0.0
        %2439 = vmatpush1.msra.mxu0 0.0
        %2440 = vmatprep.subr.mxu0 0.0
        %2441 = vmatpush1.msra.mxu0 0.0
        %2442 = vmatprep.subr.mxu0 0.0
        %2443 = vmatpush1.msra.mxu0 0.0
        %2444 = vmatprep.subr.mxu0 0.0
        %2445 = vmatpush1.msra.mxu0 0.0
        %2446 = vmatprep.subr.mxu0 0.0
        %2447 = vmatpush1.msra.mxu0 0.0
        %2448 = vmatprep.subr.mxu0 0.0
        %2449 = vmatpush1.msra.mxu0 0.0
        %2450 = vmatprep.subr.mxu0 0.0
        %2451 = vmatpush1.msra.mxu0 0.0
        %2452 = vmatprep.subr.mxu0 0.0
        %2453 = vmatpush1.msra.mxu0 0.0
        %2454 = vmatprep.subr.mxu0 0.0
        %2455 = vmatpush1.msra.mxu0 0.0
        %2456 = vmatprep.subr.mxu0 0.0
        %2457 = vmatpush1.msra.mxu0 0.0
        %2458 = vmatprep.subr.mxu0 0.0
        %2459 = vmatpush1.msra.mxu0 0.0
        %2460 = vmatprep.subr.mxu0 0.0
        %2461 = vmatpush1.msra.mxu0 0.0
        %2462 = vmatprep.subr.mxu0 0.0
        %2463 = vmatpush1.msra.mxu0 0.0
        %2464 = vmatprep.subr.mxu0 0.0
        %2465 = vmatpush1.msra.mxu0 0.0
        %2466 = vmatprep.subr.mxu0 0.0
        %2467 = vmatpush1.msra.mxu0 0.0
        %2468 = vmatprep.subr.mxu0 0.0
        %2469 = vmatpush1.msra.mxu0 0.0
        %2470 = vmatprep.subr.mxu0 0.0
        %2471 = vmatpush1.msra.mxu0 0.0
        %2472 = vmatprep.subr.mxu0 0.0
        %2473 = vmatpush1.msra.mxu0 0.0
        %2474 = vmatprep.subr.mxu0 0.0
        %2475 = vmatpush1.msra.mxu0 0.0
        %2476 = vmatprep.subr.mxu0 0.0
        %2477 = vmatpush1.msra.mxu0 0.0
        %2478 = vmatprep.subr.mxu0 0.0
        %2479 = vmatpush1.msra.mxu0 0.0
        %2480 = vmatprep.subr.mxu0 0.0
        %2481 = vmatpush1.msra.mxu0 0.0
        %2482 = vmatprep.subr.mxu0 0.0
        %2483 = vmatpush1.msra.mxu0 0.0
        %2484 = vmatprep.subr.mxu0 0.0
        %2485 = vmatpush1.msra.mxu0 0.0
        %2486 = vmatprep.subr.mxu0 0.0
        %2487 = vmatpush1.msra.mxu0 0.0
        %2488 = vmatprep.subr.mxu0 0.0
        %2489 = vmatpush1.msra.mxu0 0.0
        %2490 = vmatprep.subr.mxu0 0.0
        %2491 = vmatpush1.msra.mxu0 0.0
        %2492 = vmatprep.subr.mxu0 0.0
        %2493 = vmatpush1.msra.mxu0 0.0
        %2494 = vmatprep.subr.mxu0 0.0
        %2495 = vmatpush1.msra.mxu0 0.0
        %2496 = vmatprep.mubr.f32.mxu0 0.0
        %v2497 = vand.u32 %v2330, 4294901760
        %2498 = vmatmul.mubr.f32.gmra.mrb[0].mxu0 %v2497
        %v2499 = vpop.f32.mrb[0].mxu0
        %v2500 = vadd.f32 %v2409, %v2499
        %v2501 = vpop.f32.mrb[0].mxu0
        %2502 = vmatprep.mubr.f32.mxu0 0.0
        %v2503 = vand.u32 %v2333, 4294901760
        %2504 = vmatmul.mubr.f32.gmra.mrb[0].mxu0 %v2503
        %v2505 = vpop.f32.mrb[0].mxu0
        %v2506 = vadd.f32 %v2419, %v2505
        %v2507 = vpop.f32.mrb[0].mxu0
        %2508 = vdwg.mxu0
        %2509 = vmatprep.subr.mxu0 0.0
        %v2510 = vand.u32 %v194, 4294901760
        %v2511 = vsub.f32 %v194, %v2510
        %2512 = vmatpush1.msra.mxu0 %v2511
        %2513 = vmatprep.subr.mxu0 0.0
        %v2514 = vand.u32 %v195, 4294901760
        %v2515 = vsub.f32 %v195, %v2514
        %2516 = vmatpush1.msra.mxu0 %v2515
        %2517 = vmatprep.subr.mxu0 0.0
        %2518 = vmatpush1.msra.mxu0 0.0
        %2519 = vmatprep.subr.mxu0 0.0
        %2520 = vmatpush1.msra.mxu0 0.0
        %2521 = vmatprep.subr.mxu0 0.0
        %2522 = vmatpush1.msra.mxu0 0.0
        %2523 = vmatprep.subr.mxu0 0.0
        %2524 = vmatpush1.msra.mxu0 0.0
        %2525 = vmatprep.subr.mxu0 0.0
        %2526 = vmatpush1.msra.mxu0 0.0
        %2527 = vmatprep.subr.mxu0 0.0
        %2528 = vmatpush1.msra.mxu0 0.0
        %2529 = vmatprep.subr.mxu0 0.0
        %2530 = vmatpush1.msra.mxu0 0.0
        %2531 = vmatprep.subr.mxu0 0.0
        %2532 = vmatpush1.msra.mxu0 0.0
        %2533 = vmatprep.subr.mxu0 0.0
        %2534 = vmatpush1.msra.mxu0 0.0
        %2535 = vmatprep.subr.mxu0 0.0
        %2536 = vmatpush1.msra.mxu0 0.0
        %2537 = vmatprep.subr.mxu0 0.0
        %2538 = vmatpush1.msra.mxu0 0.0
        %2539 = vmatprep.subr.mxu0 0.0
        %2540 = vmatpush1.msra.mxu0 0.0
        %2541 = vmatprep.subr.mxu0 0.0
        %2542 = vmatpush1.msra.mxu0 0.0
        %2543 = vmatprep.subr.mxu0 0.0
        %2544 = vmatpush1.msra.mxu0 0.0
        %2545 = vmatprep.subr.mxu0 0.0
        %2546 = vmatpush1.msra.mxu0 0.0
        %2547 = vmatprep.subr.mxu0 0.0
        %2548 = vmatpush1.msra.mxu0 0.0
        %2549 = vmatprep.subr.mxu0 0.0
        %2550 = vmatpush1.msra.mxu0 0.0
        %2551 = vmatprep.subr.mxu0 0.0
        %2552 = vmatpush1.msra.mxu0 0.0
        %2553 = vmatprep.subr.mxu0 0.0
        %2554 = vmatpush1.msra.mxu0 0.0
        %2555 = vmatprep.subr.mxu0 0.0
        %2556 = vmatpush1.msra.mxu0 0.0
        %2557 = vmatprep.subr.mxu0 0.0
        %2558 = vmatpush1.msra.mxu0 0.0
        %2559 = vmatprep.subr.mxu0 0.0
        %2560 = vmatpush1.msra.mxu0 0.0
        %2561 = vmatprep.subr.mxu0 0.0
        %2562 = vmatpush1.msra.mxu0 0.0
        %2563 = vmatprep.subr.mxu0 0.0
        %2564 = vmatpush1.msra.mxu0 0.0
        %2565 = vmatprep.subr.mxu0 0.0
        %2566 = vmatpush1.msra.mxu0 0.0
        %2567 = vmatprep.subr.mxu0 0.0
        %2568 = vmatpush1.msra.mxu0 0.0
        %2569 = vmatprep.subr.mxu0 0.0
        %2570 = vmatpush1.msra.mxu0 0.0
        %2571 = vmatprep.subr.mxu0 0.0
        %2572 = vmatpush1.msra.mxu0 0.0
        %2573 = vmatprep.subr.mxu0 0.0
        %2574 = vmatpush1.msra.mxu0 0.0
        %2575 = vmatprep.subr.mxu0 0.0
        %2576 = vmatpush1.msra.mxu0 0.0
        %2577 = vmatprep.mubr.f32.mxu0 0.0
        %v2578 = vand.u32 %v2330, 4294901760
        %v2579 = vsub.f32 %v2330, %v2578
        %2580 = vmatmul.mubr.f32.gmra.mrb[0].mxu0 %v2579
        %v2581 = vpop.f32.mrb[0].mxu0
        %v2582 = vadd.f32 %v2500, %v2581
        %v2583 = vpop.f32.mrb[0].mxu0
        %2584 = vmatprep.mubr.f32.mxu0 0.0
        %v2585 = vand.u32 %v2333, 4294901760
        %v2586 = vsub.f32 %v2333, %v2585
        %2587 = vmatmul.mubr.f32.gmra.mrb[0].mxu0 %v2586
        %v2588 = vpop.f32.mrb[0].mxu0
        %v2589 = vadd.f32 %v2506, %v2588
        %v2590 = vpop.f32.mrb[0].mxu0
        %2591 = vdwg.mxu0
        %2592 = vmatprep.subr.mxu0 0.0
        %v2593 = vand.u32 %v194, 4294901760
        %2594 = vmatpush1.msra.mxu0 %v2593
        %2595 = vmatprep.subr.mxu0 0.0
        %v2596 = vand.u32 %v195, 4294901760
        %2597 = vmatpush1.msra.mxu0 %v2596
        %2598 = vmatprep.subr.mxu0 0.0
        %2599 = vmatpush1.msra.mxu0 0.0
        %2600 = vmatprep.subr.mxu0 0.0
        %2601 = vmatpush1.msra.mxu0 0.0
        %2602 = vmatprep.subr.mxu0 0.0
        %2603 = vmatpush1.msra.mxu0 0.0
        %2604 = vmatprep.subr.mxu0 0.0
        %2605 = vmatpush1.msra.mxu0 0.0
        %2606 = vmatprep.subr.mxu0 0.0
        %2607 = vmatpush1.msra.mxu0 0.0
        %2608 = vmatprep.subr.mxu0 0.0
        %2609 = vmatpush1.msra.mxu0 0.0
        %2610 = vmatprep.subr.mxu0 0.0
        %2611 = vmatpush1.msra.mxu0 0.0
        %2612 = vmatprep.subr.mxu0 0.0
        %2613 = vmatpush1.msra.mxu0 0.0
        %2614 = vmatprep.subr.mxu0 0.0
        %2615 = vmatpush1.msra.mxu0 0.0
        %2616 = vmatprep.subr.mxu0 0.0
        %2617 = vmatpush1.msra.mxu0 0.0
        %2618 = vmatprep.subr.mxu0 0.0
        %2619 = vmatpush1.msra.mxu0 0.0
        %2620 = vmatprep.subr.mxu0 0.0
        %2621 = vmatpush1.msra.mxu0 0.0
        %2622 = vmatprep.subr.mxu0 0.0
        %2623 = vmatpush1.msra.mxu0 0.0
        %2624 = vmatprep.subr.mxu0 0.0
        %2625 = vmatpush1.msra.mxu0 0.0
        %2626 = vmatprep.subr.mxu0 0.0
        %2627 = vmatpush1.msra.mxu0 0.0
        %2628 = vmatprep.subr.mxu0 0.0
        %2629 = vmatpush1.msra.mxu0 0.0
        %2630 = vmatprep.subr.mxu0 0.0
        %2631 = vmatpush1.msra.mxu0 0.0
        %2632 = vmatprep.subr.mxu0 0.0
        %2633 = vmatpush1.msra.mxu0 0.0
        %2634 = vmatprep.subr.mxu0 0.0
        %2635 = vmatpush1.msra.mxu0 0.0
        %2636 = vmatprep.subr.mxu0 0.0
        %2637 = vmatpush1.msra.mxu0 0.0
        %2638 = vmatprep.subr.mxu0 0.0
        %2639 = vmatpush1.msra.mxu0 0.0
        %2640 = vmatprep.subr.mxu0 0.0
        %2641 = vmatpush1.msra.mxu0 0.0
        %2642 = vmatprep.subr.mxu0 0.0
        %2643 = vmatpush1.msra.mxu0 0.0
        %2644 = vmatprep.subr.mxu0 0.0
        %2645 = vmatpush1.msra.mxu0 0.0
        %2646 = vmatprep.subr.mxu0 0.0
        %2647 = vmatpush1.msra.mxu0 0.0
        %2648 = vmatprep.subr.mxu0 0.0
        %2649 = vmatpush1.msra.mxu0 0.0
        %2650 = vmatprep.subr.mxu0 0.0
        %2651 = vmatpush1.msra.mxu0 0.0
        %2652 = vmatprep.subr.mxu0 0.0
        %2653 = vmatpush1.msra.mxu0 0.0
        %2654 = vmatprep.subr.mxu0 0.0
        %2655 = vmatpush1.msra.mxu0 0.0
        %2656 = vmatprep.subr.mxu0 0.0
        %2657 = vmatpush1.msra.mxu0 0.0
        %2658 = vmatprep.mubr.f32.mxu0 0.0
        %v2659 = vand.u32 %v2330, 4294901760
        %v2660 = vsub.f32 %v2330, %v2659
        %v2661 = vand.u32 %v2660, 4294901760
        %2662 = vmatmul.mubr.f32.gmra.mrb[0].mxu0 %v2661
        %v2663 = vpop.f32.mrb[0].mxu0
        %v2664 = vadd.f32 %v2582, %v2663
        %v2665 = vpop.f32.mrb[0].mxu0
        %2666 = vmatprep.mubr.f32.mxu0 0.0
        %v2667 = vand.u32 %v2333, 4294901760
        %v2668 = vsub.f32 %v2333, %v2667
        %v2669 = vand.u32 %v2668, 4294901760
        %2670 = vmatmul.mubr.f32.gmra.mrb[0].mxu0 %v2669
        %v2671 = vpop.f32.mrb[0].mxu0
        %v2672 = vadd.f32 %v2589, %v2671
        %v2673 = vpop.f32.mrb[0].mxu0
        %2674 = vdwg.mxu0
        %2675 = vmatprep.subr.mxu0 0.0
        %v2676 = vand.u32 %v194, 4294901760
        %v2677 = vsub.f32 %v194, %v2676
        %v2678 = vand.u32 %v2677, 4294901760
        %2679 = vmatpush1.msra.mxu0 %v2678
        %2680 = vmatprep.subr.mxu0 0.0
        %v2681 = vand.u32 %v195, 4294901760
        %v2682 = vsub.f32 %v195, %v2681
        %v2683 = vand.u32 %v2682, 4294901760
        %2684 = vmatpush1.msra.mxu0 %v2683
        %2685 = vmatprep.subr.mxu0 0.0
        %2686 = vmatpush1.msra.mxu0 0.0
        %2687 = vmatprep.subr.mxu0 0.0
        %2688 = vmatpush1.msra.mxu0 0.0
        %2689 = vmatprep.subr.mxu0 0.0
        %2690 = vmatpush1.msra.mxu0 0.0
        %2691 = vmatprep.subr.mxu0 0.0
        %2692 = vmatpush1.msra.mxu0 0.0
        %2693 = vmatprep.subr.mxu0 0.0
        %2694 = vmatpush1.msra.mxu0 0.0
        %2695 = vmatprep.subr.mxu0 0.0
        %2696 = vmatpush1.msra.mxu0 0.0
        %2697 = vmatprep.subr.mxu0 0.0
        %2698 = vmatpush1.msra.mxu0 0.0
        %2699 = vmatprep.subr.mxu0 0.0
        %2700 = vmatpush1.msra.mxu0 0.0
        %2701 = vmatprep.subr.mxu0 0.0
        %2702 = vmatpush1.msra.mxu0 0.0
        %2703 = vmatprep.subr.mxu0 0.0
        %2704 = vmatpush1.msra.mxu0 0.0
        %2705 = vmatprep.subr.mxu0 0.0
        %2706 = vmatpush1.msra.mxu0 0.0
        %2707 = vmatprep.subr.mxu0 0.0
        %2708 = vmatpush1.msra.mxu0 0.0
        %2709 = vmatprep.subr.mxu0 0.0
        %2710 = vmatpush1.msra.mxu0 0.0
        %2711 = vmatprep.subr.mxu0 0.0
        %2712 = vmatpush1.msra.mxu0 0.0
        %2713 = vmatprep.subr.mxu0 0.0
        %2714 = vmatpush1.msra.mxu0 0.0
        %2715 = vmatprep.subr.mxu0 0.0
        %2716 = vmatpush1.msra.mxu0 0.0
        %2717 = vmatprep.subr.mxu0 0.0
        %2718 = vmatpush1.msra.mxu0 0.0
        %2719 = vmatprep.subr.mxu0 0.0
        %2720 = vmatpush1.msra.mxu0 0.0
        %2721 = vmatprep.subr.mxu0 0.0
        %2722 = vmatpush1.msra.mxu0 0.0
        %2723 = vmatprep.subr.mxu0 0.0
        %2724 = vmatpush1.msra.mxu0 0.0
        %2725 = vmatprep.subr.mxu0 0.0
        %2726 = vmatpush1.msra.mxu0 0.0
        %2727 = vmatprep.subr.mxu0 0.0
        %2728 = vmatpush1.msra.mxu0 0.0
        %2729 = vmatprep.subr.mxu0 0.0
        %2730 = vmatpush1.msra.mxu0 0.0
        %2731 = vmatprep.subr.mxu0 0.0
        %2732 = vmatpush1.msra.mxu0 0.0
        %2733 = vmatprep.subr.mxu0 0.0
        %2734 = vmatpush1.msra.mxu0 0.0
        %2735 = vmatprep.subr.mxu0 0.0
        %2736 = vmatpush1.msra.mxu0 0.0
        %2737 = vmatprep.subr.mxu0 0.0
        %2738 = vmatpush1.msra.mxu0 0.0
        %2739 = vmatprep.subr.mxu0 0.0
        %2740 = vmatpush1.msra.mxu0 0.0
        %2741 = vmatprep.subr.mxu0 0.0
        %2742 = vmatpush1.msra.mxu0 0.0
        %2743 = vmatprep.subr.mxu0 0.0
        %2744 = vmatpush1.msra.mxu0 0.0
        %2745 = vmatprep.mubr.f32.mxu0 0.0
        %v2746 = vand.u32 %v2330, 4294901760
        %2747 = vmatmul.mubr.f32.gmra.mrb[0].mxu0 %v2746
        %v2748 = vpop.f32.mrb[0].mxu0
        %v2749 = vadd.f32 %v2664, %v2748
        %v2750 = vpop.f32.mrb[0].mxu0
        %2751 = vmatprep.mubr.f32.mxu0 0.0
        %v2752 = vand.u32 %v2333, 4294901760
        %2753 = vmatmul.mubr.f32.gmra.mrb[0].mxu0 %v2752
        %v2754 = vpop.f32.mrb[0].mxu0
        %v2755 = vadd.f32 %v2672, %v2754
        %v2756 = vpop.f32.mrb[0].mxu0
        %2757 = vdwg.mxu0
        %2758 = vmatprep.subr.mxu0 0.0
        %v2759 = vand.u32 %v194, 4294901760
        %2760 = vmatpush1.msra.mxu0 %v2759
        %2761 = vmatprep.subr.mxu0 0.0
        %v2762 = vand.u32 %v195, 4294901760
        %2763 = vmatpush1.msra.mxu0 %v2762
        %2764 = vmatprep.subr.mxu0 0.0
        %2765 = vmatpush1.msra.mxu0 0.0
        %2766 = vmatprep.subr.mxu0 0.0
        %2767 = vmatpush1.msra.mxu0 0.0
        %2768 = vmatprep.subr.mxu0 0.0
        %2769 = vmatpush1.msra.mxu0 0.0
        %2770 = vmatprep.subr.mxu0 0.0
        %2771 = vmatpush1.msra.mxu0 0.0
        %2772 = vmatprep.subr.mxu0 0.0
        %2773 = vmatpush1.msra.mxu0 0.0
        %2774 = vmatprep.subr.mxu0 0.0
        %2775 = vmatpush1.msra.mxu0 0.0
        %2776 = vmatprep.subr.mxu0 0.0
        %2777 = vmatpush1.msra.mxu0 0.0
        %2778 = vmatprep.subr.mxu0 0.0
        %2779 = vmatpush1.msra.mxu0 0.0
        %2780 = vmatprep.subr.mxu0 0.0
        %2781 = vmatpush1.msra.mxu0 0.0
        %2782 = vmatprep.subr.mxu0 0.0
        %2783 = vmatpush1.msra.mxu0 0.0
        %2784 = vmatprep.subr.mxu0 0.0
        %2785 = vmatpush1.msra.mxu0 0.0
        %2786 = vmatprep.subr.mxu0 0.0
        %2787 = vmatpush1.msra.mxu0 0.0
        %2788 = vmatprep.subr.mxu0 0.0
        %2789 = vmatpush1.msra.mxu0 0.0
        %2790 = vmatprep.subr.mxu0 0.0
        %2791 = vmatpush1.msra.mxu0 0.0
        %2792 = vmatprep.subr.mxu0 0.0
        %2793 = vmatpush1.msra.mxu0 0.0
        %2794 = vmatprep.subr.mxu0 0.0
        %2795 = vmatpush1.msra.mxu0 0.0
        %2796 = vmatprep.subr.mxu0 0.0
        %2797 = vmatpush1.msra.mxu0 0.0
        %2798 = vmatprep.subr.mxu0 0.0
        %2799 = vmatpush1.msra.mxu0 0.0
        %2800 = vmatprep.subr.mxu0 0.0
        %2801 = vmatpush1.msra.mxu0 0.0
        %2802 = vmatprep.subr.mxu0 0.0
        %2803 = vmatpush1.msra.mxu0 0.0
        %2804 = vmatprep.subr.mxu0 0.0
        %2805 = vmatpush1.msra.mxu0 0.0
        %2806 = vmatprep.subr.mxu0 0.0
        %2807 = vmatpush1.msra.mxu0 0.0
        %2808 = vmatprep.subr.mxu0 0.0
        %2809 = vmatpush1.msra.mxu0 0.0
        %2810 = vmatprep.subr.mxu0 0.0
        %2811 = vmatpush1.msra.mxu0 0.0
        %2812 = vmatprep.subr.mxu0 0.0
        %2813 = vmatpush1.msra.mxu0 0.0
        %2814 = vmatprep.subr.mxu0 0.0
        %2815 = vmatpush1.msra.mxu0 0.0
        %2816 = vmatprep.subr.mxu0 0.0
        %2817 = vmatpush1.msra.mxu0 0.0
        %2818 = vmatprep.subr.mxu0 0.0
        %2819 = vmatpush1.msra.mxu0 0.0
        %2820 = vmatprep.subr.mxu0 0.0
        %2821 = vmatpush1.msra.mxu0 0.0
        %2822 = vmatprep.subr.mxu0 0.0
        %2823 = vmatpush1.msra.mxu0 0.0
        %2824 = vmatprep.mubr.f32.mxu0 0.0
        %v2825 = vand.u32 %v2330, 4294901760
        %2826 = vmatmul.mubr.f32.gmra.mrb[0].mxu0 %v2825
        %v2827 = vpop.f32.mrb[0].mxu0
        %v2828 = vadd.f32 %v2749, %v2827
        %v2829 = vpop.f32.mrb[0].mxu0
        %2830 = vmatprep.mubr.f32.mxu0 0.0
        %v2831 = vand.u32 %v2333, 4294901760
        %2832 = vmatmul.mubr.f32.gmra.mrb[0].mxu0 %v2831
        %v2833 = vpop.f32.mrb[0].mxu0
        %v2834 = vadd.f32 %v2755, %v2833
        %v2835 = vpop.f32.mrb[0].mxu0
        %2836 = vdwg.mxu0
        %2837 = vmatprep.subr.mxu0 0.0
        %v2838 = vand.u32 %v2828, 4294901760
        %2839 = vmatpush1.msra.mxu0 %v2838
        %2840 = vmatprep.subr.mxu0 0.0
        %v2841 = vand.u32 %v2834, 4294901760
        %2842 = vmatpush1.msra.mxu0 %v2841
        %2843 = vmatprep.subr.mxu0 0.0
        %2844 = vmatpush1.msra.mxu0 0.0
        %2845 = vmatprep.subr.mxu0 0.0
        %2846 = vmatpush1.msra.mxu0 0.0
        %2847 = vmatprep.subr.mxu0 0.0
        %2848 = vmatpush1.msra.mxu0 0.0
        %2849 = vmatprep.subr.mxu0 0.0
        %2850 = vmatpush1.msra.mxu0 0.0
        %2851 = vmatprep.subr.mxu0 0.0
        %2852 = vmatpush1.msra.mxu0 0.0
        %2853 = vmatprep.subr.mxu0 0.0
        %2854 = vmatpush1.msra.mxu0 0.0
        %2855 = vmatprep.subr.mxu0 0.0
        %2856 = vmatpush1.msra.mxu0 0.0
        %2857 = vmatprep.subr.mxu0 0.0
        %2858 = vmatpush1.msra.mxu0 0.0
        %2859 = vmatprep.subr.mxu0 0.0
        %2860 = vmatpush1.msra.mxu0 0.0
        %2861 = vmatprep.subr.mxu0 0.0
        %2862 = vmatpush1.msra.mxu0 0.0
        %2863 = vmatprep.subr.mxu0 0.0
        %2864 = vmatpush1.msra.mxu0 0.0
        %2865 = vmatprep.subr.mxu0 0.0
        %2866 = vmatpush1.msra.mxu0 0.0
        %2867 = vmatprep.subr.mxu0 0.0
        %2868 = vmatpush1.msra.mxu0 0.0
        %2869 = vmatprep.subr.mxu0 0.0
        %2870 = vmatpush1.msra.mxu0 0.0
        %2871 = vmatprep.subr.mxu0 0.0
        %2872 = vmatpush1.msra.mxu0 0.0
        %2873 = vmatprep.subr.mxu0 0.0
        %2874 = vmatpush1.msra.mxu0 0.0
        %2875 = vmatprep.subr.mxu0 0.0
        %2876 = vmatpush1.msra.mxu0 0.0
        %2877 = vmatprep.subr.mxu0 0.0
        %2878 = vmatpush1.msra.mxu0 0.0
        %2879 = vmatprep.subr.mxu0 0.0
        %2880 = vmatpush1.msra.mxu0 0.0
        %2881 = vmatprep.subr.mxu0 0.0
        %2882 = vmatpush1.msra.mxu0 0.0
        %2883 = vmatprep.subr.mxu0 0.0
        %2884 = vmatpush1.msra.mxu0 0.0
        %2885 = vmatprep.subr.mxu0 0.0
        %2886 = vmatpush1.msra.mxu0 0.0
        %2887 = vmatprep.subr.mxu0 0.0
        %2888 = vmatpush1.msra.mxu0 0.0
        %2889 = vmatprep.subr.mxu0 0.0
        %2890 = vmatpush1.msra.mxu0 0.0
        %2891 = vmatprep.subr.mxu0 0.0
        %2892 = vmatpush1.msra.mxu0 0.0
        %2893 = vmatprep.subr.mxu0 0.0
        %2894 = vmatpush1.msra.mxu0 0.0
        %2895 = vmatprep.subr.mxu0 0.0
        %2896 = vmatpush1.msra.mxu0 0.0
        %2897 = vmatprep.subr.mxu0 0.0
        %2898 = vmatpush1.msra.mxu0 0.0
        %2899 = vmatprep.subr.mxu0 0.0
        %2900 = vmatpush1.msra.mxu0 0.0
        %2901 = vmatprep.subr.mxu0 0.0
        %2902 = vmatpush1.msra.mxu0 0.0
        %2903 = vmatprep.mubr.f32.mxu0 0.0
        %v2904 = vand.u32 %v708, 4294901760
        %v2905 = vsub.f32 %v708, %v2904
        %v2906 = vand.u32 %v2905, 4294901760
        %v2907 = vsub.f32 %v2905, %v2906
        %v2908 = vand.u32 %v2907, 4294901760
        %2909 = vmatmul.mubr.f32.gmra.mrb[0].mxu0 %v2908
        %v2910 = vpop.f32.mrb[0].mxu0
        %v2911 = vadd.f32 0.0, %v2910
        %v2912 = vpop.f32.mrb[0].mxu0
        %2913 = vmatprep.mubr.f32.mxu0 0.0
        %v2914 = vand.u32 %v711, 4294901760
        %v2915 = vsub.f32 %v711, %v2914
        %v2916 = vand.u32 %v2915, 4294901760
        %v2917 = vsub.f32 %v2915, %v2916
        %v2918 = vand.u32 %v2917, 4294901760
        %2919 = vmatmul.mubr.f32.gmra.mrb[0].mxu0 %v2918
        %v2920 = vpop.f32.mrb[0].mxu0
        %v2921 = vadd.f32 0.0, %v2920
        %v2922 = vpop.f32.mrb[0].mxu0
        %2923 = vmatprep.mubr.f32.mxu0 0.0
        %v2924 = vand.u32 %v714, 4294901760
        %v2925 = vsub.f32 %v714, %v2924
        %v2926 = vand.u32 %v2925, 4294901760
        %v2927 = vsub.f32 %v2925, %v2926
        %v2928 = vand.u32 %v2927, 4294901760
        %2929 = vmatmul.mubr.f32.gmra.mrb[0].mxu0 %v2928
        %v2930 = vpop.f32.mrb[0].mxu0
        %v2931 = vadd.f32 0.0, %v2930
        %v2932 = vpop.f32.mrb[0].mxu0
        %2933 = vdwg.mxu0
        %2934 = vmatprep.subr.mxu0 0.0
        %v2935 = vand.u32 %v2828, 4294901760
        %v2936 = vsub.f32 %v2828, %v2935
        %v2937 = vand.u32 %v2936, 4294901760
        %v2938 = vsub.f32 %v2936, %v2937
        %v2939 = vand.u32 %v2938, 4294901760
        %2940 = vmatpush1.msra.mxu0 %v2939
        %2941 = vmatprep.subr.mxu0 0.0
        %v2942 = vand.u32 %v2834, 4294901760
        %v2943 = vsub.f32 %v2834, %v2942
        %v2944 = vand.u32 %v2943, 4294901760
        %v2945 = vsub.f32 %v2943, %v2944
        %v2946 = vand.u32 %v2945, 4294901760
        %2947 = vmatpush1.msra.mxu0 %v2946
        %2948 = vmatprep.subr.mxu0 0.0
        %2949 = vmatpush1.msra.mxu0 0.0
        %2950 = vmatprep.subr.mxu0 0.0
        %2951 = vmatpush1.msra.mxu0 0.0
        %2952 = vmatprep.subr.mxu0 0.0
        %2953 = vmatpush1.msra.mxu0 0.0
        %2954 = vmatprep.subr.mxu0 0.0
        %2955 = vmatpush1.msra.mxu0 0.0
        %2956 = vmatprep.subr.mxu0 0.0
        %2957 = vmatpush1.msra.mxu0 0.0
        %2958 = vmatprep.subr.mxu0 0.0
        %2959 = vmatpush1.msra.mxu0 0.0
        %2960 = vmatprep.subr.mxu0 0.0
        %2961 = vmatpush1.msra.mxu0 0.0
        %2962 = vmatprep.subr.mxu0 0.0
        %2963 = vmatpush1.msra.mxu0 0.0
        %2964 = vmatprep.subr.mxu0 0.0
        %2965 = vmatpush1.msra.mxu0 0.0
        %2966 = vmatprep.subr.mxu0 0.0
        %2967 = vmatpush1.msra.mxu0 0.0
        %2968 = vmatprep.subr.mxu0 0.0
        %2969 = vmatpush1.msra.mxu0 0.0
        %2970 = vmatprep.subr.mxu0 0.0
        %2971 = vmatpush1.msra.mxu0 0.0
        %2972 = vmatprep.subr.mxu0 0.0
        %2973 = vmatpush1.msra.mxu0 0.0
        %2974 = vmatprep.subr.mxu0 0.0
        %2975 = vmatpush1.msra.mxu0 0.0
        %2976 = vmatprep.subr.mxu0 0.0
        %2977 = vmatpush1.msra.mxu0 0.0
        %2978 = vmatprep.subr.mxu0 0.0
        %2979 = vmatpush1.msra.mxu0 0.0
        %2980 = vmatprep.subr.mxu0 0.0
        %2981 = vmatpush1.msra.mxu0 0.0
        %2982 = vmatprep.subr.mxu0 0.0
        %2983 = vmatpush1.msra.mxu0 0.0
        %2984 = vmatprep.subr.mxu0 0.0
        %2985 = vmatpush1.msra.mxu0 0.0
        %2986 = vmatprep.subr.mxu0 0.0
        %2987 = vmatpush1.msra.mxu0 0.0
        %2988 = vmatprep.subr.mxu0 0.0
        %2989 = vmatpush1.msra.mxu0 0.0
        %2990 = vmatprep.subr.mxu0 0.0
        %2991 = vmatpush1.msra.mxu0 0.0
        %2992 = vmatprep.subr.mxu0 0.0
        %2993 = vmatpush1.msra.mxu0 0.0
        %2994 = vmatprep.subr.mxu0 0.0
        %2995 = vmatpush1.msra.mxu0 0.0
        %2996 = vmatprep.subr.mxu0 0.0
        %2997 = vmatpush1.msra.mxu0 0.0
        %2998 = vmatprep.subr.mxu0 0.0
        %2999 = vmatpush1.msra.mxu0 0.0
        %3000 = vmatprep.subr.mxu0 0.0
        %3001 = vmatpush1.msra.mxu0 0.0
        %3002 = vmatprep.subr.mxu0 0.0
        %3003 = vmatpush1.msra.mxu0 0.0
        %3004 = vmatprep.subr.mxu0 0.0
        %3005 = vmatpush1.msra.mxu0 0.0
        %3006 = vmatprep.subr.mxu0 0.0
        %3007 = vmatpush1.msra.mxu0 0.0
        %3008 = vmatprep.mubr.f32.mxu0 0.0
        %v3009 = vand.u32 %v708, 4294901760
        %3010 = vmatmul.mubr.f32.gmra.mrb[0].mxu0 %v3009
        %v3011 = vpop.f32.mrb[0].mxu0
        %v3012 = vadd.f32 %v2911, %v3011
        %v3013 = vpop.f32.mrb[0].mxu0
        %3014 = vmatprep.mubr.f32.mxu0 0.0
        %v3015 = vand.u32 %v711, 4294901760
        %3016 = vmatmul.mubr.f32.gmra.mrb[0].mxu0 %v3015
        %v3017 = vpop.f32.mrb[0].mxu0
        %v3018 = vadd.f32 %v2921, %v3017
        %v3019 = vpop.f32.mrb[0].mxu0
        %3020 = vmatprep.mubr.f32.mxu0 0.0
        %v3021 = vand.u32 %v714, 4294901760
        %3022 = vmatmul.mubr.f32.gmra.mrb[0].mxu0 %v3021
        %v3023 = vpop.f32.mrb[0].mxu0
        %v3024 = vadd.f32 %v2931, %v3023
        %v3025 = vpop.f32.mrb[0].mxu0
        %3026 = vdwg.mxu0
        %3027 = vmatprep.subr.mxu0 0.0
        %v3028 = vand.u32 %v2828, 4294901760
        %v3029 = vsub.f32 %v2828, %v3028
        %3030 = vmatpush1.msra.mxu0 %v3029
        %3031 = vmatprep.subr.mxu0 0.0
        %v3032 = vand.u32 %v2834, 4294901760
        %v3033 = vsub.f32 %v2834, %v3032
        %3034 = vmatpush1.msra.mxu0 %v3033
        %3035 = vmatprep.subr.mxu0 0.0
        %3036 = vmatpush1.msra.mxu0 0.0
        %3037 = vmatprep.subr.mxu0 0.0
        %3038 = vmatpush1.msra.mxu0 0.0
        %3039 = vmatprep.subr.mxu0 0.0
        %3040 = vmatpush1.msra.mxu0 0.0
        %3041 = vmatprep.subr.mxu0 0.0
        %3042 = vmatpush1.msra.mxu0 0.0
        %3043 = vmatprep.subr.mxu0 0.0
        %3044 = vmatpush1.msra.mxu0 0.0
        %3045 = vmatprep.subr.mxu0 0.0
        %3046 = vmatpush1.msra.mxu0 0.0
        %3047 = vmatprep.subr.mxu0 0.0
        %3048 = vmatpush1.msra.mxu0 0.0
        %3049 = vmatprep.subr.mxu0 0.0
        %3050 = vmatpush1.msra.mxu0 0.0
        %3051 = vmatprep.subr.mxu0 0.0
        %3052 = vmatpush1.msra.mxu0 0.0
        %3053 = vmatprep.subr.mxu0 0.0
        %3054 = vmatpush1.msra.mxu0 0.0
        %3055 = vmatprep.subr.mxu0 0.0
        %3056 = vmatpush1.msra.mxu0 0.0
        %3057 = vmatprep.subr.mxu0 0.0
        %3058 = vmatpush1.msra.mxu0 0.0
        %3059 = vmatprep.subr.mxu0 0.0
        %3060 = vmatpush1.msra.mxu0 0.0
        %3061 = vmatprep.subr.mxu0 0.0
        %3062 = vmatpush1.msra.mxu0 0.0
        %3063 = vmatprep.subr.mxu0 0.0
        %3064 = vmatpush1.msra.mxu0 0.0
        %3065 = vmatprep.subr.mxu0 0.0
        %3066 = vmatpush1.msra.mxu0 0.0
        %3067 = vmatprep.subr.mxu0 0.0
        %3068 = vmatpush1.msra.mxu0 0.0
        %3069 = vmatprep.subr.mxu0 0.0
        %3070 = vmatpush1.msra.mxu0 0.0
        %3071 = vmatprep.subr.mxu0 0.0
        %3072 = vmatpush1.msra.mxu0 0.0
        %3073 = vmatprep.subr.mxu0 0.0
        %3074 = vmatpush1.msra.mxu0 0.0
        %3075 = vmatprep.subr.mxu0 0.0
        %3076 = vmatpush1.msra.mxu0 0.0
        %3077 = vmatprep.subr.mxu0 0.0
        %3078 = vmatpush1.msra.mxu0 0.0
        %3079 = vmatprep.subr.mxu0 0.0
        %3080 = vmatpush1.msra.mxu0 0.0
        %3081 = vmatprep.subr.mxu0 0.0
        %3082 = vmatpush1.msra.mxu0 0.0
        %3083 = vmatprep.subr.mxu0 0.0
        %3084 = vmatpush1.msra.mxu0 0.0
        %3085 = vmatprep.subr.mxu0 0.0
        %3086 = vmatpush1.msra.mxu0 0.0
        %3087 = vmatprep.subr.mxu0 0.0
        %3088 = vmatpush1.msra.mxu0 0.0
        %3089 = vmatprep.subr.mxu0 0.0
        %3090 = vmatpush1.msra.mxu0 0.0
        %3091 = vmatprep.subr.mxu0 0.0
        %3092 = vmatpush1.msra.mxu0 0.0
        %3093 = vmatprep.subr.mxu0 0.0
        %3094 = vmatpush1.msra.mxu0 0.0
        %3095 = vmatprep.mubr.f32.mxu0 0.0
        %v3096 = vand.u32 %v708, 4294901760
        %v3097 = vsub.f32 %v708, %v3096
        %3098 = vmatmul.mubr.f32.gmra.mrb[0].mxu0 %v3097
        %v3099 = vpop.f32.mrb[0].mxu0
        %v3100 = vadd.f32 %v3012, %v3099
        %v3101 = vpop.f32.mrb[0].mxu0
        %3102 = vmatprep.mubr.f32.mxu0 0.0
        %v3103 = vand.u32 %v711, 4294901760
        %v3104 = vsub.f32 %v711, %v3103
        %3105 = vmatmul.mubr.f32.gmra.mrb[0].mxu0 %v3104
        %v3106 = vpop.f32.mrb[0].mxu0
        %v3107 = vadd.f32 %v3018, %v3106
        %v3108 = vpop.f32.mrb[0].mxu0
        %3109 = vmatprep.mubr.f32.mxu0 0.0
        %v3110 = vand.u32 %v714, 4294901760
        %v3111 = vsub.f32 %v714, %v3110
        %3112 = vmatmul.mubr.f32.gmra.mrb[0].mxu0 %v3111
        %v3113 = vpop.f32.mrb[0].mxu0
        %v3114 = vadd.f32 %v3024, %v3113
        %v3115 = vpop.f32.mrb[0].mxu0
        %3116 = vdwg.mxu0
        %3117 = vmatprep.subr.mxu0 0.0
        %v3118 = vand.u32 %v2828, 4294901760
        %3119 = vmatpush1.msra.mxu0 %v3118
        %3120 = vmatprep.subr.mxu0 0.0
        %v3121 = vand.u32 %v2834, 4294901760
        %3122 = vmatpush1.msra.mxu0 %v3121
        %3123 = vmatprep.subr.mxu0 0.0
        %3124 = vmatpush1.msra.mxu0 0.0
        %3125 = vmatprep.subr.mxu0 0.0
        %3126 = vmatpush1.msra.mxu0 0.0
        %3127 = vmatprep.subr.mxu0 0.0
        %3128 = vmatpush1.msra.mxu0 0.0
        %3129 = vmatprep.subr.mxu0 0.0
        %3130 = vmatpush1.msra.mxu0 0.0
        %3131 = vmatprep.subr.mxu0 0.0
        %3132 = vmatpush1.msra.mxu0 0.0
        %3133 = vmatprep.subr.mxu0 0.0
        %3134 = vmatpush1.msra.mxu0 0.0
        %3135 = vmatprep.subr.mxu0 0.0
        %3136 = vmatpush1.msra.mxu0 0.0
        %3137 = vmatprep.subr.mxu0 0.0
        %3138 = vmatpush1.msra.mxu0 0.0
        %3139 = vmatprep.subr.mxu0 0.0
        %3140 = vmatpush1.msra.mxu0 0.0
        %3141 = vmatprep.subr.mxu0 0.0
        %3142 = vmatpush1.msra.mxu0 0.0
        %3143 = vmatprep.subr.mxu0 0.0
        %3144 = vmatpush1.msra.mxu0 0.0
        %3145 = vmatprep.subr.mxu0 0.0
        %3146 = vmatpush1.msra.mxu0 0.0
        %3147 = vmatprep.subr.mxu0 0.0
        %3148 = vmatpush1.msra.mxu0 0.0
        %3149 = vmatprep.subr.mxu0 0.0
        %3150 = vmatpush1.msra.mxu0 0.0
        %3151 = vmatprep.subr.mxu0 0.0
        %3152 = vmatpush1.msra.mxu0 0.0
        %3153 = vmatprep.subr.mxu0 0.0
        %3154 = vmatpush1.msra.mxu0 0.0
        %3155 = vmatprep.subr.mxu0 0.0
        %3156 = vmatpush1.msra.mxu0 0.0
        %3157 = vmatprep.subr.mxu0 0.0
        %3158 = vmatpush1.msra.mxu0 0.0
        %3159 = vmatprep.subr.mxu0 0.0
        %3160 = vmatpush1.msra.mxu0 0.0
        %3161 = vmatprep.subr.mxu0 0.0
        %3162 = vmatpush1.msra.mxu0 0.0
        %3163 = vmatprep.subr.mxu0 0.0
        %3164 = vmatpush1.msra.mxu0 0.0
        %3165 = vmatprep.subr.mxu0 0.0
        %3166 = vmatpush1.msra.mxu0 0.0
        %3167 = vmatprep.subr.mxu0 0.0
        %3168 = vmatpush1.msra.mxu0 0.0
        %3169 = vmatprep.subr.mxu0 0.0
        %3170 = vmatpush1.msra.mxu0 0.0
        %3171 = vmatprep.subr.mxu0 0.0
        %3172 = vmatpush1.msra.mxu0 0.0
        %3173 = vmatprep.subr.mxu0 0.0
        %3174 = vmatpush1.msra.mxu0 0.0
        %3175 = vmatprep.subr.mxu0 0.0
        %3176 = vmatpush1.msra.mxu0 0.0
        %3177 = vmatprep.subr.mxu0 0.0
        %3178 = vmatpush1.msra.mxu0 0.0
        %3179 = vmatprep.subr.mxu0 0.0
        %3180 = vmatpush1.msra.mxu0 0.0
        %3181 = vmatprep.subr.mxu0 0.0
        %3182 = vmatpush1.msra.mxu0 0.0
        %3183 = vmatprep.mubr.f32.mxu0 0.0
        %v3184 = vand.u32 %v708, 4294901760
        %v3185 = vsub.f32 %v708, %v3184
        %v3186 = vand.u32 %v3185, 4294901760
        %3187 = vmatmul.mubr.f32.gmra.mrb[0].mxu0 %v3186
        %v3188 = vpop.f32.mrb[0].mxu0
        %v3189 = vadd.f32 %v3100, %v3188
        %v3190 = vpop.f32.mrb[0].mxu0
        %3191 = vmatprep.mubr.f32.mxu0 0.0
        %v3192 = vand.u32 %v711, 4294901760
        %v3193 = vsub.f32 %v711, %v3192
        %v3194 = vand.u32 %v3193, 4294901760
        %3195 = vmatmul.mubr.f32.gmra.mrb[0].mxu0 %v3194
        %v3196 = vpop.f32.mrb[0].mxu0
        %v3197 = vadd.f32 %v3107, %v3196
        %v3198 = vpop.f32.mrb[0].mxu0
        %3199 = vmatprep.mubr.f32.mxu0 0.0
        %v3200 = vand.u32 %v714, 4294901760
        %v3201 = vsub.f32 %v714, %v3200
        %v3202 = vand.u32 %v3201, 4294901760
        %3203 = vmatmul.mubr.f32.gmra.mrb[0].mxu0 %v3202
        %v3204 = vpop.f32.mrb[0].mxu0
        %v3205 = vadd.f32 %v3114, %v3204
        %v3206 = vpop.f32.mrb[0].mxu0
        %3207 = vdwg.mxu0
        %3208 = vmatprep.subr.mxu0 0.0
        %v3209 = vand.u32 %v2828, 4294901760
        %v3210 = vsub.f32 %v2828, %v3209
        %v3211 = vand.u32 %v3210, 4294901760
        %3212 = vmatpush1.msra.mxu0 %v3211
        %3213 = vmatprep.subr.mxu0 0.0
        %v3214 = vand.u32 %v2834, 4294901760
        %v3215 = vsub.f32 %v2834, %v3214
        %v3216 = vand.u32 %v3215, 4294901760
        %3217 = vmatpush1.msra.mxu0 %v3216
        %3218 = vmatprep.subr.mxu0 0.0
        %3219 = vmatpush1.msra.mxu0 0.0
        %3220 = vmatprep.subr.mxu0 0.0
        %3221 = vmatpush1.msra.mxu0 0.0
        %3222 = vmatprep.subr.mxu0 0.0
        %3223 = vmatpush1.msra.mxu0 0.0
        %3224 = vmatprep.subr.mxu0 0.0
        %3225 = vmatpush1.msra.mxu0 0.0
        %3226 = vmatprep.subr.mxu0 0.0
        %3227 = vmatpush1.msra.mxu0 0.0
        %3228 = vmatprep.subr.mxu0 0.0
        %3229 = vmatpush1.msra.mxu0 0.0
        %3230 = vmatprep.subr.mxu0 0.0
        %3231 = vmatpush1.msra.mxu0 0.0
        %3232 = vmatprep.subr.mxu0 0.0
        %3233 = vmatpush1.msra.mxu0 0.0
        %3234 = vmatprep.subr.mxu0 0.0
        %3235 = vmatpush1.msra.mxu0 0.0
        %3236 = vmatprep.subr.mxu0 0.0
        %3237 = vmatpush1.msra.mxu0 0.0
        %3238 = vmatprep.subr.mxu0 0.0
        %3239 = vmatpush1.msra.mxu0 0.0
        %3240 = vmatprep.subr.mxu0 0.0
        %3241 = vmatpush1.msra.mxu0 0.0
        %3242 = vmatprep.subr.mxu0 0.0
        %3243 = vmatpush1.msra.mxu0 0.0
        %3244 = vmatprep.subr.mxu0 0.0
        %3245 = vmatpush1.msra.mxu0 0.0
        %3246 = vmatprep.subr.mxu0 0.0
        %3247 = vmatpush1.msra.mxu0 0.0
        %3248 = vmatprep.subr.mxu0 0.0
        %3249 = vmatpush1.msra.mxu0 0.0
        %3250 = vmatprep.subr.mxu0 0.0
        %3251 = vmatpush1.msra.mxu0 0.0
        %3252 = vmatprep.subr.mxu0 0.0
        %3253 = vmatpush1.msra.mxu0 0.0
        %3254 = vmatprep.subr.mxu0 0.0
        %3255 = vmatpush1.msra.mxu0 0.0
        %3256 = vmatprep.subr.mxu0 0.0
        %3257 = vmatpush1.msra.mxu0 0.0
        %3258 = vmatprep.subr.mxu0 0.0
        %3259 = vmatpush1.msra.mxu0 0.0
        %3260 = vmatprep.subr.mxu0 0.0
        %3261 = vmatpush1.msra.mxu0 0.0
        %3262 = vmatprep.subr.mxu0 0.0
        %3263 = vmatpush1.msra.mxu0 0.0
        %3264 = vmatprep.subr.mxu0 0.0
        %3265 = vmatpush1.msra.mxu0 0.0
        %3266 = vmatprep.subr.mxu0 0.0
        %3267 = vmatpush1.msra.mxu0 0.0
        %3268 = vmatprep.subr.mxu0 0.0
        %3269 = vmatpush1.msra.mxu0 0.0
        %3270 = vmatprep.subr.mxu0 0.0
        %3271 = vmatpush1.msra.mxu0 0.0
        %3272 = vmatprep.subr.mxu0 0.0
        %3273 = vmatpush1.msra.mxu0 0.0
        %3274 = vmatprep.subr.mxu0 0.0
        %3275 = vmatpush1.msra.mxu0 0.0
        %3276 = vmatprep.subr.mxu0 0.0
        %3277 = vmatpush1.msra.mxu0 0.0
        %3278 = vmatprep.mubr.f32.mxu0 0.0
        %v3279 = vand.u32 %v708, 4294901760
        %3280 = vmatmul.mubr.f32.gmra.mrb[0].mxu0 %v3279
        %v3281 = vpop.f32.mrb[0].mxu0
        %v3282 = vadd.f32 %v3189, %v3281
        %v3283 = vpop.f32.mrb[0].mxu0
        %3284 = vmatprep.mubr.f32.mxu0 0.0
        %v3285 = vand.u32 %v711, 4294901760
        %3286 = vmatmul.mubr.f32.gmra.mrb[0].mxu0 %v3285
        %v3287 = vpop.f32.mrb[0].mxu0
        %v3288 = vadd.f32 %v3197, %v3287
        %v3289 = vpop.f32.mrb[0].mxu0
        %3290 = vmatprep.mubr.f32.mxu0 0.0
        %v3291 = vand.u32 %v714, 4294901760
        %3292 = vmatmul.mubr.f32.gmra.mrb[0].mxu0 %v3291
        %v3293 = vpop.f32.mrb[0].mxu0
        %v3294 = vadd.f32 %v3205, %v3293
        %v3295 = vpop.f32.mrb[0].mxu0
        %3296 = vdwg.mxu0
        %3297 = vmatprep.subr.mxu0 0.0
        %v3298 = vand.u32 %v2828, 4294901760
        %3299 = vmatpush1.msra.mxu0 %v3298
        %3300 = vmatprep.subr.mxu0 0.0
        %v3301 = vand.u32 %v2834, 4294901760
        %3302 = vmatpush1.msra.mxu0 %v3301
        %3303 = vmatprep.subr.mxu0 0.0
        %3304 = vmatpush1.msra.mxu0 0.0
        %3305 = vmatprep.subr.mxu0 0.0
        %3306 = vmatpush1.msra.mxu0 0.0
        %3307 = vmatprep.subr.mxu0 0.0
        %3308 = vmatpush1.msra.mxu0 0.0
        %3309 = vmatprep.subr.mxu0 0.0
        %3310 = vmatpush1.msra.mxu0 0.0
        %3311 = vmatprep.subr.mxu0 0.0
        %3312 = vmatpush1.msra.mxu0 0.0
        %3313 = vmatprep.subr.mxu0 0.0
        %3314 = vmatpush1.msra.mxu0 0.0
        %3315 = vmatprep.subr.mxu0 0.0
        %3316 = vmatpush1.msra.mxu0 0.0
        %3317 = vmatprep.subr.mxu0 0.0
        %3318 = vmatpush1.msra.mxu0 0.0
        %3319 = vmatprep.subr.mxu0 0.0
        %3320 = vmatpush1.msra.mxu0 0.0
        %3321 = vmatprep.subr.mxu0 0.0
        %3322 = vmatpush1.msra.mxu0 0.0
        %3323 = vmatprep.subr.mxu0 0.0
        %3324 = vmatpush1.msra.mxu0 0.0
        %3325 = vmatprep.subr.mxu0 0.0
        %3326 = vmatpush1.msra.mxu0 0.0
        %3327 = vmatprep.subr.mxu0 0.0
        %3328 = vmatpush1.msra.mxu0 0.0
        %3329 = vmatprep.subr.mxu0 0.0
        %3330 = vmatpush1.msra.mxu0 0.0
        %3331 = vmatprep.subr.mxu0 0.0
        %3332 = vmatpush1.msra.mxu0 0.0
        %3333 = vmatprep.subr.mxu0 0.0
        %3334 = vmatpush1.msra.mxu0 0.0
        %3335 = vmatprep.subr.mxu0 0.0
        %3336 = vmatpush1.msra.mxu0 0.0
        %3337 = vmatprep.subr.mxu0 0.0
        %3338 = vmatpush1.msra.mxu0 0.0
        %3339 = vmatprep.subr.mxu0 0.0
        %3340 = vmatpush1.msra.mxu0 0.0
        %3341 = vmatprep.subr.mxu0 0.0
        %3342 = vmatpush1.msra.mxu0 0.0
        %3343 = vmatprep.subr.mxu0 0.0
        %3344 = vmatpush1.msra.mxu0 0.0
        %3345 = vmatprep.subr.mxu0 0.0
        %3346 = vmatpush1.msra.mxu0 0.0
        %3347 = vmatprep.subr.mxu0 0.0
        %3348 = vmatpush1.msra.mxu0 0.0
        %3349 = vmatprep.subr.mxu0 0.0
        %3350 = vmatpush1.msra.mxu0 0.0
        %3351 = vmatprep.subr.mxu0 0.0
        %3352 = vmatpush1.msra.mxu0 0.0
        %3353 = vmatprep.subr.mxu0 0.0
        %3354 = vmatpush1.msra.mxu0 0.0
        %3355 = vmatprep.subr.mxu0 0.0
        %3356 = vmatpush1.msra.mxu0 0.0
        %3357 = vmatprep.subr.mxu0 0.0
        %3358 = vmatpush1.msra.mxu0 0.0
        %3359 = vmatprep.subr.mxu0 0.0
        %3360 = vmatpush1.msra.mxu0 0.0
        %3361 = vmatprep.subr.mxu0 0.0
        %3362 = vmatpush1.msra.mxu0 0.0
        %3363 = vmatprep.mubr.f32.mxu0 0.0
        %v3364 = vand.u32 %v708, 4294901760
        %3365 = vmatmul.mubr.f32.gmra.mrb[0].mxu0 %v3364
        %v3366 = vpop.f32.mrb[0].mxu0
        %v3367 = vadd.f32 %v3282, %v3366
        %v3368 = vpop.f32.mrb[0].mxu0
        %3369 = vmatprep.mubr.f32.mxu0 0.0
        %v3370 = vand.u32 %v711, 4294901760
        %3371 = vmatmul.mubr.f32.gmra.mrb[0].mxu0 %v3370
        %v3372 = vpop.f32.mrb[0].mxu0
        %v3373 = vadd.f32 %v3288, %v3372
        %v3374 = vpop.f32.mrb[0].mxu0
        %3375 = vmatprep.mubr.f32.mxu0 0.0
        %v3376 = vand.u32 %v714, 4294901760
        %3377 = vmatmul.mubr.f32.gmra.mrb[0].mxu0 %v3376
        %v3378 = vpop.f32.mrb[0].mxu0
        %v3379 = vadd.f32 %v3294, %v3378
        %v3380 = vpop.f32.mrb[0].mxu0
        %3381 = vdwg.mxu0
        %s3382 = scalar_lea.vmem %s190, 48
        %3383 = vst.msk [vmem:[%s3382] sm:$0xff] %vm1261, %v3367
        %3384 = vst.msk [vmem:[%s3382 + $0x8] sm:$0xff] %vm1261, %v3373
        %3385 = vst.msk [vmem:[%s3382 + $0x10] sm:$0x1] %vm1264, %v3379
        %p3386 = scmp.lt.s32.totalorder %s17, 1
        %s3387 = scalar_select %p3386, %s17, 1
        %s3388 = smul.addr %s3387, 9
        %s3389 = smul.addr %s3388, 8
        %s3390 = scalar_lea.vmem %s3, %s3389
        // Predicated region
        $region37: #{tpu_custom_call.1} parent=31 // pred_check
          %p3391 = pneg %p103
        $region38: #{tpu_custom_call.1} parent=31 // pred_check_branch
          %3393 = sbr.rel (%p3391) target = $region40
        $region39: #{tpu_custom_call.1} parent=31 // pred_region
          _
        $region40: #{tpu_custom_call.1} parent=31 // pred_fallthru
          _
      $region32: #{tpu_custom_call.1} parent=5 // pred_fallthru
        _
      %p3394 = scmp.le.s32.totalorder 2, %s12
      // Predicated region
      $region41: #{tpu_custom_call.1} parent=5 // pred_check
        %p3395 = pneg %p3394
      $region42: #{tpu_custom_call.1} parent=5 // pred_check_branch
        %3397 = sbr.rel (%p3395) target = $region44
      $region43: #{tpu_custom_call.1} parent=5 // pred_region
        %s3398 = ssub.s32 %s12, 2
        // Predicated region
        $region45: #{tpu_custom_call.1} parent=43 // pred_check
          %p3399 = pneg %p109
        $region46: #{tpu_custom_call.1} parent=43 // pred_check_branch
          %3401 = sbr.rel (%p3399) target = $region48
        $region47: #{tpu_custom_call.1} parent=43 // pred_region
          %p3402 = scmp.lt.s32.totalorder %s18, 1
          %s3403 = scalar_select %p3402, %s18, 1
          %s3404 = smul.addr %s3403, 9
          %s3405 = smul.addr %s3404, 8
          %s3406 = scalar_lea.vmem %s3, %s3405
        $region48: #{tpu_custom_call.1} parent=43 // pred_fallthru
          _
      $region44: #{tpu_custom_call.1} parent=5 // pred_fallthru
        _
    $region6: #{tpu_custom_call.1} parent=1 // loop_footer
      %s16 = sadd.s32 1, %s12
    $region7: #{tpu_custom_call.1} parent=1 // loop_footer_branch
      %11 = sbr.rel target = $region3
    $region8: #{tpu_custom_call.1} parent=1 // loop_exit
      _
    %3407 = vsyncpa [#allocation3], 1
    %s3408 = scalar_lea.sflag [#allocation3], 1
    %3409 = vsyncpa %s3408, 1

</llo_original>
